<compile_context>
chip_gen: v7x
topology: tpu7x:2x2x1
jax: 0.10.0
libtpu: 0.0.40
codegen_flags: <defaults>
</compile_context>

<pallas_src>
import functools

import jax
import jax.numpy as jnp
from jax.experimental import pallas as pl
from jax.experimental.pallas import tpu as pltpu

F32 = jnp.float32
BF16 = jnp.bfloat16
BN_EPS = 1e-5
LANE = 128            # channels are zero-padded to the TPU lane width

VMEM_SPEC = pl.BlockSpec(memory_space=pltpu.MemorySpace.VMEM)
COMPILER_PARAMS = pltpu.CompilerParams(vmem_limit_bytes=32 * 1024 * 1024)


def _round_up(v, m):
    return ((v + m - 1) // m) * m


# --------------------------- Pallas kernels ---------------------------------

def _bn_cols(y, g, b):
    """BatchNorm2d(track_running_stats=False): batch statistics over rows."""
    mean = jnp.mean(y, axis=0, keepdims=True)
    var = jnp.mean(jnp.square(y - mean), axis=0, keepdims=True)
    return (y - mean) * jax.lax.rsqrt(var + BN_EPS) * g + b


def _conv_bn_kernel(*refs, N, H, W, Cin, Cout, K, relu, n_skips, emit_pre):
    """[ReLU] -> KxK conv (single im2col matmul) -> +skips -> BatchNorm."""
    # refs = (x_padded, w2d, skip_0..skip_{n-1}, gamma, beta,
    #         [pre_bn_out], post_bn_out, im2col_scratch)
    xp_ref, w_ref = refs[0], refs[1]
    skip_refs = refs[2:2 + n_skips]
    g_ref, b_ref = refs[2 + n_skips], refs[3 + n_skips]
    out_refs = refs[4 + n_skips:-1]
    col_ref = refs[-1]

    M = N * H * W
    xp = xp_ref[...]
    if relu:                                   # ReLU hoisted out of the tap loop
        xp = jnp.maximum(xp, 0.0)
    xp = xp.astype(BF16)                       # bf16 MXU operands, f32 accumulate

    # im2col into a lane-aligned VMEM scratch (Cin is a multiple of 128).
    for dy in range(K):
        for dx in range(K):
            t = dy * K + dx
            col_ref[:, t * Cin:(t + 1) * Cin] = (
                xp[:, dy:dy + H, dx:dx + W, :].reshape(M, Cin))

    y = jnp.dot(col_ref[...], w_ref[...], preferred_element_type=F32)
    for s_ref in skip_refs:
        y = y + s_ref[...].reshape(M, Cout)
    if emit_pre:
        out_refs[0][...] = y.reshape(N, H, W, Cout)
    out_refs[-1][...] = _bn_cols(y, g_ref[...], b_ref[...]).reshape(N, H, W, Cout)


def _sep_bn_kernel(*refs, N, H, W, C, K, n_skips):
    """ReLU -> KxK depthwise conv -> 1x1 conv -> +skips -> BatchNorm."""
    # refs = (x_padded, dw2d, pw2d, skip..., gamma, beta, pre_bn, post_bn)
    xp_ref, dw_ref, pw_ref = refs[0], refs[1], refs[2]
    skip_refs = refs[3:3 + n_skips]
    g_ref, b_ref = refs[3 + n_skips], refs[4 + n_skips]
    pre_ref, post_ref = refs[5 + n_skips], refs[6 + n_skips]

    M = N * H * W
    xp = jnp.maximum(xp_ref[...], 0.0)          # hoisted ReLU (applied once)
    dw = dw_ref[...]                            # (K*K, C) f32
    acc = jnp.zeros((N, H, W, C), F32)
    for dy in range(K):
        for dx in range(K):
            t = dy * K + dx
            acc = acc + xp[:, dy:dy + H, dx:dx + W, :] * dw[t:t + 1, :]
    y = jnp.dot(acc.reshape(M, C).astype(BF16), pw_ref[...],
                preferred_element_type=F32)
    for s_ref in skip_refs:
        y = y + s_ref[...].reshape(M, C)
    pre_ref[...] = y.reshape(N, H, W, C)
    post_ref[...] = _bn_cols(y, g_ref[...], b_ref[...]).reshape(N, H, W, C)


def _pool_bn_kernel(*refs, N, H, W, C, K, mode, n_skips):
    """3x3 max/avg pool -> +skips -> BatchNorm."""
    # refs = (x_padded, skip..., gamma, beta, pre_bn, post_bn)
    xp_ref = refs[0]
    skip_refs = refs[1:1 + n_skips]
    g_ref, b_ref = refs[1 + n_skips], refs[2 + n_skips]
    pre_ref, post_ref = refs[3 + n_skips], refs[4 + n_skips]

    M = N * H * W
    xp = xp_ref[...]
    if mode == "max":
        acc = jnp.full((N, H, W, C), -jnp.inf, F32)
        for dy in range(K):
            for dx in range(K):
                acc = jnp.maximum(acc, xp[:, dy:dy + H, dx:dx + W, :])
    else:   # avg, count_include_pad=True (PyTorch default)
        acc = jnp.zeros((N, H, W, C), F32)
        for dy in range(K):
            for dx in range(K):
                acc = acc + xp[:, dy:dy + H, dx:dx + W, :]
        acc = acc * (1.0 / (K * K))
    y = acc.reshape(M, C)
    for s_ref in skip_refs:
        y = y + s_ref[...].reshape(M, C)
    pre_ref[...] = y.reshape(N, H, W, C)
    post_ref[...] = _bn_cols(y, g_ref[...], b_ref[...]).reshape(N, H, W, C)


def _matmul_bn_kernel(x_ref, w_ref, g_ref, b_ref, o_ref, *, N, H, W, Cin, Cout):
    """1x1 conv (matmul) -> BatchNorm.  Used by the fused FactorizedReduction."""
    M = N * H * W
    y = jnp.dot(x_ref[...].reshape(M, Cin).astype(BF16), w_ref[...],
                preferred_element_type=F32)
    o_ref[...] = _bn_cols(y, g_ref[...], b_ref[...]).reshape(N, H, W, Cout)


def _head_kernel(x_ref, w_ref, b_ref, o_ref, *, N, H, W, C):
    """Global average pool -> Linear -> log_softmax, fused."""
    x = x_ref[...].reshape(N, H * W, C)
    gap = jnp.mean(x, axis=1)                                    # (N, C)
    logits = jnp.dot(gap.astype(BF16), w_ref[...],
                     preferred_element_type=F32) + b_ref[...]
    m = jnp.max(logits, axis=1, keepdims=True)
    z = logits - m
    lse = jnp.log(jnp.sum(jnp.exp(z), axis=1, keepdims=True))
    o_ref[...] = z - lse


# --------------------------- pallas_call wrappers ----------------------------

def conv_bn(x, w2d, gamma, beta, *, K, relu, skips=(), emit_pre=True):
    """Fused [ReLU] -> KxK conv -> +skips -> BN.  Returns (pre, post) or post."""
    N, H, W, Cin = x.shape
    Cout = w2d.shape[1]
    p = K // 2
    xp = jnp.pad(x, ((0, 0), (p, p), (p, p), (0, 0)))
    n_skips = len(skips)
    kern = functools.partial(_conv_bn_kernel, N=N, H=H, W=W, Cin=Cin, Cout=Cout,
                             K=K, relu=relu, n_skips=n_skips, emit_pre=emit_pre)
    sds = jax.ShapeDtypeStruct((N, H, W, Cout), F32)
    out_shape = (sds, sds) if emit_pre else (sds,)
    outs = pl.pallas_call(
        kern,
        out_shape=out_shape,
        in_specs=[VMEM_SPEC] * (4 + n_skips),
        out_specs=(VMEM_SPEC,) * len(out_shape),
        scratch_shapes=[pltpu.VMEM((N * H * W, K * K * Cin), BF16)],
        compiler_params=COMPILER_PARAMS,
    )(xp, w2d, *skips, gamma, beta)
    return outs if emit_pre else outs[0]


def sep_conv_bn(x, dw2d, pw2d, gamma, beta, *, K, skips=()):
    N, H, W, C = x.shape
    p = K // 2
    xp = jnp.pad(x, ((0, 0), (p, p), (p, p), (0, 0)))
    n_skips = len(skips)
    kern = functools.partial(_sep_bn_kernel, N=N, H=H, W=W, C=C, K=K,
                             n_skips=n_skips)
    sds = jax.ShapeDtypeStruct((N, H, W, C), F32)
    return pl.pallas_call(
        kern,
        out_shape=(sds, sds),
        in_specs=[VMEM_SPEC] * (5 + n_skips),
        out_specs=(VMEM_SPEC, VMEM_SPEC),
        compiler_params=COMPILER_PARAMS,
    )(xp, dw2d, pw2d, *skips, gamma, beta)


def pool_bn(x, gamma, beta, *, mode, K=3, skips=()):
    N, H, W, C = x.shape
    p = K // 2
    pad_val = -jnp.inf if mode == "max" else 0.0
    xp = jnp.pad(x, ((0, 0), (p, p), (p, p), (0, 0)), constant_values=pad_val)
    n_skips = len(skips)
    kern = functools.partial(_pool_bn_kernel, N=N, H=H, W=W, C=C, K=K,
                             mode=mode, n_skips=n_skips)
    sds = jax.ShapeDtypeStruct((N, H, W, C), F32)
    return pl.pallas_call(
        kern,
        out_shape=(sds, sds),
        in_specs=[VMEM_SPEC] * (3 + n_skips),
        out_specs=(VMEM_SPEC, VMEM_SPEC),
        compiler_params=COMPILER_PARAMS,
    )(xp, *skips, gamma, beta)


def factorized_reduction(x, rp):
    """Fused FactorizedReduction: two stride-2 paths + per-path 1x1 conv +
    channel concat + BN, as ONE matmul+BN kernel (paths stacked on channels,
    multiplied by a block-diagonal weight)."""
    N, H, W, C = x.shape
    H2, W2 = H // 2, W // 2
    # Path 2 (pad bottom/right, drop first row/col, stride 2) is exactly the
    # odd-index grid for even H, W (the zero padding is never selected).
    xcat = jnp.concatenate([x[:, 0::2, 0::2, :], x[:, 1::2, 1::2, :]], axis=-1)
    kern = functools.partial(_matmul_bn_kernel, N=N, H=H2, W=W2,
                             Cin=2 * C, Cout=C)
    return pl.pallas_call(
        kern,
        out_shape=jax.ShapeDtypeStruct((N, H2, W2, C), F32),
        in_specs=[VMEM_SPEC] * 4,
        out_specs=VMEM_SPEC,
        compiler_params=COMPILER_PARAMS,
    )(xcat, rp["w2d"], rp["gamma"], rp["beta"])


def head(x, w, b):
    N, H, W, C = x.shape
    NC = w.shape[1]
    kern = functools.partial(_head_kernel, N=N, H=H, W=W, C=C)
    return pl.pallas_call(
        kern,
        out_shape=jax.ShapeDtypeStruct((N, NC), F32),
        in_specs=[VMEM_SPEC] * 3,
        out_specs=VMEM_SPEC,
        compiler_params=COMPILER_PARAMS,
    )(x, w, b)


# --------------------------- network glue -----------------------------------

def enas_layer(x, cfg, prev_outputs, lp):
    """One FixedEnasLayer: selected branch + skip-adds + BatchNorm, fused into
    a single pallas_call.  Returns (pre_bn, post_bn)."""
    branch = int(cfg["branch"])
    skips = [prev_outputs[i] for i, s in enumerate(cfg.get("skips", [])) if s]
    g, b = lp["gamma"], lp["beta"]
    if branch == 0:
        return conv_bn(x, lp["conv3"], g, b, K=3, relu=True, skips=skips)
    if branch == 1:
        return conv_bn(x, lp["conv5"], g, b, K=5, relu=True, skips=skips)
    if branch == 2:
        return sep_conv_bn(x, lp["dw3"], lp["pw3"], g, b, K=3, skips=skips)
    if branch == 3:
        return sep_conv_bn(x, lp["dw5"], lp["pw5"], g, b, K=5, skips=skips)
    if branch == 4:
        return pool_bn(x, g, b, mode="avg", skips=skips)
    if branch == 5:
        return pool_bn(x, g, b, mode="max", skips=skips)
    raise ValueError("branch must be in [0, 6)")


def pack_params(params, C, CP):
    """Pad channels to the lane width, fold conv weights into im2col matmul
    layout, and pre-cast MXU operands to bf16 (f32 accumulation in-kernel).
    Zero padding keeps the forward numerics of the unpadded network."""
    def conv_w2d(w):                 # (K,K,Cin,Cout) -> (K*K*CP, CP) bf16
        K, _, ci, co = w.shape
        wp = jnp.pad(w, ((0, 0), (0, 0), (0, CP - ci), (0, CP - co)))
        return wp.reshape(K * K * CP, CP).astype(BF16)

    def dw_w2d(w):                   # (K,K,C) -> (K*K, CP) f32 (VPU operand)
        K = w.shape[0]
        wp = jnp.pad(w, ((0, 0), (0, 0), (0, CP - w.shape[2])))
        return wp.reshape(K * K, CP)

    def vec(v):                      # (C,) -> (1, CP)
        return jnp.pad(v, (0, CP - v.shape[0])).reshape(1, CP)

    packed = {
        "stem": {"w2d": conv_w2d(params["stem"]["w"]),
                 "gamma": vec(params["stem"]["gamma"]),
                 "beta": vec(params["stem"]["beta"])},
        "layers": [],
        "reductions": [],
        "fc": {"w": jnp.pad(params["fc"]["w"],
                            ((0, CP - C), (0, 0))).astype(BF16),
               "b": params["fc"]["b"].reshape(1, -1)},
    }
    for lp in params["layers"]:
        br = lp["branches"]
        packed["layers"].append({
            "conv3": conv_w2d(br["conv3"]), "conv5": conv_w2d(br["conv5"]),
            "dw3": dw_w2d(br["dw3"]), "pw3": conv_w2d(br["pw3"]),
            "dw5": dw_w2d(br["dw5"]), "pw5": conv_w2d(br["pw5"]),
            "gamma": vec(lp["bn_gamma"]), "beta": vec(lp["bn_beta"]),
        })
    for rp in params["reductions"]:
        w1 = rp["w1"].reshape(C, C // 2)
        w2 = rp["w2"].reshape(C, C // 2)
        wbd = jnp.zeros((2 * CP, CP), F32)
        wbd = wbd.at[0:C, 0:C // 2].set(w1)          # path-1 block
        wbd = wbd.at[CP:CP + C, C // 2:C].set(w2)    # path-2 block
        packed["reductions"].append({
            "w2d": wbd.astype(BF16),
            "gamma": vec(rp["gamma"]), "beta": vec(rp["beta"]),
        })
    return packed


def fixed_enas_child_forward(x_nchw, config, params, num_layers):
    """FixedEnasChild.forward (eval mode).  NCHW input like PyTorch."""
    C = params["fc"]["w"].shape[0]                         # out_filters
    CP = max(LANE, _round_up(C, LANE))                     # lane-dense channels
    x = jnp.transpose(x_nchw, (0, 2, 3, 1)).astype(F32)    # NCHW -> NHWC
    x = jnp.pad(x, ((0, 0), (0, 0), (0, 0), (0, CP - x.shape[-1])))
    pk = pack_params(params, C, CP)

    pool_distance = num_layers // 3
    pool_layers = [pool_distance - 1, 2 * pool_distance - 1]

    # stemConv (3x3, no bias) + BatchNorm, fused in one kernel.
    x = conv_bn(x, pk["stem"]["w2d"], pk["stem"]["gamma"], pk["stem"]["beta"],
                K=3, relu=False, emit_pre=False)

    prev_outputs = []
    for layer_id in range(num_layers):
        lp = pk["layers"][layer_id]
        pre, post = enas_layer(x, config[str(layer_id)], prev_outputs, lp)
        prev_outputs.append(pre)        # pre-BN output, as in the reference
        x = post
        if layer_id in pool_layers:
            rp = pk["reductions"][pool_layers.index(layer_id)]
            prev_outputs = [factorized_reduction(t, rp) for t in prev_outputs]
            x = prev_outputs[-1]        # reference overwrites x here

    # TODO(synk): nn.Dropout is stochastic in train mode; eval-mode identity used.
    return head(x, pk["fc"]["w"], pk["fc"]["b"])


# --------------------------- parameter init ---------------------------------

def init_params(key, num_layers, in_channels, F, num_classes):
    keys = iter(jax.random.split(key, 4 + 8 * num_layers + 16))

    def w(shape, scale=0.1):
        return scale * jax.random.normal(next(keys), shape, F32)

    params = {
        "stem": {"w": w((3, 3, in_channels, F)),
                 "gamma": jnp.ones((F,), F32), "beta": jnp.zeros((F,), F32)},
        "layers": [],
        "reductions": [],
        "fc": {"w": w((F, num_classes)), "b": jnp.zeros((num_classes,), F32)},
    }
    for _ in range(num_layers):
        params["layers"].append({
            "branches": {
                "conv3": w((3, 3, F, F)), "conv5": w((5, 5, F, F)),
                "dw3": w((3, 3, F)), "pw3": w((1, 1, F, F)),
                "dw5": w((5, 5, F)), "pw5": w((1, 1, F, F)),
            },
            "bn_gamma": jnp.ones((F,), F32),
            "bn_beta": jnp.zeros((F,), F32),
        })
    for _ in range(2):   # two FactorizedReduction layers (pool_layers)
        params["reductions"].append({
            "w1": w((1, 1, F, F // 2)), "w2": w((1, 1, F, F // 2)),
            "gamma": jnp.ones((F,), F32), "beta": jnp.zeros((F,), F32),
        })
    return params


# ------------------------------- main ----------------------------------------

if __name__ == "__main__":
    key = jax.random.PRNGKey(0)
    k_x, k_p = jax.random.split(key)

    N, Cin, Hin = 2, 3, 16
    num_layers, out_filters, num_classes = 3, 16, 10

    x = jax.random.normal(k_x, (N, Cin, Hin, Hin), F32)   # NCHW, like PyTorch
    params = init_params(k_p, num_layers, Cin, out_filters, num_classes)

    # config[str(layer)] selects the ENAS branch and the skip connections.
    config = {
        "0": {"branch": 1, "skips": []},        # conv 5x5
        "1": {"branch": 2, "skips": [1]},       # sep-conv 3x3 + skip(0)
        "2": {"branch": 4, "skips": [1, 1]},    # avg-pool 3x3 + skips(0,1)
    }

    out = fixed_enas_child_forward(x, config, params, num_layers)
    out = jax.block_until_ready(out)
    assert out.shape == (N, num_classes)
    assert bool(jnp.all(jnp.isfinite(out)))
    print("KERNEL_OK")
</pallas_src>

<mosaic_0001>
module attributes {stable_mosaic.version = 11 : i64} {
  func.func @_conv_bn_kernel(%arg0: memref<2x18x18x128xf32, #tpu.memory_space<vmem>>, %arg1: memref<1152x128xbf16, #tpu.memory_space<vmem>>, %arg2: memref<1x128xf32, #tpu.memory_space<vmem>>, %arg3: memref<1x128xf32, #tpu.memory_space<vmem>>, %arg4: memref<2x16x16x128xf32, #tpu.memory_space<vmem>>, %arg5: memref<512x1152xbf16, #tpu.memory_space<vmem>>) attributes {dimension_semantics = [], scalar_prefetch = 0 : i64, scratch_operands = 1 : i64, tpu.core_type = #tpu.core_type<tc>} {
    %c0 = arith.constant 0 : index
    %c0_0 = arith.constant 0 : index
    %c0_1 = arith.constant 0 : index
    %c0_2 = arith.constant 0 : index
    %0 = vector.load %arg0[%c0, %c0_0, %c0_1, %c0_2] : memref<2x18x18x128xf32, #tpu.memory_space<vmem>>, vector<2x18x18x128xf32>
    %1 = arith.truncf %0 : vector<2x18x18x128xf32> to vector<2x18x18x128xbf16>
    %2 = vector.extract_strided_slice %1 {offsets = [0, 0, 0, 0], sizes = [2, 16, 16, 128], strides = [1, 1, 1, 1]} : vector<2x18x18x128xbf16> to vector<2x16x16x128xbf16>
    %3 = vector.shape_cast %2 : vector<2x16x16x128xbf16> to vector<512x128xbf16>
    %c0_3 = arith.constant 0 : index
    %c0_4 = arith.constant 0 : index
    %4 = vector.load %arg5[%c0_3, %c0_4] : memref<512x1152xbf16, #tpu.memory_space<vmem>>, vector<512x128xbf16>
    tpu.vector_store %arg5[%c0_3, %c0_4], %3 {strides = array<i32>} : memref<512x1152xbf16, #tpu.memory_space<vmem>>, vector<512x128xbf16>,
    %5 = vector.extract_strided_slice %1 {offsets = [0, 0, 1, 0], sizes = [2, 16, 16, 128], strides = [1, 1, 1, 1]} : vector<2x18x18x128xbf16> to vector<2x16x16x128xbf16>
    %6 = vector.shape_cast %5 : vector<2x16x16x128xbf16> to vector<512x128xbf16>
    %c0_5 = arith.constant 0 : index
    %c128 = arith.constant 128 : index
    %7 = vector.load %arg5[%c0_5, %c128] : memref<512x1152xbf16, #tpu.memory_space<vmem>>, vector<512x128xbf16>
    tpu.vector_store %arg5[%c0_5, %c128], %6 {strides = array<i32>} : memref<512x1152xbf16, #tpu.memory_space<vmem>>, vector<512x128xbf16>,
    %8 = vector.extract_strided_slice %1 {offsets = [0, 0, 2, 0], sizes = [2, 16, 16, 128], strides = [1, 1, 1, 1]} : vector<2x18x18x128xbf16> to vector<2x16x16x128xbf16>
    %9 = vector.shape_cast %8 : vector<2x16x16x128xbf16> to vector<512x128xbf16>
    %c0_6 = arith.constant 0 : index
    %c256 = arith.constant 256 : index
    %10 = vector.load %arg5[%c0_6, %c256] : memref<512x1152xbf16, #tpu.memory_space<vmem>>, vector<512x128xbf16>
    tpu.vector_store %arg5[%c0_6, %c256], %9 {strides = array<i32>} : memref<512x1152xbf16, #tpu.memory_space<vmem>>, vector<512x128xbf16>,
    %11 = vector.extract_strided_slice %1 {offsets = [0, 1, 0, 0], sizes = [2, 16, 16, 128], strides = [1, 1, 1, 1]} : vector<2x18x18x128xbf16> to vector<2x16x16x128xbf16>
    %12 = vector.shape_cast %11 : vector<2x16x16x128xbf16> to vector<512x128xbf16>
    %c0_7 = arith.constant 0 : index
    %c384 = arith.constant 384 : index
    %13 = vector.load %arg5[%c0_7, %c384] : memref<512x1152xbf16, #tpu.memory_space<vmem>>, vector<512x128xbf16>
    tpu.vector_store %arg5[%c0_7, %c384], %12 {strides = array<i32>} : memref<512x1152xbf16, #tpu.memory_space<vmem>>, vector<512x128xbf16>,
    %14 = vector.extract_strided_slice %1 {offsets = [0, 1, 1, 0], sizes = [2, 16, 16, 128], strides = [1, 1, 1, 1]} : vector<2x18x18x128xbf16> to vector<2x16x16x128xbf16>
    %15 = vector.shape_cast %14 : vector<2x16x16x128xbf16> to vector<512x128xbf16>
    %c0_8 = arith.constant 0 : index
    %c512 = arith.constant 512 : index
    %16 = vector.load %arg5[%c0_8, %c512] : memref<512x1152xbf16, #tpu.memory_space<vmem>>, vector<512x128xbf16>
    tpu.vector_store %arg5[%c0_8, %c512], %15 {strides = array<i32>} : memref<512x1152xbf16, #tpu.memory_space<vmem>>, vector<512x128xbf16>,
    %17 = vector.extract_strided_slice %1 {offsets = [0, 1, 2, 0], sizes = [2, 16, 16, 128], strides = [1, 1, 1, 1]} : vector<2x18x18x128xbf16> to vector<2x16x16x128xbf16>
    %18 = vector.shape_cast %17 : vector<2x16x16x128xbf16> to vector<512x128xbf16>
    %c0_9 = arith.constant 0 : index
    %c640 = arith.constant 640 : index
    %19 = vector.load %arg5[%c0_9, %c640] : memref<512x1152xbf16, #tpu.memory_space<vmem>>, vector<512x128xbf16>
    tpu.vector_store %arg5[%c0_9, %c640], %18 {strides = array<i32>} : memref<512x1152xbf16, #tpu.memory_space<vmem>>, vector<512x128xbf16>,
    %20 = vector.extract_strided_slice %1 {offsets = [0, 2, 0, 0], sizes = [2, 16, 16, 128], strides = [1, 1, 1, 1]} : vector<2x18x18x128xbf16> to vector<2x16x16x128xbf16>
    %21 = vector.shape_cast %20 : vector<2x16x16x128xbf16> to vector<512x128xbf16>
    %c0_10 = arith.constant 0 : index
    %c768 = arith.constant 768 : index
    %22 = vector.load %arg5[%c0_10, %c768] : memref<512x1152xbf16, #tpu.memory_space<vmem>>, vector<512x128xbf16>
    tpu.vector_store %arg5[%c0_10, %c768], %21 {strides = array<i32>} : memref<512x1152xbf16, #tpu.memory_space<vmem>>, vector<512x128xbf16>,
    %23 = vector.extract_strided_slice %1 {offsets = [0, 2, 1, 0], sizes = [2, 16, 16, 128], strides = [1, 1, 1, 1]} : vector<2x18x18x128xbf16> to vector<2x16x16x128xbf16>
    %24 = vector.shape_cast %23 : vector<2x16x16x128xbf16> to vector<512x128xbf16>
    %c0_11 = arith.constant 0 : index
    %c896 = arith.constant 896 : index
    %25 = vector.load %arg5[%c0_11, %c896] : memref<512x1152xbf16, #tpu.memory_space<vmem>>, vector<512x128xbf16>
    tpu.vector_store %arg5[%c0_11, %c896], %24 {strides = array<i32>} : memref<512x1152xbf16, #tpu.memory_space<vmem>>, vector<512x128xbf16>,
    %26 = vector.extract_strided_slice %1 {offsets = [0, 2, 2, 0], sizes = [2, 16, 16, 128], strides = [1, 1, 1, 1]} : vector<2x18x18x128xbf16> to vector<2x16x16x128xbf16>
    %27 = vector.shape_cast %26 : vector<2x16x16x128xbf16> to vector<512x128xbf16>
    %c0_12 = arith.constant 0 : index
    %c1024 = arith.constant 1024 : index
    %28 = vector.load %arg5[%c0_12, %c1024] : memref<512x1152xbf16, #tpu.memory_space<vmem>>, vector<512x128xbf16>
    tpu.vector_store %arg5[%c0_12, %c1024], %27 {strides = array<i32>} : memref<512x1152xbf16, #tpu.memory_space<vmem>>, vector<512x128xbf16>,
    %c0_13 = arith.constant 0 : index
    %c0_14 = arith.constant 0 : index
    %29 = vector.load %arg5[%c0_13, %c0_14] : memref<512x1152xbf16, #tpu.memory_space<vmem>>, vector<512x1152xbf16>
    %c0_15 = arith.constant 0 : index
    %c0_16 = arith.constant 0 : index
    %30 = vector.load %arg1[%c0_15, %c0_16] : memref<1152x128xbf16, #tpu.memory_space<vmem>>, vector<1152x128xbf16>
    %cst = arith.constant dense<0.000000e+00> : vector<512x128xf32>
    %31 = tpu.matmul %29, %30, %cst {dimension_numbers = #tpu.dot_dimension_numbers<[1], [0], [0], [1], [0, 0, 1, 1], [], []>} : vector<512x1152xbf16>, vector<1152x128xbf16>, vector<512x128xf32> -> vector<512x128xf32>
    %c0_17 = arith.constant 0 : index
    %c0_18 = arith.constant 0 : index
    %32 = vector.load %arg2[%c0_17, %c0_18] : memref<1x128xf32, #tpu.memory_space<vmem>>, vector<1x128xf32>
    %c0_19 = arith.constant 0 : index
    %c0_20 = arith.constant 0 : index
    %33 = vector.load %arg3[%c0_19, %c0_20] : memref<1x128xf32, #tpu.memory_space<vmem>>, vector<1x128xf32>
    %cst_21 = arith.constant dense<0.000000e+00> : vector<128xf32>
    %34 = vector.multi_reduction <add>, %31, %cst_21 [0] : vector<512x128xf32> to vector<128xf32>
    %35 = vector.shape_cast %34 : vector<128xf32> to vector<1x128xf32>
    %cst_22 = arith.constant 5.120000e+02 : f32
    %36 = vector.broadcast %cst_22 : f32 to vector<1x128xf32>
    %37 = arith.divf %35, %36 : vector<1x128xf32>
    %38 = vector.broadcast %37 : vector<1x128xf32> to vector<512x128xf32>
    %39 = arith.subf %31, %38 : vector<512x128xf32>
    %40 = arith.mulf %39, %39 : vector<512x128xf32>
    %cst_23 = arith.constant dense<0.000000e+00> : vector<128xf32>
    %41 = vector.multi_reduction <add>, %40, %cst_23 [0] : vector<512x128xf32> to vector<128xf32>
    %42 = vector.shape_cast %41 : vector<128xf32> to vector<1x128xf32>
    %cst_24 = arith.constant 5.120000e+02 : f32
    %43 = vector.broadcast %cst_24 : f32 to vector<1x128xf32>
    %44 = arith.divf %42, %43 : vector<1x128xf32>
    %45 = vector.broadcast %37 : vector<1x128xf32> to vector<512x128xf32>
    %46 = arith.subf %31, %45 : vector<512x128xf32>
    %cst_25 = arith.constant 9.99999974E-6 : f32
    %47 = vector.broadcast %cst_25 : f32 to vector<1x128xf32>
    %48 = arith.addf %44, %47 : vector<1x128xf32>
    %49 = math.rsqrt %48 : vector<1x128xf32>
    %50 = vector.broadcast %49 : vector<1x128xf32> to vector<512x128xf32>
    %51 = arith.mulf %46, %50 : vector<512x128xf32>
    %52 = vector.broadcast %32 : vector<1x128xf32> to vector<512x128xf32>
    %53 = arith.mulf %51, %52 : vector<512x128xf32>
    %54 = vector.broadcast %33 : vector<1x128xf32> to vector<512x128xf32>
    %55 = arith.addf %53, %54 : vector<512x128xf32>
    %56 = vector.shape_cast %55 : vector<512x128xf32> to vector<2x16x16x128xf32>
    %c0_26 = arith.constant 0 : index
    %c0_27 = arith.constant 0 : index
    %c0_28 = arith.constant 0 : index
    %c0_29 = arith.constant 0 : index
    %57 = vector.load %arg4[%c0_26, %c0_27, %c0_28, %c0_29] : memref<2x16x16x128xf32, #tpu.memory_space<vmem>>, vector<2x16x16x128xf32>
    tpu.vector_store %arg4[%c0_26, %c0_27, %c0_28, %c0_29], %56 {strides = array<i32>} : memref<2x16x16x128xf32, #tpu.memory_space<vmem>>, vector<2x16x16x128xf32>,
    return
  }
}

</mosaic_0001>

<llo_original>
// kernel: tpu_custom_call.1
$region0: #{tpu_custom_call.1}
  #allocation0 [shape = 'u32[]', space=smem, size = 0x4, offset = 0x4, fixed_abs, tag = 'smem constant byte address 0x4 - core index']
  #allocation1 [shape = 'u32[144,128]{1,0:T(1,128)}', space=vmem, size = 0x12000, scoped, tag = 'internal scratch']
  #allocation2 [shape = 'bf16[512,1152]{1,0:T(16,128)(2,1)}', space=vmem, size = 0x120000, scoped, tag = 'scratch operand']
  %s0 = inlined_call_operand.vmem [shape: f32[2,18,18,128], index: 0, kind: input, shape index: {}]
  %s1 = inlined_call_operand.vmem [shape: bf16[1152,128], index: 1, kind: input, shape index: {}]
  %s2 = inlined_call_operand.vmem [shape: f32[1,128], index: 2, kind: input, shape index: {}]
  %s3 = inlined_call_operand.vmem [shape: f32[1,128], index: 3, kind: input, shape index: {}]
  %s4 = inlined_call_operand.hbm [shape: f32[2,16,16,128], index: 4, kind: output, shape index: {}]
  %s5 = sld [smem:[#allocation0]]
  $region26: #{tpu_custom_call.1} parent=0
    _
  %s7 = ssub.s32 1, %s5
  %s8 = scalar_select 0, %s7, %s5
  $region1: #{tpu_custom_call.1} parent=0
    #allocation3 [shape = 'u8[262144]{0}', space=vmem, size = 0x40000, scoped, tag = 'output window, operand 0, single buffered']
    #allocation4 [shape = 's32[1]{0}', space=sflag, size = 0x4, scoped, tag = 'scoped memory for tpu_custom_call.1']
    %9 = vsyncpa [#allocation4], 0
    // Predicated region
    $region2: #{tpu_custom_call.1} parent=1 // pred_check
      _
    $region3: #{tpu_custom_call.1} parent=1 // pred_check_branch
      %11 = sbr.rel (0) target = $region5
    $region4: #{tpu_custom_call.1} parent=1 // pred_region
      _
    $region5: #{tpu_custom_call.1} parent=1 // pred_fallthru
      _
    // Predicated region
    $region6: #{tpu_custom_call.1} parent=1 // pred_check
      _
    $region7: #{tpu_custom_call.1} parent=1 // pred_check_branch
      %13 = sbr.rel (0) target = $region9
    $region8: #{tpu_custom_call.1} parent=1 // pred_region
      _
    $region9: #{tpu_custom_call.1} parent=1 // pred_fallthru
      _
    // Predicated region
    $region10: #{tpu_custom_call.1} parent=1 // pred_check
      _
    $region11: #{tpu_custom_call.1} parent=1 // pred_check_branch
      %15 = sbr.rel (0) target = $region13
    $region12: #{tpu_custom_call.1} parent=1 // pred_region
      _
    $region13: #{tpu_custom_call.1} parent=1 // pred_fallthru
      _
    // Predicated region
    $region14: #{tpu_custom_call.1} parent=1 // pred_check
      _
    $region15: #{tpu_custom_call.1} parent=1 // pred_check_branch
      %17 = sbr.rel (0) target = $region17
    $region16: #{tpu_custom_call.1} parent=1 // pred_region
      _
    $region17: #{tpu_custom_call.1} parent=1 // pred_fallthru
      _
    %v19 = vld [vmem:[%s0] sm:$0xff]
    %v20 = vld [vmem:[%s0 + $0x8] sm:$0xff]
    %v21 = vld [vmem:[%s0 + $0x10] sm:$0x3]
    %v22 = vld [vmem:[%s0 + $0x18] sm:$0xff]
    %v23 = vld [vmem:[%s0 + $0x20] sm:$0xff]
    %v24 = vld [vmem:[%s0 + $0x28] sm:$0x3]
    %v25 = vld [vmem:[%s0 + $0x30] sm:$0xff]
    %v26 = vld [vmem:[%s0 + $0x38] sm:$0xff]
    %v27 = vld [vmem:[%s0 + $0x40] sm:$0x3]
    %v28 = vld [vmem:[%s0 + $0x48] sm:$0xff]
    %v29 = vld [vmem:[%s0 + $0x50] sm:$0xff]
    %v30 = vld [vmem:[%s0 + $0x58] sm:$0x3]
    %v31 = vld [vmem:[%s0 + $0x60] sm:$0xff]
    %v32 = vld [vmem:[%s0 + $0x68] sm:$0xff]
    %v33 = vld [vmem:[%s0 + $0x70] sm:$0x3]
    %v34 = vld [vmem:[%s0 + $0x78] sm:$0xff]
    %v35 = vld [vmem:[%s0 + $0x80] sm:$0xff]
    %v36 = vld [vmem:[%s0 + $0x88] sm:$0x3]
    %v37 = vld [vmem:[%s0 + $0x90] sm:$0xff]
    %v38 = vld [vmem:[%s0 + $0x98] sm:$0xff]
    %v39 = vld [vmem:[%s0 + $0xa0] sm:$0x3]
    %v40 = vld [vmem:[%s0 + $0xa8] sm:$0xff]
    %v41 = vld [vmem:[%s0 + $0xb0] sm:$0xff]
    %v42 = vld [vmem:[%s0 + $0xb8] sm:$0x3]
    %v43 = vld [vmem:[%s0 + $0xc0] sm:$0xff]
    %v44 = vld [vmem:[%s0 + $0xc8] sm:$0xff]
    %v45 = vld [vmem:[%s0 + $0xd0] sm:$0x3]
    %v46 = vld [vmem:[%s0 + $0xd8] sm:$0xff]
    %v47 = vld [vmem:[%s0 + $0xe0] sm:$0xff]
    %v48 = vld [vmem:[%s0 + $0xe8] sm:$0x3]
    %v49 = vld [vmem:[%s0 + $0xf0] sm:$0xff]
    %v50 = vld [vmem:[%s0 + $0xf8] sm:$0xff]
    %v51 = vld [vmem:[%s0 + $0x100] sm:$0x3]
    %v52 = vld [vmem:[%s0 + $0x108] sm:$0xff]
    %v53 = vld [vmem:[%s0 + $0x110] sm:$0xff]
    %v54 = vld [vmem:[%s0 + $0x118] sm:$0x3]
    %v55 = vld [vmem:[%s0 + $0x120] sm:$0xff]
    %v56 = vld [vmem:[%s0 + $0x128] sm:$0xff]
    %v57 = vld [vmem:[%s0 + $0x130] sm:$0x3]
    %v58 = vld [vmem:[%s0 + $0x138] sm:$0xff]
    %v59 = vld [vmem:[%s0 + $0x140] sm:$0xff]
    %v60 = vld [vmem:[%s0 + $0x148] sm:$0x3]
    %v61 = vld [vmem:[%s0 + $0x150] sm:$0xff]
    %v62 = vld [vmem:[%s0 + $0x158] sm:$0xff]
    %v63 = vld [vmem:[%s0 + $0x160] sm:$0x3]
    %v64 = vld [vmem:[%s0 + $0x168] sm:$0xff]
    %v65 = vld [vmem:[%s0 + $0x170] sm:$0xff]
    %v66 = vld [vmem:[%s0 + $0x178] sm:$0x3]
    %v67 = vld [vmem:[%s0 + $0x180] sm:$0xff]
    %v68 = vld [vmem:[%s0 + $0x188] sm:$0xff]
    %v69 = vld [vmem:[%s0 + $0x190] sm:$0x3]
    %v70 = vld [vmem:[%s0 + $0x198] sm:$0xff]
    %v71 = vld [vmem:[%s0 + $0x1a0] sm:$0xff]
    %v72 = vld [vmem:[%s0 + $0x1a8] sm:$0x3]
    %v73 = vld [vmem:[%s0 + $0x1b0] sm:$0xff]
    %v74 = vld [vmem:[%s0 + $0x1b8] sm:$0xff]
    %v75 = vld [vmem:[%s0 + $0x1c0] sm:$0x3]
    %v76 = vld [vmem:[%s0 + $0x1c8] sm:$0xff]
    %v77 = vld [vmem:[%s0 + $0x1d0] sm:$0xff]
    %v78 = vld [vmem:[%s0 + $0x1d8] sm:$0x3]
    %v79 = vld [vmem:[%s0 + $0x1e0] sm:$0xff]
    %v80 = vld [vmem:[%s0 + $0x1e8] sm:$0xff]
    %v81 = vld [vmem:[%s0 + $0x1f0] sm:$0x3]
    %v82 = vld [vmem:[%s0 + $0x1f8] sm:$0xff]
    %v83 = vld [vmem:[%s0 + $0x200] sm:$0xff]
    %v84 = vld [vmem:[%s0 + $0x208] sm:$0x3]
    %v85 = vld [vmem:[%s0 + $0x210] sm:$0xff]
    %v86 = vld [vmem:[%s0 + $0x218] sm:$0xff]
    %v87 = vld [vmem:[%s0 + $0x220] sm:$0x3]
    %v88 = vld [vmem:[%s0 + $0x228] sm:$0xff]
    %v89 = vld [vmem:[%s0 + $0x230] sm:$0xff]
    %v90 = vld [vmem:[%s0 + $0x238] sm:$0x3]
    %v91 = vld [vmem:[%s0 + $0x240] sm:$0xff]
    %v92 = vld [vmem:[%s0 + $0x248] sm:$0xff]
    %v93 = vld [vmem:[%s0 + $0x250] sm:$0x3]
    %v94 = vld [vmem:[%s0 + $0x258] sm:$0xff]
    %v95 = vld [vmem:[%s0 + $0x260] sm:$0xff]
    %v96 = vld [vmem:[%s0 + $0x268] sm:$0x3]
    %v97 = vld [vmem:[%s0 + $0x270] sm:$0xff]
    %v98 = vld [vmem:[%s0 + $0x278] sm:$0xff]
    %v99 = vld [vmem:[%s0 + $0x280] sm:$0x3]
    %v100 = vld [vmem:[%s0 + $0x288] sm:$0xff]
    %v101 = vld [vmem:[%s0 + $0x290] sm:$0xff]
    %v102 = vld [vmem:[%s0 + $0x298] sm:$0x3]
    %v103 = vld [vmem:[%s0 + $0x2a0] sm:$0xff]
    %v104 = vld [vmem:[%s0 + $0x2a8] sm:$0xff]
    %v105 = vld [vmem:[%s0 + $0x2b0] sm:$0x3]
    %v106 = vld [vmem:[%s0 + $0x2b8] sm:$0xff]
    %v107 = vld [vmem:[%s0 + $0x2c0] sm:$0xff]
    %v108 = vld [vmem:[%s0 + $0x2c8] sm:$0x3]
    %v109 = vld [vmem:[%s0 + $0x2d0] sm:$0xff]
    %v110 = vld [vmem:[%s0 + $0x2d8] sm:$0xff]
    %v111 = vld [vmem:[%s0 + $0x2e0] sm:$0x3]
    %v112 = vld [vmem:[%s0 + $0x2e8] sm:$0xff]
    %v113 = vld [vmem:[%s0 + $0x2f0] sm:$0xff]
    %v114 = vld [vmem:[%s0 + $0x2f8] sm:$0x3]
    %v115 = vld [vmem:[%s0 + $0x300] sm:$0xff]
    %v116 = vld [vmem:[%s0 + $0x308] sm:$0xff]
    %v117 = vld [vmem:[%s0 + $0x310] sm:$0x3]
    %v118 = vld [vmem:[%s0 + $0x318] sm:$0xff]
    %v119 = vld [vmem:[%s0 + $0x320] sm:$0xff]
    %v120 = vld [vmem:[%s0 + $0x328] sm:$0x3]
    %v121 = vld [vmem:[%s0 + $0x330] sm:$0xff]
    %v122 = vld [vmem:[%s0 + $0x338] sm:$0xff]
    %v123 = vld [vmem:[%s0 + $0x340] sm:$0x3]
    %v124 = vld [vmem:[%s0 + $0x348] sm:$0xff]
    %v125 = vld [vmem:[%s0 + $0x350] sm:$0xff]
    %v126 = vld [vmem:[%s0 + $0x358] sm:$0x3]
    %v127 = vpack.c.bf16 %v20, %v19
    %v128 = vpack.c.bf16 %v21, %v21
    %v129 = vpack.c.bf16 %v23, %v22
    %v130 = vpack.c.bf16 %v24, %v24
    %v131 = vpack.c.bf16 %v26, %v25
    %v132 = vpack.c.bf16 %v27, %v27
    %v133 = vpack.c.bf16 %v29, %v28
    %v134 = vpack.c.bf16 %v30, %v30
    %v135 = vpack.c.bf16 %v32, %v31
    %v136 = vpack.c.bf16 %v33, %v33
    %v137 = vpack.c.bf16 %v35, %v34
    %v138 = vpack.c.bf16 %v36, %v36
    %v139 = vpack.c.bf16 %v38, %v37
    %v140 = vpack.c.bf16 %v39, %v39
    %v141 = vpack.c.bf16 %v41, %v40
    %v142 = vpack.c.bf16 %v42, %v42
    %v143 = vpack.c.bf16 %v44, %v43
    %v144 = vpack.c.bf16 %v45, %v45
    %v145 = vpack.c.bf16 %v47, %v46
    %v146 = vpack.c.bf16 %v48, %v48
    %v147 = vpack.c.bf16 %v50, %v49
    %v148 = vpack.c.bf16 %v51, %v51
    %v149 = vpack.c.bf16 %v53, %v52
    %v150 = vpack.c.bf16 %v54, %v54
    %v151 = vpack.c.bf16 %v56, %v55
    %v152 = vpack.c.bf16 %v57, %v57
    %v153 = vpack.c.bf16 %v59, %v58
    %v154 = vpack.c.bf16 %v60, %v60
    %v155 = vpack.c.bf16 %v62, %v61
    %v156 = vpack.c.bf16 %v63, %v63
    %v157 = vpack.c.bf16 %v65, %v64
    %v158 = vpack.c.bf16 %v66, %v66
    %v159 = vpack.c.bf16 %v68, %v67
    %v160 = vpack.c.bf16 %v69, %v69
    %v161 = vpack.c.bf16 %v71, %v70
    %v162 = vpack.c.bf16 %v72, %v72
    %v163 = vpack.c.bf16 %v74, %v73
    %v164 = vpack.c.bf16 %v75, %v75
    %v165 = vpack.c.bf16 %v77, %v76
    %v166 = vpack.c.bf16 %v78, %v78
    %v167 = vpack.c.bf16 %v80, %v79
    %v168 = vpack.c.bf16 %v81, %v81
    %v169 = vpack.c.bf16 %v83, %v82
    %v170 = vpack.c.bf16 %v84, %v84
    %v171 = vpack.c.bf16 %v86, %v85
    %v172 = vpack.c.bf16 %v87, %v87
    %v173 = vpack.c.bf16 %v89, %v88
    %v174 = vpack.c.bf16 %v90, %v90
    %v175 = vpack.c.bf16 %v92, %v91
    %v176 = vpack.c.bf16 %v93, %v93
    %v177 = vpack.c.bf16 %v95, %v94
    %v178 = vpack.c.bf16 %v96, %v96
    %v179 = vpack.c.bf16 %v98, %v97
    %v180 = vpack.c.bf16 %v99, %v99
    %v181 = vpack.c.bf16 %v101, %v100
    %v182 = vpack.c.bf16 %v102, %v102
    %v183 = vpack.c.bf16 %v104, %v103
    %v184 = vpack.c.bf16 %v105, %v105
    %v185 = vpack.c.bf16 %v107, %v106
    %v186 = vpack.c.bf16 %v108, %v108
    %v187 = vpack.c.bf16 %v110, %v109
    %v188 = vpack.c.bf16 %v111, %v111
    %v189 = vpack.c.bf16 %v113, %v112
    %v190 = vpack.c.bf16 %v114, %v114
    %v191 = vpack.c.bf16 %v116, %v115
    %v192 = vpack.c.bf16 %v117, %v117
    %v193 = vpack.c.bf16 %v119, %v118
    %v194 = vpack.c.bf16 %v120, %v120
    %v195 = vpack.c.bf16 %v122, %v121
    %v196 = vpack.c.bf16 %v123, %v123
    %v197 = vpack.c.bf16 %v125, %v124
    %v198 = vpack.c.bf16 %v126, %v126
    %199 = vst [vmem:[#allocation2] sm:$0xff] %v127
    %200 = vst [vmem:[#allocation2 + $0x48] sm:$0xff] %v129
    %201 = vst [vmem:[#allocation2 + $0x90] sm:$0xff] %v131
    %202 = vst [vmem:[#allocation2 + $0xd8] sm:$0xff] %v133
    %203 = vst [vmem:[#allocation2 + $0x120] sm:$0xff] %v135
    %204 = vst [vmem:[#allocation2 + $0x168] sm:$0xff] %v137
    %205 = vst [vmem:[#allocation2 + $0x1b0] sm:$0xff] %v139
    %206 = vst [vmem:[#allocation2 + $0x1f8] sm:$0xff] %v141
    %207 = vst [vmem:[#allocation2 + $0x240] sm:$0xff] %v143
    %208 = vst [vmem:[#allocation2 + $0x288] sm:$0xff] %v145
    %209 = vst [vmem:[#allocation2 + $0x2d0] sm:$0xff] %v147
    %210 = vst [vmem:[#allocation2 + $0x318] sm:$0xff] %v149
    %211 = vst [vmem:[#allocation2 + $0x360] sm:$0xff] %v151
    %212 = vst [vmem:[#allocation2 + $0x3a8] sm:$0xff] %v153
    %213 = vst [vmem:[#allocation2 + $0x3f0] sm:$0xff] %v155
    %214 = vst [vmem:[#allocation2 + $0x438] sm:$0xff] %v157
    %215 = vst [vmem:[#allocation2 + $0x480] sm:$0xff] %v163
    %216 = vst [vmem:[#allocation2 + $0x4c8] sm:$0xff] %v165
    %217 = vst [vmem:[#allocation2 + $0x510] sm:$0xff] %v167
    %218 = vst [vmem:[#allocation2 + $0x558] sm:$0xff] %v169
    %219 = vst [vmem:[#allocation2 + $0x5a0] sm:$0xff] %v171
    %220 = vst [vmem:[#allocation2 + $0x5e8] sm:$0xff] %v173
    %221 = vst [vmem:[#allocation2 + $0x630] sm:$0xff] %v175
    %222 = vst [vmem:[#allocation2 + $0x678] sm:$0xff] %v177
    %223 = vst [vmem:[#allocation2 + $0x6c0] sm:$0xff] %v179
    %224 = vst [vmem:[#allocation2 + $0x708] sm:$0xff] %v181
    %225 = vst [vmem:[#allocation2 + $0x750] sm:$0xff] %v183
    %226 = vst [vmem:[#allocation2 + $0x798] sm:$0xff] %v185
    %227 = vst [vmem:[#allocation2 + $0x7e0] sm:$0xff] %v187
    %228 = vst [vmem:[#allocation2 + $0x828] sm:$0xff] %v189
    %229 = vst [vmem:[#allocation2 + $0x870] sm:$0xff] %v191
    %230 = vst [vmem:[#allocation2 + $0x8b8] sm:$0xff] %v193
    %vm231 = vsmask.f32 7424
    %v233 = vshrl.u32 %v127, 16
    %v235 = vshll.u32 %v127, 16
    %v237 = vrot.slane %v235, 1
    %v238 = vor.u32 %v233, %v237
    %v240 = vshll.u32 %v128, 16
    %v242 = vrot.slane %v240, 1
    %v243 = vsel %vm231, %v238, %v242
    %v245 = vshrl.u32 %v129, 16
    %v247 = vshll.u32 %v129, 16
    %v249 = vrot.slane %v247, 1
    %v250 = vor.u32 %v245, %v249
    %v252 = vshll.u32 %v130, 16
    %v254 = vrot.slane %v252, 1
    %v255 = vsel %vm231, %v250, %v254
    %v257 = vshrl.u32 %v131, 16
    %v259 = vshll.u32 %v131, 16
    %v261 = vrot.slane %v259, 1
    %v262 = vor.u32 %v257, %v261
    %v264 = vshll.u32 %v132, 16
    %v266 = vrot.slane %v264, 1
    %v267 = vsel %vm231, %v262, %v266
    %v269 = vshrl.u32 %v133, 16
    %v271 = vshll.u32 %v133, 16
    %v273 = vrot.slane %v271, 1
    %v274 = vor.u32 %v269, %v273
    %v276 = vshll.u32 %v134, 16
    %v278 = vrot.slane %v276, 1
    %v279 = vsel %vm231, %v274, %v278
    %v281 = vshrl.u32 %v135, 16
    %v283 = vshll.u32 %v135, 16
    %v285 = vrot.slane %v283, 1
    %v286 = vor.u32 %v281, %v285
    %v288 = vshll.u32 %v136, 16
    %v290 = vrot.slane %v288, 1
    %v291 = vsel %vm231, %v286, %v290
    %v293 = vshrl.u32 %v137, 16
    %v295 = vshll.u32 %v137, 16
    %v297 = vrot.slane %v295, 1
    %v298 = vor.u32 %v293, %v297
    %v300 = vshll.u32 %v138, 16
    %v302 = vrot.slane %v300, 1
    %v303 = vsel %vm231, %v298, %v302
    %v305 = vshrl.u32 %v139, 16
    %v307 = vshll.u32 %v139, 16
    %v309 = vrot.slane %v307, 1
    %v310 = vor.u32 %v305, %v309
    %v312 = vshll.u32 %v140, 16
    %v314 = vrot.slane %v312, 1
    %v315 = vsel %vm231, %v310, %v314
    %v317 = vshrl.u32 %v141, 16
    %v319 = vshll.u32 %v141, 16
    %v321 = vrot.slane %v319, 1
    %v322 = vor.u32 %v317, %v321
    %v324 = vshll.u32 %v142, 16
    %v326 = vrot.slane %v324, 1
    %v327 = vsel %vm231, %v322, %v326
    %v329 = vshrl.u32 %v143, 16
    %v331 = vshll.u32 %v143, 16
    %v333 = vrot.slane %v331, 1
    %v334 = vor.u32 %v329, %v333
    %v336 = vshll.u32 %v144, 16
    %v338 = vrot.slane %v336, 1
    %v339 = vsel %vm231, %v334, %v338
    %v341 = vshrl.u32 %v145, 16
    %v343 = vshll.u32 %v145, 16
    %v345 = vrot.slane %v343, 1
    %v346 = vor.u32 %v341, %v345
    %v348 = vshll.u32 %v146, 16
    %v350 = vrot.slane %v348, 1
    %v351 = vsel %vm231, %v346, %v350
    %v353 = vshrl.u32 %v147, 16
    %v355 = vshll.u32 %v147, 16
    %v357 = vrot.slane %v355, 1
    %v358 = vor.u32 %v353, %v357
    %v360 = vshll.u32 %v148, 16
    %v362 = vrot.slane %v360, 1
    %v363 = vsel %vm231, %v358, %v362
    %v365 = vshrl.u32 %v149, 16
    %v367 = vshll.u32 %v149, 16
    %v369 = vrot.slane %v367, 1
    %v370 = vor.u32 %v365, %v369
    %v372 = vshll.u32 %v150, 16
    %v374 = vrot.slane %v372, 1
    %v375 = vsel %vm231, %v370, %v374
    %v377 = vshrl.u32 %v151, 16
    %v379 = vshll.u32 %v151, 16
    %v381 = vrot.slane %v379, 1
    %v382 = vor.u32 %v377, %v381
    %v384 = vshll.u32 %v152, 16
    %v386 = vrot.slane %v384, 1
    %v387 = vsel %vm231, %v382, %v386
    %v389 = vshrl.u32 %v153, 16
    %v391 = vshll.u32 %v153, 16
    %v393 = vrot.slane %v391, 1
    %v394 = vor.u32 %v389, %v393
    %v396 = vshll.u32 %v154, 16
    %v398 = vrot.slane %v396, 1
    %v399 = vsel %vm231, %v394, %v398
    %v401 = vshrl.u32 %v155, 16
    %v403 = vshll.u32 %v155, 16
    %v405 = vrot.slane %v403, 1
    %v406 = vor.u32 %v401, %v405
    %v408 = vshll.u32 %v156, 16
    %v410 = vrot.slane %v408, 1
    %v411 = vsel %vm231, %v406, %v410
    %v413 = vshrl.u32 %v157, 16
    %v415 = vshll.u32 %v157, 16
    %v417 = vrot.slane %v415, 1
    %v418 = vor.u32 %v413, %v417
    %v420 = vshll.u32 %v158, 16
    %v422 = vrot.slane %v420, 1
    %v423 = vsel %vm231, %v418, %v422
    %v425 = vshrl.u32 %v163, 16
    %v427 = vshll.u32 %v163, 16
    %v429 = vrot.slane %v427, 1
    %v430 = vor.u32 %v425, %v429
    %v432 = vshll.u32 %v164, 16
    %v434 = vrot.slane %v432, 1
    %v435 = vsel %vm231, %v430, %v434
    %v437 = vshrl.u32 %v165, 16
    %v439 = vshll.u32 %v165, 16
    %v441 = vrot.slane %v439, 1
    %v442 = vor.u32 %v437, %v441
    %v444 = vshll.u32 %v166, 16
    %v446 = vrot.slane %v444, 1
    %v447 = vsel %vm231, %v442, %v446
    %v449 = vshrl.u32 %v167, 16
    %v451 = vshll.u32 %v167, 16
    %v453 = vrot.slane %v451, 1
    %v454 = vor.u32 %v449, %v453
    %v456 = vshll.u32 %v168, 16
    %v458 = vrot.slane %v456, 1
    %v459 = vsel %vm231, %v454, %v458
    %v461 = vshrl.u32 %v169, 16
    %v463 = vshll.u32 %v169, 16
    %v465 = vrot.slane %v463, 1
    %v466 = vor.u32 %v461, %v465
    %v468 = vshll.u32 %v170, 16
    %v470 = vrot.slane %v468, 1
    %v471 = vsel %vm231, %v466, %v470
    %v473 = vshrl.u32 %v171, 16
    %v475 = vshll.u32 %v171, 16
    %v477 = vrot.slane %v475, 1
    %v478 = vor.u32 %v473, %v477
    %v480 = vshll.u32 %v172, 16
    %v482 = vrot.slane %v480, 1
    %v483 = vsel %vm231, %v478, %v482
    %v485 = vshrl.u32 %v173, 16
    %v487 = vshll.u32 %v173, 16
    %v489 = vrot.slane %v487, 1
    %v490 = vor.u32 %v485, %v489
    %v492 = vshll.u32 %v174, 16
    %v494 = vrot.slane %v492, 1
    %v495 = vsel %vm231, %v490, %v494
    %v497 = vshrl.u32 %v175, 16
    %v499 = vshll.u32 %v175, 16
    %v501 = vrot.slane %v499, 1
    %v502 = vor.u32 %v497, %v501
    %v504 = vshll.u32 %v176, 16
    %v506 = vrot.slane %v504, 1
    %v507 = vsel %vm231, %v502, %v506
    %v509 = vshrl.u32 %v177, 16
    %v511 = vshll.u32 %v177, 16
    %v513 = vrot.slane %v511, 1
    %v514 = vor.u32 %v509, %v513
    %v516 = vshll.u32 %v178, 16
    %v518 = vrot.slane %v516, 1
    %v519 = vsel %vm231, %v514, %v518
    %v521 = vshrl.u32 %v179, 16
    %v523 = vshll.u32 %v179, 16
    %v525 = vrot.slane %v523, 1
    %v526 = vor.u32 %v521, %v525
    %v528 = vshll.u32 %v180, 16
    %v530 = vrot.slane %v528, 1
    %v531 = vsel %vm231, %v526, %v530
    %v533 = vshrl.u32 %v181, 16
    %v535 = vshll.u32 %v181, 16
    %v537 = vrot.slane %v535, 1
    %v538 = vor.u32 %v533, %v537
    %v540 = vshll.u32 %v182, 16
    %v542 = vrot.slane %v540, 1
    %v543 = vsel %vm231, %v538, %v542
    %v545 = vshrl.u32 %v183, 16
    %v547 = vshll.u32 %v183, 16
    %v549 = vrot.slane %v547, 1
    %v550 = vor.u32 %v545, %v549
    %v552 = vshll.u32 %v184, 16
    %v554 = vrot.slane %v552, 1
    %v555 = vsel %vm231, %v550, %v554
    %v557 = vshrl.u32 %v185, 16
    %v559 = vshll.u32 %v185, 16
    %v561 = vrot.slane %v559, 1
    %v562 = vor.u32 %v557, %v561
    %v564 = vshll.u32 %v186, 16
    %v566 = vrot.slane %v564, 1
    %v567 = vsel %vm231, %v562, %v566
    %v569 = vshrl.u32 %v187, 16
    %v571 = vshll.u32 %v187, 16
    %v573 = vrot.slane %v571, 1
    %v574 = vor.u32 %v569, %v573
    %v576 = vshll.u32 %v188, 16
    %v578 = vrot.slane %v576, 1
    %v579 = vsel %vm231, %v574, %v578
    %v581 = vshrl.u32 %v189, 16
    %v583 = vshll.u32 %v189, 16
    %v585 = vrot.slane %v583, 1
    %v586 = vor.u32 %v581, %v585
    %v588 = vshll.u32 %v190, 16
    %v590 = vrot.slane %v588, 1
    %v591 = vsel %vm231, %v586, %v590
    %v593 = vshrl.u32 %v191, 16
    %v595 = vshll.u32 %v191, 16
    %v597 = vrot.slane %v595, 1
    %v598 = vor.u32 %v593, %v597
    %v600 = vshll.u32 %v192, 16
    %v602 = vrot.slane %v600, 1
    %v603 = vsel %vm231, %v598, %v602
    %v605 = vshrl.u32 %v193, 16
    %v607 = vshll.u32 %v193, 16
    %v609 = vrot.slane %v607, 1
    %v610 = vor.u32 %v605, %v609
    %v612 = vshll.u32 %v194, 16
    %v614 = vrot.slane %v612, 1
    %v615 = vsel %vm231, %v610, %v614
    %648 = vst [vmem:[#allocation2 + $0x8] sm:$0xff] %v243
    %649 = vst [vmem:[#allocation2 + $0x50] sm:$0xff] %v255
    %650 = vst [vmem:[#allocation2 + $0x98] sm:$0xff] %v267
    %651 = vst [vmem:[#allocation2 + $0xe0] sm:$0xff] %v279
    %652 = vst [vmem:[#allocation2 + $0x128] sm:$0xff] %v291
    %653 = vst [vmem:[#allocation2 + $0x170] sm:$0xff] %v303
    %654 = vst [vmem:[#allocation2 + $0x1b8] sm:$0xff] %v315
    %655 = vst [vmem:[#allocation2 + $0x200] sm:$0xff] %v327
    %656 = vst [vmem:[#allocation2 + $0x248] sm:$0xff] %v339
    %657 = vst [vmem:[#allocation2 + $0x290] sm:$0xff] %v351
    %658 = vst [vmem:[#allocation2 + $0x2d8] sm:$0xff] %v363
    %659 = vst [vmem:[#allocation2 + $0x320] sm:$0xff] %v375
    %660 = vst [vmem:[#allocation2 + $0x368] sm:$0xff] %v387
    %661 = vst [vmem:[#allocation2 + $0x3b0] sm:$0xff] %v399
    %662 = vst [vmem:[#allocation2 + $0x3f8] sm:$0xff] %v411
    %663 = vst [vmem:[#allocation2 + $0x440] sm:$0xff] %v423
    %664 = vst [vmem:[#allocation2 + $0x488] sm:$0xff] %v435
    %665 = vst [vmem:[#allocation2 + $0x4d0] sm:$0xff] %v447
    %666 = vst [vmem:[#allocation2 + $0x518] sm:$0xff] %v459
    %667 = vst [vmem:[#allocation2 + $0x560] sm:$0xff] %v471
    %668 = vst [vmem:[#allocation2 + $0x5a8] sm:$0xff] %v483
    %669 = vst [vmem:[#allocation2 + $0x5f0] sm:$0xff] %v495
    %670 = vst [vmem:[#allocation2 + $0x638] sm:$0xff] %v507
    %671 = vst [vmem:[#allocation2 + $0x680] sm:$0xff] %v519
    %672 = vst [vmem:[#allocation2 + $0x6c8] sm:$0xff] %v531
    %673 = vst [vmem:[#allocation2 + $0x710] sm:$0xff] %v543
    %674 = vst [vmem:[#allocation2 + $0x758] sm:$0xff] %v555
    %675 = vst [vmem:[#allocation2 + $0x7a0] sm:$0xff] %v567
    %676 = vst [vmem:[#allocation2 + $0x7e8] sm:$0xff] %v579
    %677 = vst [vmem:[#allocation2 + $0x830] sm:$0xff] %v591
    %678 = vst [vmem:[#allocation2 + $0x878] sm:$0xff] %v603
    %679 = vst [vmem:[#allocation2 + $0x8c0] sm:$0xff] %v615
    %vm744 = vcmask 1046528
    %v745 = vrot.slane %v127, 1
    %v746 = vrot.slane %v128, 1
    %v747 = vsel %vm744, %v745, %v746
    %v748 = vrot.slane %v129, 1
    %v749 = vrot.slane %v130, 1
    %v750 = vsel %vm744, %v748, %v749
    %v751 = vrot.slane %v131, 1
    %v752 = vrot.slane %v132, 1
    %v753 = vsel %vm744, %v751, %v752
    %v754 = vrot.slane %v133, 1
    %v755 = vrot.slane %v134, 1
    %v756 = vsel %vm744, %v754, %v755
    %v757 = vrot.slane %v135, 1
    %v758 = vrot.slane %v136, 1
    %v759 = vsel %vm744, %v757, %v758
    %v760 = vrot.slane %v137, 1
    %v761 = vrot.slane %v138, 1
    %v762 = vsel %vm744, %v760, %v761
    %v763 = vrot.slane %v139, 1
    %v764 = vrot.slane %v140, 1
    %v765 = vsel %vm744, %v763, %v764
    %v766 = vrot.slane %v141, 1
    %v767 = vrot.slane %v142, 1
    %v768 = vsel %vm744, %v766, %v767
    %v769 = vrot.slane %v143, 1
    %v770 = vrot.slane %v144, 1
    %v771 = vsel %vm744, %v769, %v770
    %v772 = vrot.slane %v145, 1
    %v773 = vrot.slane %v146, 1
    %v774 = vsel %vm744, %v772, %v773
    %v775 = vrot.slane %v147, 1
    %v776 = vrot.slane %v148, 1
    %v777 = vsel %vm744, %v775, %v776
    %v778 = vrot.slane %v149, 1
    %v779 = vrot.slane %v150, 1
    %v780 = vsel %vm744, %v778, %v779
    %v781 = vrot.slane %v151, 1
    %v782 = vrot.slane %v152, 1
    %v783 = vsel %vm744, %v781, %v782
    %v784 = vrot.slane %v153, 1
    %v785 = vrot.slane %v154, 1
    %v786 = vsel %vm744, %v784, %v785
    %v787 = vrot.slane %v155, 1
    %v788 = vrot.slane %v156, 1
    %v789 = vsel %vm744, %v787, %v788
    %v790 = vrot.slane %v157, 1
    %v791 = vrot.slane %v158, 1
    %v792 = vsel %vm744, %v790, %v791
    %v793 = vrot.slane %v163, 1
    %v794 = vrot.slane %v164, 1
    %v795 = vsel %vm744, %v793, %v794
    %v796 = vrot.slane %v165, 1
    %v797 = vrot.slane %v166, 1
    %v798 = vsel %vm744, %v796, %v797
    %v799 = vrot.slane %v167, 1
    %v800 = vrot.slane %v168, 1
    %v801 = vsel %vm744, %v799, %v800
    %v802 = vrot.slane %v169, 1
    %v803 = vrot.slane %v170, 1
    %v804 = vsel %vm744, %v802, %v803
    %v805 = vrot.slane %v171, 1
    %v806 = vrot.slane %v172, 1
    %v807 = vsel %vm744, %v805, %v806
    %v808 = vrot.slane %v173, 1
    %v809 = vrot.slane %v174, 1
    %v810 = vsel %vm744, %v808, %v809
    %v811 = vrot.slane %v175, 1
    %v812 = vrot.slane %v176, 1
    %v813 = vsel %vm744, %v811, %v812
    %v814 = vrot.slane %v177, 1
    %v815 = vrot.slane %v178, 1
    %v816 = vsel %vm744, %v814, %v815
    %v817 = vrot.slane %v179, 1
    %v818 = vrot.slane %v180, 1
    %v819 = vsel %vm744, %v817, %v818
    %v820 = vrot.slane %v181, 1
    %v821 = vrot.slane %v182, 1
    %v822 = vsel %vm744, %v820, %v821
    %v823 = vrot.slane %v183, 1
    %v824 = vrot.slane %v184, 1
    %v825 = vsel %vm744, %v823, %v824
    %v826 = vrot.slane %v185, 1
    %v827 = vrot.slane %v186, 1
    %v828 = vsel %vm744, %v826, %v827
    %v829 = vrot.slane %v187, 1
    %v830 = vrot.slane %v188, 1
    %v831 = vsel %vm744, %v829, %v830
    %v832 = vrot.slane %v189, 1
    %v833 = vrot.slane %v190, 1
    %v834 = vsel %vm744, %v832, %v833
    %v835 = vrot.slane %v191, 1
    %v836 = vrot.slane %v192, 1
    %v837 = vsel %vm744, %v835, %v836
    %v838 = vrot.slane %v193, 1
    %v839 = vrot.slane %v194, 1
    %v840 = vsel %vm744, %v838, %v839
    %873 = vst [vmem:[#allocation2 + $0x10] sm:$0xff] %v747
    %874 = vst [vmem:[#allocation2 + $0x58] sm:$0xff] %v750
    %875 = vst [vmem:[#allocation2 + $0xa0] sm:$0xff] %v753
    %876 = vst [vmem:[#allocation2 + $0xe8] sm:$0xff] %v756
    %877 = vst [vmem:[#allocation2 + $0x130] sm:$0xff] %v759
    %878 = vst [vmem:[#allocation2 + $0x178] sm:$0xff] %v762
    %879 = vst [vmem:[#allocation2 + $0x1c0] sm:$0xff] %v765
    %880 = vst [vmem:[#allocation2 + $0x208] sm:$0xff] %v768
    %881 = vst [vmem:[#allocation2 + $0x250] sm:$0xff] %v771
    %882 = vst [vmem:[#allocation2 + $0x298] sm:$0xff] %v774
    %883 = vst [vmem:[#allocation2 + $0x2e0] sm:$0xff] %v777
    %884 = vst [vmem:[#allocation2 + $0x328] sm:$0xff] %v780
    %885 = vst [vmem:[#allocation2 + $0x370] sm:$0xff] %v783
    %886 = vst [vmem:[#allocation2 + $0x3b8] sm:$0xff] %v786
    %887 = vst [vmem:[#allocation2 + $0x400] sm:$0xff] %v789
    %888 = vst [vmem:[#allocation2 + $0x448] sm:$0xff] %v792
    %889 = vst [vmem:[#allocation2 + $0x490] sm:$0xff] %v795
    %890 = vst [vmem:[#allocation2 + $0x4d8] sm:$0xff] %v798
    %891 = vst [vmem:[#allocation2 + $0x520] sm:$0xff] %v801
    %892 = vst [vmem:[#allocation2 + $0x568] sm:$0xff] %v804
    %893 = vst [vmem:[#allocation2 + $0x5b0] sm:$0xff] %v807
    %894 = vst [vmem:[#allocation2 + $0x5f8] sm:$0xff] %v810
    %895 = vst [vmem:[#allocation2 + $0x640] sm:$0xff] %v813
    %896 = vst [vmem:[#allocation2 + $0x688] sm:$0xff] %v816
    %897 = vst [vmem:[#allocation2 + $0x6d0] sm:$0xff] %v819
    %898 = vst [vmem:[#allocation2 + $0x718] sm:$0xff] %v822
    %899 = vst [vmem:[#allocation2 + $0x760] sm:$0xff] %v825
    %900 = vst [vmem:[#allocation2 + $0x7a8] sm:$0xff] %v828
    %901 = vst [vmem:[#allocation2 + $0x7f0] sm:$0xff] %v831
    %902 = vst [vmem:[#allocation2 + $0x838] sm:$0xff] %v834
    %903 = vst [vmem:[#allocation2 + $0x880] sm:$0xff] %v837
    %904 = vst [vmem:[#allocation2 + $0x8c8] sm:$0xff] %v840
    %905 = vst [vmem:[#allocation2 + $0x18] sm:$0xff] %v129
    %906 = vst [vmem:[#allocation2 + $0x60] sm:$0xff] %v131
    %907 = vst [vmem:[#allocation2 + $0xa8] sm:$0xff] %v133
    %908 = vst [vmem:[#allocation2 + $0xf0] sm:$0xff] %v135
    %909 = vst [vmem:[#allocation2 + $0x138] sm:$0xff] %v137
    %910 = vst [vmem:[#allocation2 + $0x180] sm:$0xff] %v139
    %911 = vst [vmem:[#allocation2 + $0x1c8] sm:$0xff] %v141
    %912 = vst [vmem:[#allocation2 + $0x210] sm:$0xff] %v143
    %913 = vst [vmem:[#allocation2 + $0x258] sm:$0xff] %v145
    %914 = vst [vmem:[#allocation2 + $0x2a0] sm:$0xff] %v147
    %915 = vst [vmem:[#allocation2 + $0x2e8] sm:$0xff] %v149
    %916 = vst [vmem:[#allocation2 + $0x330] sm:$0xff] %v151
    %917 = vst [vmem:[#allocation2 + $0x378] sm:$0xff] %v153
    %918 = vst [vmem:[#allocation2 + $0x3c0] sm:$0xff] %v155
    %919 = vst [vmem:[#allocation2 + $0x408] sm:$0xff] %v157
    %920 = vst [vmem:[#allocation2 + $0x450] sm:$0xff] %v159
    %921 = vst [vmem:[#allocation2 + $0x498] sm:$0xff] %v165
    %922 = vst [vmem:[#allocation2 + $0x4e0] sm:$0xff] %v167
    %923 = vst [vmem:[#allocation2 + $0x528] sm:$0xff] %v169
    %924 = vst [vmem:[#allocation2 + $0x570] sm:$0xff] %v171
    %925 = vst [vmem:[#allocation2 + $0x5b8] sm:$0xff] %v173
    %926 = vst [vmem:[#allocation2 + $0x600] sm:$0xff] %v175
    %927 = vst [vmem:[#allocation2 + $0x648] sm:$0xff] %v177
    %928 = vst [vmem:[#allocation2 + $0x690] sm:$0xff] %v179
    %929 = vst [vmem:[#allocation2 + $0x6d8] sm:$0xff] %v181
    %930 = vst [vmem:[#allocation2 + $0x720] sm:$0xff] %v183
    %931 = vst [vmem:[#allocation2 + $0x768] sm:$0xff] %v185
    %932 = vst [vmem:[#allocation2 + $0x7b0] sm:$0xff] %v187
    %933 = vst [vmem:[#allocation2 + $0x7f8] sm:$0xff] %v189
    %934 = vst [vmem:[#allocation2 + $0x840] sm:$0xff] %v191
    %935 = vst [vmem:[#allocation2 + $0x888] sm:$0xff] %v193
    %936 = vst [vmem:[#allocation2 + $0x8d0] sm:$0xff] %v195
    %v938 = vshrl.u32 %v159, 16
    %v940 = vshll.u32 %v159, 16
    %v942 = vrot.slane %v940, 1
    %v943 = vor.u32 %v938, %v942
    %v945 = vshll.u32 %v160, 16
    %v947 = vrot.slane %v945, 1
    %v948 = vsel %vm231, %v943, %v947
    %v950 = vshrl.u32 %v195, 16
    %v952 = vshll.u32 %v195, 16
    %v954 = vrot.slane %v952, 1
    %v955 = vor.u32 %v950, %v954
    %v957 = vshll.u32 %v196, 16
    %v959 = vrot.slane %v957, 1
    %v960 = vsel %vm231, %v955, %v959
    %963 = vst [vmem:[#allocation2 + $0x20] sm:$0xff] %v255
    %964 = vst [vmem:[#allocation2 + $0x68] sm:$0xff] %v267
    %965 = vst [vmem:[#allocation2 + $0xb0] sm:$0xff] %v279
    %966 = vst [vmem:[#allocation2 + $0xf8] sm:$0xff] %v291
    %967 = vst [vmem:[#allocation2 + $0x140] sm:$0xff] %v303
    %968 = vst [vmem:[#allocation2 + $0x188] sm:$0xff] %v315
    %969 = vst [vmem:[#allocation2 + $0x1d0] sm:$0xff] %v327
    %970 = vst [vmem:[#allocation2 + $0x218] sm:$0xff] %v339
    %971 = vst [vmem:[#allocation2 + $0x260] sm:$0xff] %v351
    %972 = vst [vmem:[#allocation2 + $0x2a8] sm:$0xff] %v363
    %973 = vst [vmem:[#allocation2 + $0x2f0] sm:$0xff] %v375
    %974 = vst [vmem:[#allocation2 + $0x338] sm:$0xff] %v387
    %975 = vst [vmem:[#allocation2 + $0x380] sm:$0xff] %v399
    %976 = vst [vmem:[#allocation2 + $0x3c8] sm:$0xff] %v411
    %977 = vst [vmem:[#allocation2 + $0x410] sm:$0xff] %v423
    %978 = vst [vmem:[#allocation2 + $0x458] sm:$0xff] %v948
    %979 = vst [vmem:[#allocation2 + $0x4a0] sm:$0xff] %v447
    %980 = vst [vmem:[#allocation2 + $0x4e8] sm:$0xff] %v459
    %981 = vst [vmem:[#allocation2 + $0x530] sm:$0xff] %v471
    %982 = vst [vmem:[#allocation2 + $0x578] sm:$0xff] %v483
    %983 = vst [vmem:[#allocation2 + $0x5c0] sm:$0xff] %v495
    %984 = vst [vmem:[#allocation2 + $0x608] sm:$0xff] %v507
    %985 = vst [vmem:[#allocation2 + $0x650] sm:$0xff] %v519
    %986 = vst [vmem:[#allocation2 + $0x698] sm:$0xff] %v531
    %987 = vst [vmem:[#allocation2 + $0x6e0] sm:$0xff] %v543
    %988 = vst [vmem:[#allocation2 + $0x728] sm:$0xff] %v555
    %989 = vst [vmem:[#allocation2 + $0x770] sm:$0xff] %v567
    %990 = vst [vmem:[#allocation2 + $0x7b8] sm:$0xff] %v579
    %991 = vst [vmem:[#allocation2 + $0x800] sm:$0xff] %v591
    %992 = vst [vmem:[#allocation2 + $0x848] sm:$0xff] %v603
    %993 = vst [vmem:[#allocation2 + $0x890] sm:$0xff] %v615
    %994 = vst [vmem:[#allocation2 + $0x8d8] sm:$0xff] %v960
    %v999 = vrot.slane %v159, 1
    %v1000 = vrot.slane %v160, 1
    %v1001 = vsel %vm744, %v999, %v1000
    %v1002 = vrot.slane %v195, 1
    %v1003 = vrot.slane %v196, 1
    %v1004 = vsel %vm744, %v1002, %v1003
    %1007 = vst [vmem:[#allocation2 + $0x28] sm:$0xff] %v750
    %1008 = vst [vmem:[#allocation2 + $0x70] sm:$0xff] %v753
    %1009 = vst [vmem:[#allocation2 + $0xb8] sm:$0xff] %v756
    %1010 = vst [vmem:[#allocation2 + $0x100] sm:$0xff] %v759
    %1011 = vst [vmem:[#allocation2 + $0x148] sm:$0xff] %v762
    %1012 = vst [vmem:[#allocation2 + $0x190] sm:$0xff] %v765
    %1013 = vst [vmem:[#allocation2 + $0x1d8] sm:$0xff] %v768
    %1014 = vst [vmem:[#allocation2 + $0x220] sm:$0xff] %v771
    %1015 = vst [vmem:[#allocation2 + $0x268] sm:$0xff] %v774
    %1016 = vst [vmem:[#allocation2 + $0x2b0] sm:$0xff] %v777
    %1017 = vst [vmem:[#allocation2 + $0x2f8] sm:$0xff] %v780
    %1018 = vst [vmem:[#allocation2 + $0x340] sm:$0xff] %v783
    %1019 = vst [vmem:[#allocation2 + $0x388] sm:$0xff] %v786
    %1020 = vst [vmem:[#allocation2 + $0x3d0] sm:$0xff] %v789
    %1021 = vst [vmem:[#allocation2 + $0x418] sm:$0xff] %v792
    %1022 = vst [vmem:[#allocation2 + $0x460] sm:$0xff] %v1001
    %1023 = vst [vmem:[#allocation2 + $0x4a8] sm:$0xff] %v798
    %1024 = vst [vmem:[#allocation2 + $0x4f0] sm:$0xff] %v801
    %1025 = vst [vmem:[#allocation2 + $0x538] sm:$0xff] %v804
    %1026 = vst [vmem:[#allocation2 + $0x580] sm:$0xff] %v807
    %1027 = vst [vmem:[#allocation2 + $0x5c8] sm:$0xff] %v810
    %1028 = vst [vmem:[#allocation2 + $0x610] sm:$0xff] %v813
    %1029 = vst [vmem:[#allocation2 + $0x658] sm:$0xff] %v816
    %1030 = vst [vmem:[#allocation2 + $0x6a0] sm:$0xff] %v819
    %1031 = vst [vmem:[#allocation2 + $0x6e8] sm:$0xff] %v822
    %1032 = vst [vmem:[#allocation2 + $0x730] sm:$0xff] %v825
    %1033 = vst [vmem:[#allocation2 + $0x778] sm:$0xff] %v828
    %1034 = vst [vmem:[#allocation2 + $0x7c0] sm:$0xff] %v831
    %1035 = vst [vmem:[#allocation2 + $0x808] sm:$0xff] %v834
    %1036 = vst [vmem:[#allocation2 + $0x850] sm:$0xff] %v837
    %1037 = vst [vmem:[#allocation2 + $0x898] sm:$0xff] %v840
    %1038 = vst [vmem:[#allocation2 + $0x8e0] sm:$0xff] %v1004
    %1039 = vst [vmem:[#allocation2 + $0x30] sm:$0xff] %v131
    %1040 = vst [vmem:[#allocation2 + $0x78] sm:$0xff] %v133
    %1041 = vst [vmem:[#allocation2 + $0xc0] sm:$0xff] %v135
    %1042 = vst [vmem:[#allocation2 + $0x108] sm:$0xff] %v137
    %1043 = vst [vmem:[#allocation2 + $0x150] sm:$0xff] %v139
    %1044 = vst [vmem:[#allocation2 + $0x198] sm:$0xff] %v141
    %1045 = vst [vmem:[#allocation2 + $0x1e0] sm:$0xff] %v143
    %1046 = vst [vmem:[#allocation2 + $0x228] sm:$0xff] %v145
    %1047 = vst [vmem:[#allocation2 + $0x270] sm:$0xff] %v147
    %1048 = vst [vmem:[#allocation2 + $0x2b8] sm:$0xff] %v149
    %1049 = vst [vmem:[#allocation2 + $0x300] sm:$0xff] %v151
    %1050 = vst [vmem:[#allocation2 + $0x348] sm:$0xff] %v153
    %1051 = vst [vmem:[#allocation2 + $0x390] sm:$0xff] %v155
    %1052 = vst [vmem:[#allocation2 + $0x3d8] sm:$0xff] %v157
    %1053 = vst [vmem:[#allocation2 + $0x420] sm:$0xff] %v159
    %1054 = vst [vmem:[#allocation2 + $0x468] sm:$0xff] %v161
    %1055 = vst [vmem:[#allocation2 + $0x4b0] sm:$0xff] %v167
    %1056 = vst [vmem:[#allocation2 + $0x4f8] sm:$0xff] %v169
    %1057 = vst [vmem:[#allocation2 + $0x540] sm:$0xff] %v171
    %1058 = vst [vmem:[#allocation2 + $0x588] sm:$0xff] %v173
    %1059 = vst [vmem:[#allocation2 + $0x5d0] sm:$0xff] %v175
    %1060 = vst [vmem:[#allocation2 + $0x618] sm:$0xff] %v177
    %1061 = vst [vmem:[#allocation2 + $0x660] sm:$0xff] %v179
    %1062 = vst [vmem:[#allocation2 + $0x6a8] sm:$0xff] %v181
    %1063 = vst [vmem:[#allocation2 + $0x6f0] sm:$0xff] %v183
    %1064 = vst [vmem:[#allocation2 + $0x738] sm:$0xff] %v185
    %1065 = vst [vmem:[#allocation2 + $0x780] sm:$0xff] %v187
    %1066 = vst [vmem:[#allocation2 + $0x7c8] sm:$0xff] %v189
    %1067 = vst [vmem:[#allocation2 + $0x810] sm:$0xff] %v191
    %1068 = vst [vmem:[#allocation2 + $0x858] sm:$0xff] %v193
    %1069 = vst [vmem:[#allocation2 + $0x8a0] sm:$0xff] %v195
    %1070 = vst [vmem:[#allocation2 + $0x8e8] sm:$0xff] %v197
    %v1072 = vshrl.u32 %v161, 16
    %v1074 = vshll.u32 %v161, 16
    %v1076 = vrot.slane %v1074, 1
    %v1077 = vor.u32 %v1072, %v1076
    %v1079 = vshll.u32 %v162, 16
    %v1081 = vrot.slane %v1079, 1
    %v1082 = vsel %vm231, %v1077, %v1081
    %v1084 = vshrl.u32 %v197, 16
    %v1086 = vshll.u32 %v197, 16
    %v1088 = vrot.slane %v1086, 1
    %v1089 = vor.u32 %v1084, %v1088
    %v1091 = vshll.u32 %v198, 16
    %v1093 = vrot.slane %v1091, 1
    %v1094 = vsel %vm231, %v1089, %v1093
    %1097 = vst [vmem:[#allocation2 + $0x38] sm:$0xff] %v267
    %1098 = vst [vmem:[#allocation2 + $0x80] sm:$0xff] %v279
    %1099 = vst [vmem:[#allocation2 + $0xc8] sm:$0xff] %v291
    %1100 = vst [vmem:[#allocation2 + $0x110] sm:$0xff] %v303
    %1101 = vst [vmem:[#allocation2 + $0x158] sm:$0xff] %v315
    %1102 = vst [vmem:[#allocation2 + $0x1a0] sm:$0xff] %v327
    %1103 = vst [vmem:[#allocation2 + $0x1e8] sm:$0xff] %v339
    %1104 = vst [vmem:[#allocation2 + $0x230] sm:$0xff] %v351
    %1105 = vst [vmem:[#allocation2 + $0x278] sm:$0xff] %v363
    %1106 = vst [vmem:[#allocation2 + $0x2c0] sm:$0xff] %v375
    %1107 = vst [vmem:[#allocation2 + $0x308] sm:$0xff] %v387
    %1108 = vst [vmem:[#allocation2 + $0x350] sm:$0xff] %v399
    %1109 = vst [vmem:[#allocation2 + $0x398] sm:$0xff] %v411
    %1110 = vst [vmem:[#allocation2 + $0x3e0] sm:$0xff] %v423
    %1111 = vst [vmem:[#allocation2 + $0x428] sm:$0xff] %v948
    %1112 = vst [vmem:[#allocation2 + $0x470] sm:$0xff] %v1082
    %1113 = vst [vmem:[#allocation2 + $0x4b8] sm:$0xff] %v459
    %1114 = vst [vmem:[#allocation2 + $0x500] sm:$0xff] %v471
    %1115 = vst [vmem:[#allocation2 + $0x548] sm:$0xff] %v483
    %1116 = vst [vmem:[#allocation2 + $0x590] sm:$0xff] %v495
    %1117 = vst [vmem:[#allocation2 + $0x5d8] sm:$0xff] %v507
    %1118 = vst [vmem:[#allocation2 + $0x620] sm:$0xff] %v519
    %1119 = vst [vmem:[#allocation2 + $0x668] sm:$0xff] %v531
    %1120 = vst [vmem:[#allocation2 + $0x6b0] sm:$0xff] %v543
    %1121 = vst [vmem:[#allocation2 + $0x6f8] sm:$0xff] %v555
    %1122 = vst [vmem:[#allocation2 + $0x740] sm:$0xff] %v567
    %1123 = vst [vmem:[#allocation2 + $0x788] sm:$0xff] %v579
    %1124 = vst [vmem:[#allocation2 + $0x7d0] sm:$0xff] %v591
    %1125 = vst [vmem:[#allocation2 + $0x818] sm:$0xff] %v603
    %1126 = vst [vmem:[#allocation2 + $0x860] sm:$0xff] %v615
    %1127 = vst [vmem:[#allocation2 + $0x8a8] sm:$0xff] %v960
    %1128 = vst [vmem:[#allocation2 + $0x8f0] sm:$0xff] %v1094
    %v1133 = vrot.slane %v161, 1
    %v1134 = vrot.slane %v162, 1
    %v1135 = vsel %vm744, %v1133, %v1134
    %v1136 = vrot.slane %v197, 1
    %v1137 = vrot.slane %v198, 1
    %v1138 = vsel %vm744, %v1136, %v1137
    %1141 = vst [vmem:[#allocation2 + $0x40] sm:$0xff] %v753
    %1142 = vst [vmem:[#allocation2 + $0x88] sm:$0xff] %v756
    %1143 = vst [vmem:[#allocation2 + $0xd0] sm:$0xff] %v759
    %1144 = vst [vmem:[#allocation2 + $0x118] sm:$0xff] %v762
    %1145 = vst [vmem:[#allocation2 + $0x160] sm:$0xff] %v765
    %1146 = vst [vmem:[#allocation2 + $0x1a8] sm:$0xff] %v768
    %1147 = vst [vmem:[#allocation2 + $0x1f0] sm:$0xff] %v771
    %1148 = vst [vmem:[#allocation2 + $0x238] sm:$0xff] %v774
    %1149 = vst [vmem:[#allocation2 + $0x280] sm:$0xff] %v777
    %1150 = vst [vmem:[#allocation2 + $0x2c8] sm:$0xff] %v780
    %1151 = vst [vmem:[#allocation2 + $0x310] sm:$0xff] %v783
    %1152 = vst [vmem:[#allocation2 + $0x358] sm:$0xff] %v786
    %1153 = vst [vmem:[#allocation2 + $0x3a0] sm:$0xff] %v789
    %1154 = vst [vmem:[#allocation2 + $0x3e8] sm:$0xff] %v792
    %1155 = vst [vmem:[#allocation2 + $0x430] sm:$0xff] %v1001
    %1156 = vst [vmem:[#allocation2 + $0x478] sm:$0xff] %v1135
    %1157 = vst [vmem:[#allocation2 + $0x4c0] sm:$0xff] %v801
    %1158 = vst [vmem:[#allocation2 + $0x508] sm:$0xff] %v804
    %1159 = vst [vmem:[#allocation2 + $0x550] sm:$0xff] %v807
    %1160 = vst [vmem:[#allocation2 + $0x598] sm:$0xff] %v810
    %1161 = vst [vmem:[#allocation2 + $0x5e0] sm:$0xff] %v813
    %1162 = vst [vmem:[#allocation2 + $0x628] sm:$0xff] %v816
    %1163 = vst [vmem:[#allocation2 + $0x670] sm:$0xff] %v819
    %1164 = vst [vmem:[#allocation2 + $0x6b8] sm:$0xff] %v822
    %1165 = vst [vmem:[#allocation2 + $0x700] sm:$0xff] %v825
    %1166 = vst [vmem:[#allocation2 + $0x748] sm:$0xff] %v828
    %1167 = vst [vmem:[#allocation2 + $0x790] sm:$0xff] %v831
    %1168 = vst [vmem:[#allocation2 + $0x7d8] sm:$0xff] %v834
    %1169 = vst [vmem:[#allocation2 + $0x820] sm:$0xff] %v837
    %1170 = vst [vmem:[#allocation2 + $0x868] sm:$0xff] %v840
    %1171 = vst [vmem:[#allocation2 + $0x8b0] sm:$0xff] %v1004
    %1172 = vst [vmem:[#allocation2 + $0x8f8] sm:$0xff] %v1138
    %v1173 = vld [vmem:[#allocation2] sm:$0xff]
    %v1174 = vld [vmem:[#allocation2 + $0x8] sm:$0xff]
    %v1175 = vld [vmem:[#allocation2 + $0x10] sm:$0xff]
    %v1176 = vld [vmem:[#allocation2 + $0x18] sm:$0xff]
    %v1177 = vld [vmem:[#allocation2 + $0x20] sm:$0xff]
    %v1178 = vld [vmem:[#allocation2 + $0x28] sm:$0xff]
    %v1179 = vld [vmem:[#allocation2 + $0x30] sm:$0xff]
    %v1180 = vld [vmem:[#allocation2 + $0x38] sm:$0xff]
    %v1181 = vld [vmem:[#allocation2 + $0x40] sm:$0xff]
    %v1182 = vld [vmem:[#allocation2 + $0x48] sm:$0xff]
    %v1183 = vld [vmem:[#allocation2 + $0x50] sm:$0xff]
    %v1184 = vld [vmem:[#allocation2 + $0x58] sm:$0xff]
    %v1185 = vld [vmem:[#allocation2 + $0x60] sm:$0xff]
    %v1186 = vld [vmem:[#allocation2 + $0x68] sm:$0xff]
    %v1187 = vld [vmem:[#allocation2 + $0x70] sm:$0xff]
    %v1188 = vld [vmem:[#allocation2 + $0x78] sm:$0xff]
    %v1189 = vld [vmem:[#allocation2 + $0x80] sm:$0xff]
    %v1190 = vld [vmem:[#allocation2 + $0x88] sm:$0xff]
    %v1191 = vld [vmem:[#allocation2 + $0x90] sm:$0xff]
    %v1192 = vld [vmem:[#allocation2 + $0x98] sm:$0xff]
    %v1193 = vld [vmem:[#allocation2 + $0xa0] sm:$0xff]
    %v1194 = vld [vmem:[#allocation2 + $0xa8] sm:$0xff]
    %v1195 = vld [vmem:[#allocation2 + $0xb0] sm:$0xff]
    %v1196 = vld [vmem:[#allocation2 + $0xb8] sm:$0xff]
    %v1197 = vld [vmem:[#allocation2 + $0xc0] sm:$0xff]
    %v1198 = vld [vmem:[#allocation2 + $0xc8] sm:$0xff]
    %v1199 = vld [vmem:[#allocation2 + $0xd0] sm:$0xff]
    %v1200 = vld [vmem:[#allocation2 + $0xd8] sm:$0xff]
    %v1201 = vld [vmem:[#allocation2 + $0xe0] sm:$0xff]
    %v1202 = vld [vmem:[#allocation2 + $0xe8] sm:$0xff]
    %v1203 = vld [vmem:[#allocation2 + $0xf0] sm:$0xff]
    %v1204 = vld [vmem:[#allocation2 + $0xf8] sm:$0xff]
    %v1205 = vld [vmem:[#allocation2 + $0x100] sm:$0xff]
    %v1206 = vld [vmem:[#allocation2 + $0x108] sm:$0xff]
    %v1207 = vld [vmem:[#allocation2 + $0x110] sm:$0xff]
    %v1208 = vld [vmem:[#allocation2 + $0x118] sm:$0xff]
    %v1209 = vld [vmem:[#allocation2 + $0x120] sm:$0xff]
    %v1210 = vld [vmem:[#allocation2 + $0x128] sm:$0xff]
    %v1211 = vld [vmem:[#allocation2 + $0x130] sm:$0xff]
    %v1212 = vld [vmem:[#allocation2 + $0x138] sm:$0xff]
    %v1213 = vld [vmem:[#allocation2 + $0x140] sm:$0xff]
    %v1214 = vld [vmem:[#allocation2 + $0x148] sm:$0xff]
    %v1215 = vld [vmem:[#allocation2 + $0x150] sm:$0xff]
    %v1216 = vld [vmem:[#allocation2 + $0x158] sm:$0xff]
    %v1217 = vld [vmem:[#allocation2 + $0x160] sm:$0xff]
    %v1218 = vld [vmem:[#allocation2 + $0x168] sm:$0xff]
    %v1219 = vld [vmem:[#allocation2 + $0x170] sm:$0xff]
    %v1220 = vld [vmem:[#allocation2 + $0x178] sm:$0xff]
    %v1221 = vld [vmem:[#allocation2 + $0x180] sm:$0xff]
    %v1222 = vld [vmem:[#allocation2 + $0x188] sm:$0xff]
    %v1223 = vld [vmem:[#allocation2 + $0x190] sm:$0xff]
    %v1224 = vld [vmem:[#allocation2 + $0x198] sm:$0xff]
    %v1225 = vld [vmem:[#allocation2 + $0x1a0] sm:$0xff]
    %v1226 = vld [vmem:[#allocation2 + $0x1a8] sm:$0xff]
    %v1227 = vld [vmem:[#allocation2 + $0x1b0] sm:$0xff]
    %v1228 = vld [vmem:[#allocation2 + $0x1b8] sm:$0xff]
    %v1229 = vld [vmem:[#allocation2 + $0x1c0] sm:$0xff]
    %v1230 = vld [vmem:[#allocation2 + $0x1c8] sm:$0xff]
    %v1231 = vld [vmem:[#allocation2 + $0x1d0] sm:$0xff]
    %v1232 = vld [vmem:[#allocation2 + $0x1d8] sm:$0xff]
    %v1233 = vld [vmem:[#allocation2 + $0x1e0] sm:$0xff]
    %v1234 = vld [vmem:[#allocation2 + $0x1e8] sm:$0xff]
    %v1235 = vld [vmem:[#allocation2 + $0x1f0] sm:$0xff]
    %v1236 = vld [vmem:[#allocation2 + $0x1f8] sm:$0xff]
    %v1237 = vld [vmem:[#allocation2 + $0x200] sm:$0xff]
    %v1238 = vld [vmem:[#allocation2 + $0x208] sm:$0xff]
    %v1239 = vld [vmem:[#allocation2 + $0x210] sm:$0xff]
    %v1240 = vld [vmem:[#allocation2 + $0x218] sm:$0xff]
    %v1241 = vld [vmem:[#allocation2 + $0x220] sm:$0xff]
    %v1242 = vld [vmem:[#allocation2 + $0x228] sm:$0xff]
    %v1243 = vld [vmem:[#allocation2 + $0x230] sm:$0xff]
    %v1244 = vld [vmem:[#allocation2 + $0x238] sm:$0xff]
    %v1245 = vld [vmem:[#allocation2 + $0x240] sm:$0xff]
    %v1246 = vld [vmem:[#allocation2 + $0x248] sm:$0xff]
    %v1247 = vld [vmem:[#allocation2 + $0x250] sm:$0xff]
    %v1248 = vld [vmem:[#allocation2 + $0x258] sm:$0xff]
    %v1249 = vld [vmem:[#allocation2 + $0x260] sm:$0xff]
    %v1250 = vld [vmem:[#allocation2 + $0x268] sm:$0xff]
    %v1251 = vld [vmem:[#allocation2 + $0x270] sm:$0xff]
    %v1252 = vld [vmem:[#allocation2 + $0x278] sm:$0xff]
    %v1253 = vld [vmem:[#allocation2 + $0x280] sm:$0xff]
    %v1254 = vld [vmem:[#allocation2 + $0x288] sm:$0xff]
    %v1255 = vld [vmem:[#allocation2 + $0x290] sm:$0xff]
    %v1256 = vld [vmem:[#allocation2 + $0x298] sm:$0xff]
    %v1257 = vld [vmem:[#allocation2 + $0x2a0] sm:$0xff]
    %v1258 = vld [vmem:[#allocation2 + $0x2a8] sm:$0xff]
    %v1259 = vld [vmem:[#allocation2 + $0x2b0] sm:$0xff]
    %v1260 = vld [vmem:[#allocation2 + $0x2b8] sm:$0xff]
    %v1261 = vld [vmem:[#allocation2 + $0x2c0] sm:$0xff]
    %v1262 = vld [vmem:[#allocation2 + $0x2c8] sm:$0xff]
    %v1263 = vld [vmem:[#allocation2 + $0x2d0] sm:$0xff]
    %v1264 = vld [vmem:[#allocation2 + $0x2d8] sm:$0xff]
    %v1265 = vld [vmem:[#allocation2 + $0x2e0] sm:$0xff]
    %v1266 = vld [vmem:[#allocation2 + $0x2e8] sm:$0xff]
    %v1267 = vld [vmem:[#allocation2 + $0x2f0] sm:$0xff]
    %v1268 = vld [vmem:[#allocation2 + $0x2f8] sm:$0xff]
    %v1269 = vld [vmem:[#allocation2 + $0x300] sm:$0xff]
    %v1270 = vld [vmem:[#allocation2 + $0x308] sm:$0xff]
    %v1271 = vld [vmem:[#allocation2 + $0x310] sm:$0xff]
    %v1272 = vld [vmem:[#allocation2 + $0x318] sm:$0xff]
    %v1273 = vld [vmem:[#allocation2 + $0x320] sm:$0xff]
    %v1274 = vld [vmem:[#allocation2 + $0x328] sm:$0xff]
    %v1275 = vld [vmem:[#allocation2 + $0x330] sm:$0xff]
    %v1276 = vld [vmem:[#allocation2 + $0x338] sm:$0xff]
    %v1277 = vld [vmem:[#allocation2 + $0x340] sm:$0xff]
    %v1278 = vld [vmem:[#allocation2 + $0x348] sm:$0xff]
    %v1279 = vld [vmem:[#allocation2 + $0x350] sm:$0xff]
    %v1280 = vld [vmem:[#allocation2 + $0x358] sm:$0xff]
    %v1281 = vld [vmem:[#allocation2 + $0x360] sm:$0xff]
    %v1282 = vld [vmem:[#allocation2 + $0x368] sm:$0xff]
    %v1283 = vld [vmem:[#allocation2 + $0x370] sm:$0xff]
    %v1284 = vld [vmem:[#allocation2 + $0x378] sm:$0xff]
    %v1285 = vld [vmem:[#allocation2 + $0x380] sm:$0xff]
    %v1286 = vld [vmem:[#allocation2 + $0x388] sm:$0xff]
    %v1287 = vld [vmem:[#allocation2 + $0x390] sm:$0xff]
    %v1288 = vld [vmem:[#allocation2 + $0x398] sm:$0xff]
    %v1289 = vld [vmem:[#allocation2 + $0x3a0] sm:$0xff]
    %v1290 = vld [vmem:[#allocation2 + $0x3a8] sm:$0xff]
    %v1291 = vld [vmem:[#allocation2 + $0x3b0] sm:$0xff]
    %v1292 = vld [vmem:[#allocation2 + $0x3b8] sm:$0xff]
    %v1293 = vld [vmem:[#allocation2 + $0x3c0] sm:$0xff]
    %v1294 = vld [vmem:[#allocation2 + $0x3c8] sm:$0xff]
    %v1295 = vld [vmem:[#allocation2 + $0x3d0] sm:$0xff]
    %v1296 = vld [vmem:[#allocation2 + $0x3d8] sm:$0xff]
    %v1297 = vld [vmem:[#allocation2 + $0x3e0] sm:$0xff]
    %v1298 = vld [vmem:[#allocation2 + $0x3e8] sm:$0xff]
    %v1299 = vld [vmem:[#allocation2 + $0x3f0] sm:$0xff]
    %v1300 = vld [vmem:[#allocation2 + $0x3f8] sm:$0xff]
    %v1301 = vld [vmem:[#allocation2 + $0x400] sm:$0xff]
    %v1302 = vld [vmem:[#allocation2 + $0x408] sm:$0xff]
    %v1303 = vld [vmem:[#allocation2 + $0x410] sm:$0xff]
    %v1304 = vld [vmem:[#allocation2 + $0x418] sm:$0xff]
    %v1305 = vld [vmem:[#allocation2 + $0x420] sm:$0xff]
    %v1306 = vld [vmem:[#allocation2 + $0x428] sm:$0xff]
    %v1307 = vld [vmem:[#allocation2 + $0x430] sm:$0xff]
    %v1308 = vld [vmem:[#allocation2 + $0x438] sm:$0xff]
    %v1309 = vld [vmem:[#allocation2 + $0x440] sm:$0xff]
    %v1310 = vld [vmem:[#allocation2 + $0x448] sm:$0xff]
    %v1311 = vld [vmem:[#allocation2 + $0x450] sm:$0xff]
    %v1312 = vld [vmem:[#allocation2 + $0x458] sm:$0xff]
    %v1313 = vld [vmem:[#allocation2 + $0x460] sm:$0xff]
    %v1314 = vld [vmem:[#allocation2 + $0x468] sm:$0xff]
    %v1315 = vld [vmem:[#allocation2 + $0x470] sm:$0xff]
    %v1316 = vld [vmem:[#allocation2 + $0x478] sm:$0xff]
    %v1317 = vld [vmem:[#allocation2 + $0x480] sm:$0xff]
    %v1318 = vld [vmem:[#allocation2 + $0x488] sm:$0xff]
    %v1319 = vld [vmem:[#allocation2 + $0x490] sm:$0xff]
    %v1320 = vld [vmem:[#allocation2 + $0x498] sm:$0xff]
    %v1321 = vld [vmem:[#allocation2 + $0x4a0] sm:$0xff]
    %v1322 = vld [vmem:[#allocation2 + $0x4a8] sm:$0xff]
    %v1323 = vld [vmem:[#allocation2 + $0x4b0] sm:$0xff]
    %v1324 = vld [vmem:[#allocation2 + $0x4b8] sm:$0xff]
    %v1325 = vld [vmem:[#allocation2 + $0x4c0] sm:$0xff]
    %v1326 = vld [vmem:[#allocation2 + $0x4c8] sm:$0xff]
    %v1327 = vld [vmem:[#allocation2 + $0x4d0] sm:$0xff]
    %v1328 = vld [vmem:[#allocation2 + $0x4d8] sm:$0xff]
    %v1329 = vld [vmem:[#allocation2 + $0x4e0] sm:$0xff]
    %v1330 = vld [vmem:[#allocation2 + $0x4e8] sm:$0xff]
    %v1331 = vld [vmem:[#allocation2 + $0x4f0] sm:$0xff]
    %v1332 = vld [vmem:[#allocation2 + $0x4f8] sm:$0xff]
    %v1333 = vld [vmem:[#allocation2 + $0x500] sm:$0xff]
    %v1334 = vld [vmem:[#allocation2 + $0x508] sm:$0xff]
    %v1335 = vld [vmem:[#allocation2 + $0x510] sm:$0xff]
    %v1336 = vld [vmem:[#allocation2 + $0x518] sm:$0xff]
    %v1337 = vld [vmem:[#allocation2 + $0x520] sm:$0xff]
    %v1338 = vld [vmem:[#allocation2 + $0x528] sm:$0xff]
    %v1339 = vld [vmem:[#allocation2 + $0x530] sm:$0xff]
    %v1340 = vld [vmem:[#allocation2 + $0x538] sm:$0xff]
    %v1341 = vld [vmem:[#allocation2 + $0x540] sm:$0xff]
    %v1342 = vld [vmem:[#allocation2 + $0x548] sm:$0xff]
    %v1343 = vld [vmem:[#allocation2 + $0x550] sm:$0xff]
    %v1344 = vld [vmem:[#allocation2 + $0x558] sm:$0xff]
    %v1345 = vld [vmem:[#allocation2 + $0x560] sm:$0xff]
    %v1346 = vld [vmem:[#allocation2 + $0x568] sm:$0xff]
    %v1347 = vld [vmem:[#allocation2 + $0x570] sm:$0xff]
    %v1348 = vld [vmem:[#allocation2 + $0x578] sm:$0xff]
    %v1349 = vld [vmem:[#allocation2 + $0x580] sm:$0xff]
    %v1350 = vld [vmem:[#allocation2 + $0x588] sm:$0xff]
    %v1351 = vld [vmem:[#allocation2 + $0x590] sm:$0xff]
    %v1352 = vld [vmem:[#allocation2 + $0x598] sm:$0xff]
    %v1353 = vld [vmem:[#allocation2 + $0x5a0] sm:$0xff]
    %v1354 = vld [vmem:[#allocation2 + $0x5a8] sm:$0xff]
    %v1355 = vld [vmem:[#allocation2 + $0x5b0] sm:$0xff]
    %v1356 = vld [vmem:[#allocation2 + $0x5b8] sm:$0xff]
    %v1357 = vld [vmem:[#allocation2 + $0x5c0] sm:$0xff]
    %v1358 = vld [vmem:[#allocation2 + $0x5c8] sm:$0xff]
    %v1359 = vld [vmem:[#allocation2 + $0x5d0] sm:$0xff]
    %v1360 = vld [vmem:[#allocation2 + $0x5d8] sm:$0xff]
    %v1361 = vld [vmem:[#allocation2 + $0x5e0] sm:$0xff]
    %v1362 = vld [vmem:[#allocation2 + $0x5e8] sm:$0xff]
    %v1363 = vld [vmem:[#allocation2 + $0x5f0] sm:$0xff]
    %v1364 = vld [vmem:[#allocation2 + $0x5f8] sm:$0xff]
    %v1365 = vld [vmem:[#allocation2 + $0x600] sm:$0xff]
    %v1366 = vld [vmem:[#allocation2 + $0x608] sm:$0xff]
    %v1367 = vld [vmem:[#allocation2 + $0x610] sm:$0xff]
    %v1368 = vld [vmem:[#allocation2 + $0x618] sm:$0xff]
    %v1369 = vld [vmem:[#allocation2 + $0x620] sm:$0xff]
    %v1370 = vld [vmem:[#allocation2 + $0x628] sm:$0xff]
    %v1371 = vld [vmem:[#allocation2 + $0x630] sm:$0xff]
    %v1372 = vld [vmem:[#allocation2 + $0x638] sm:$0xff]
    %v1373 = vld [vmem:[#allocation2 + $0x640] sm:$0xff]
    %v1374 = vld [vmem:[#allocation2 + $0x648] sm:$0xff]
    %v1375 = vld [vmem:[#allocation2 + $0x650] sm:$0xff]
    %v1376 = vld [vmem:[#allocation2 + $0x658] sm:$0xff]
    %v1377 = vld [vmem:[#allocation2 + $0x660] sm:$0xff]
    %v1378 = vld [vmem:[#allocation2 + $0x668] sm:$0xff]
    %v1379 = vld [vmem:[#allocation2 + $0x670] sm:$0xff]
    %v1380 = vld [vmem:[#allocation2 + $0x678] sm:$0xff]
    %v1381 = vld [vmem:[#allocation2 + $0x680] sm:$0xff]
    %v1382 = vld [vmem:[#allocation2 + $0x688] sm:$0xff]
    %v1383 = vld [vmem:[#allocation2 + $0x690] sm:$0xff]
    %v1384 = vld [vmem:[#allocation2 + $0x698] sm:$0xff]
    %v1385 = vld [vmem:[#allocation2 + $0x6a0] sm:$0xff]
    %v1386 = vld [vmem:[#allocation2 + $0x6a8] sm:$0xff]
    %v1387 = vld [vmem:[#allocation2 + $0x6b0] sm:$0xff]
    %v1388 = vld [vmem:[#allocation2 + $0x6b8] sm:$0xff]
    %v1389 = vld [vmem:[#allocation2 + $0x6c0] sm:$0xff]
    %v1390 = vld [vmem:[#allocation2 + $0x6c8] sm:$0xff]
    %v1391 = vld [vmem:[#allocation2 + $0x6d0] sm:$0xff]
    %v1392 = vld [vmem:[#allocation2 + $0x6d8] sm:$0xff]
    %v1393 = vld [vmem:[#allocation2 + $0x6e0] sm:$0xff]
    %v1394 = vld [vmem:[#allocation2 + $0x6e8] sm:$0xff]
    %v1395 = vld [vmem:[#allocation2 + $0x6f0] sm:$0xff]
    %v1396 = vld [vmem:[#allocation2 + $0x6f8] sm:$0xff]
    %v1397 = vld [vmem:[#allocation2 + $0x700] sm:$0xff]
    %v1398 = vld [vmem:[#allocation2 + $0x708] sm:$0xff]
    %v1399 = vld [vmem:[#allocation2 + $0x710] sm:$0xff]
    %v1400 = vld [vmem:[#allocation2 + $0x718] sm:$0xff]
    %v1401 = vld [vmem:[#allocation2 + $0x720] sm:$0xff]
    %v1402 = vld [vmem:[#allocation2 + $0x728] sm:$0xff]
    %v1403 = vld [vmem:[#allocation2 + $0x730] sm:$0xff]
    %v1404 = vld [vmem:[#allocation2 + $0x738] sm:$0xff]
    %v1405 = vld [vmem:[#allocation2 + $0x740] sm:$0xff]
    %v1406 = vld [vmem:[#allocation2 + $0x748] sm:$0xff]
    %v1407 = vld [vmem:[#allocation2 + $0x750] sm:$0xff]
    %v1408 = vld [vmem:[#allocation2 + $0x758] sm:$0xff]
    %v1409 = vld [vmem:[#allocation2 + $0x760] sm:$0xff]
    %v1410 = vld [vmem:[#allocation2 + $0x768] sm:$0xff]
    %v1411 = vld [vmem:[#allocation2 + $0x770] sm:$0xff]
    %v1412 = vld [vmem:[#allocation2 + $0x778] sm:$0xff]
    %v1413 = vld [vmem:[#allocation2 + $0x780] sm:$0xff]
    %v1414 = vld [vmem:[#allocation2 + $0x788] sm:$0xff]
    %v1415 = vld [vmem:[#allocation2 + $0x790] sm:$0xff]
    %v1416 = vld [vmem:[#allocation2 + $0x798] sm:$0xff]
    %v1417 = vld [vmem:[#allocation2 + $0x7a0] sm:$0xff]
    %v1418 = vld [vmem:[#allocation2 + $0x7a8] sm:$0xff]
    %v1419 = vld [vmem:[#allocation2 + $0x7b0] sm:$0xff]
    %v1420 = vld [vmem:[#allocation2 + $0x7b8] sm:$0xff]
    %v1421 = vld [vmem:[#allocation2 + $0x7c0] sm:$0xff]
    %v1422 = vld [vmem:[#allocation2 + $0x7c8] sm:$0xff]
    %v1423 = vld [vmem:[#allocation2 + $0x7d0] sm:$0xff]
    %v1424 = vld [vmem:[#allocation2 + $0x7d8] sm:$0xff]
    %v1425 = vld [vmem:[#allocation2 + $0x7e0] sm:$0xff]
    %v1426 = vld [vmem:[#allocation2 + $0x7e8] sm:$0xff]
    %v1427 = vld [vmem:[#allocation2 + $0x7f0] sm:$0xff]
    %v1428 = vld [vmem:[#allocation2 + $0x7f8] sm:$0xff]
    %v1429 = vld [vmem:[#allocation2 + $0x800] sm:$0xff]
    %v1430 = vld [vmem:[#allocation2 + $0x808] sm:$0xff]
    %v1431 = vld [vmem:[#allocation2 + $0x810] sm:$0xff]
    %v1432 = vld [vmem:[#allocation2 + $0x818] sm:$0xff]
    %v1433 = vld [vmem:[#allocation2 + $0x820] sm:$0xff]
    %v1434 = vld [vmem:[#allocation2 + $0x828] sm:$0xff]
    %v1435 = vld [vmem:[#allocation2 + $0x830] sm:$0xff]
    %v1436 = vld [vmem:[#allocation2 + $0x838] sm:$0xff]
    %v1437 = vld [vmem:[#allocation2 + $0x840] sm:$0xff]
    %v1438 = vld [vmem:[#allocation2 + $0x848] sm:$0xff]
    %v1439 = vld [vmem:[#allocation2 + $0x850] sm:$0xff]
    %v1440 = vld [vmem:[#allocation2 + $0x858] sm:$0xff]
    %v1441 = vld [vmem:[#allocation2 + $0x860] sm:$0xff]
    %v1442 = vld [vmem:[#allocation2 + $0x868] sm:$0xff]
    %v1443 = vld [vmem:[#allocation2 + $0x870] sm:$0xff]
    %v1444 = vld [vmem:[#allocation2 + $0x878] sm:$0xff]
    %v1445 = vld [vmem:[#allocation2 + $0x880] sm:$0xff]
    %v1446 = vld [vmem:[#allocation2 + $0x888] sm:$0xff]
    %v1447 = vld [vmem:[#allocation2 + $0x890] sm:$0xff]
    %v1448 = vld [vmem:[#allocation2 + $0x898] sm:$0xff]
    %v1449 = vld [vmem:[#allocation2 + $0x8a0] sm:$0xff]
    %v1450 = vld [vmem:[#allocation2 + $0x8a8] sm:$0xff]
    %v1451 = vld [vmem:[#allocation2 + $0x8b0] sm:$0xff]
    %v1452 = vld [vmem:[#allocation2 + $0x8b8] sm:$0xff]
    %v1453 = vld [vmem:[#allocation2 + $0x8c0] sm:$0xff]
    %v1454 = vld [vmem:[#allocation2 + $0x8c8] sm:$0xff]
    %v1455 = vld [vmem:[#allocation2 + $0x8d0] sm:$0xff]
    %v1456 = vld [vmem:[#allocation2 + $0x8d8] sm:$0xff]
    %v1457 = vld [vmem:[#allocation2 + $0x8e0] sm:$0xff]
    %v1458 = vld [vmem:[#allocation2 + $0x8e8] sm:$0xff]
    %v1459 = vld [vmem:[#allocation2 + $0x8f0] sm:$0xff]
    %v1460 = vld [vmem:[#allocation2 + $0x8f8] sm:$0xff]
    %v1461 = vld [vmem:[%s1] sm:$0xf]
    %v1462 = vld [vmem:[%s1 + $0x4] sm:$0xf]
    %v1463 = vld [vmem:[%s1 + $0x8] sm:$0xf]
    %v1464 = vld [vmem:[%s1 + $0xc] sm:$0xf]
    %v1465 = vld [vmem:[%s1 + $0x10] sm:$0xf]
    %v1466 = vld [vmem:[%s1 + $0x14] sm:$0xf]
    %v1467 = vld [vmem:[%s1 + $0x18] sm:$0xf]
    %v1468 = vld [vmem:[%s1 + $0x1c] sm:$0xf]
    %v1469 = vld [vmem:[%s1 + $0x20] sm:$0xf]
    %v1470 = vld [vmem:[%s1 + $0x24] sm:$0xf]
    %v1471 = vld [vmem:[%s1 + $0x28] sm:$0xf]
    %v1472 = vld [vmem:[%s1 + $0x2c] sm:$0xf]
    %v1473 = vld [vmem:[%s1 + $0x30] sm:$0xf]
    %v1474 = vld [vmem:[%s1 + $0x34] sm:$0xf]
    %v1475 = vld [vmem:[%s1 + $0x38] sm:$0xf]
    %v1476 = vld [vmem:[%s1 + $0x3c] sm:$0xf]
    %v1477 = vld [vmem:[%s1 + $0x40] sm:$0xf]
    %v1478 = vld [vmem:[%s1 + $0x44] sm:$0xf]
    %v1479 = vld [vmem:[%s1 + $0x48] sm:$0xf]
    %v1480 = vld [vmem:[%s1 + $0x4c] sm:$0xf]
    %v1481 = vld [vmem:[%s1 + $0x50] sm:$0xf]
    %v1482 = vld [vmem:[%s1 + $0x54] sm:$0xf]
    %v1483 = vld [vmem:[%s1 + $0x58] sm:$0xf]
    %v1484 = vld [vmem:[%s1 + $0x5c] sm:$0xf]
    %v1485 = vld [vmem:[%s1 + $0x60] sm:$0xf]
    %v1486 = vld [vmem:[%s1 + $0x64] sm:$0xf]
    %v1487 = vld [vmem:[%s1 + $0x68] sm:$0xf]
    %v1488 = vld [vmem:[%s1 + $0x6c] sm:$0xf]
    %v1489 = vld [vmem:[%s1 + $0x70] sm:$0xf]
    %v1490 = vld [vmem:[%s1 + $0x74] sm:$0xf]
    %v1491 = vld [vmem:[%s1 + $0x78] sm:$0xf]
    %v1492 = vld [vmem:[%s1 + $0x7c] sm:$0xf]
    %v1493 = vld [vmem:[%s1 + $0x80] sm:$0xf]
    %v1494 = vld [vmem:[%s1 + $0x84] sm:$0xf]
    %v1495 = vld [vmem:[%s1 + $0x88] sm:$0xf]
    %v1496 = vld [vmem:[%s1 + $0x8c] sm:$0xf]
    %v1497 = vld [vmem:[%s1 + $0x90] sm:$0xf]
    %v1498 = vld [vmem:[%s1 + $0x94] sm:$0xf]
    %v1499 = vld [vmem:[%s1 + $0x98] sm:$0xf]
    %v1500 = vld [vmem:[%s1 + $0x9c] sm:$0xf]
    %v1501 = vld [vmem:[%s1 + $0xa0] sm:$0xf]
    %v1502 = vld [vmem:[%s1 + $0xa4] sm:$0xf]
    %v1503 = vld [vmem:[%s1 + $0xa8] sm:$0xf]
    %v1504 = vld [vmem:[%s1 + $0xac] sm:$0xf]
    %v1505 = vld [vmem:[%s1 + $0xb0] sm:$0xf]
    %v1506 = vld [vmem:[%s1 + $0xb4] sm:$0xf]
    %v1507 = vld [vmem:[%s1 + $0xb8] sm:$0xf]
    %v1508 = vld [vmem:[%s1 + $0xbc] sm:$0xf]
    %v1509 = vld [vmem:[%s1 + $0xc0] sm:$0xf]
    %v1510 = vld [vmem:[%s1 + $0xc4] sm:$0xf]
    %v1511 = vld [vmem:[%s1 + $0xc8] sm:$0xf]
    %v1512 = vld [vmem:[%s1 + $0xcc] sm:$0xf]
    %v1513 = vld [vmem:[%s1 + $0xd0] sm:$0xf]
    %v1514 = vld [vmem:[%s1 + $0xd4] sm:$0xf]
    %v1515 = vld [vmem:[%s1 + $0xd8] sm:$0xf]
    %v1516 = vld [vmem:[%s1 + $0xdc] sm:$0xf]
    %v1517 = vld [vmem:[%s1 + $0xe0] sm:$0xf]
    %v1518 = vld [vmem:[%s1 + $0xe4] sm:$0xf]
    %v1519 = vld [vmem:[%s1 + $0xe8] sm:$0xf]
    %v1520 = vld [vmem:[%s1 + $0xec] sm:$0xf]
    %v1521 = vld [vmem:[%s1 + $0xf0] sm:$0xf]
    %v1522 = vld [vmem:[%s1 + $0xf4] sm:$0xf]
    %v1523 = vld [vmem:[%s1 + $0xf8] sm:$0xf]
    %v1524 = vld [vmem:[%s1 + $0xfc] sm:$0xf]
    %v1525 = vld [vmem:[%s1 + $0x100] sm:$0xf]
    %v1526 = vld [vmem:[%s1 + $0x104] sm:$0xf]
    %v1527 = vld [vmem:[%s1 + $0x108] sm:$0xf]
    %v1528 = vld [vmem:[%s1 + $0x10c] sm:$0xf]
    %v1529 = vld [vmem:[%s1 + $0x110] sm:$0xf]
    %v1530 = vld [vmem:[%s1 + $0x114] sm:$0xf]
    %v1531 = vld [vmem:[%s1 + $0x118] sm:$0xf]
    %v1532 = vld [vmem:[%s1 + $0x11c] sm:$0xf]
    %v1533 = vld [vmem:[%s1 + $0x120] sm:$0xf]
    %v1534 = vld [vmem:[%s1 + $0x124] sm:$0xf]
    %v1535 = vld [vmem:[%s1 + $0x128] sm:$0xf]
    %v1536 = vld [vmem:[%s1 + $0x12c] sm:$0xf]
    %v1537 = vld [vmem:[%s1 + $0x130] sm:$0xf]
    %v1538 = vld [vmem:[%s1 + $0x134] sm:$0xf]
    %v1539 = vld [vmem:[%s1 + $0x138] sm:$0xf]
    %v1540 = vld [vmem:[%s1 + $0x13c] sm:$0xf]
    %v1541 = vld [vmem:[%s1 + $0x140] sm:$0xf]
    %v1542 = vld [vmem:[%s1 + $0x144] sm:$0xf]
    %v1543 = vld [vmem:[%s1 + $0x148] sm:$0xf]
    %v1544 = vld [vmem:[%s1 + $0x14c] sm:$0xf]
    %v1545 = vld [vmem:[%s1 + $0x150] sm:$0xf]
    %v1546 = vld [vmem:[%s1 + $0x154] sm:$0xf]
    %v1547 = vld [vmem:[%s1 + $0x158] sm:$0xf]
    %v1548 = vld [vmem:[%s1 + $0x15c] sm:$0xf]
    %v1549 = vld [vmem:[%s1 + $0x160] sm:$0xf]
    %v1550 = vld [vmem:[%s1 + $0x164] sm:$0xf]
    %v1551 = vld [vmem:[%s1 + $0x168] sm:$0xf]
    %v1552 = vld [vmem:[%s1 + $0x16c] sm:$0xf]
    %v1553 = vld [vmem:[%s1 + $0x170] sm:$0xf]
    %v1554 = vld [vmem:[%s1 + $0x174] sm:$0xf]
    %v1555 = vld [vmem:[%s1 + $0x178] sm:$0xf]
    %v1556 = vld [vmem:[%s1 + $0x17c] sm:$0xf]
    %v1557 = vld [vmem:[%s1 + $0x180] sm:$0xf]
    %v1558 = vld [vmem:[%s1 + $0x184] sm:$0xf]
    %v1559 = vld [vmem:[%s1 + $0x188] sm:$0xf]
    %v1560 = vld [vmem:[%s1 + $0x18c] sm:$0xf]
    %v1561 = vld [vmem:[%s1 + $0x190] sm:$0xf]
    %v1562 = vld [vmem:[%s1 + $0x194] sm:$0xf]
    %v1563 = vld [vmem:[%s1 + $0x198] sm:$0xf]
    %v1564 = vld [vmem:[%s1 + $0x19c] sm:$0xf]
    %v1565 = vld [vmem:[%s1 + $0x1a0] sm:$0xf]
    %v1566 = vld [vmem:[%s1 + $0x1a4] sm:$0xf]
    %v1567 = vld [vmem:[%s1 + $0x1a8] sm:$0xf]
    %v1568 = vld [vmem:[%s1 + $0x1ac] sm:$0xf]
    %v1569 = vld [vmem:[%s1 + $0x1b0] sm:$0xf]
    %v1570 = vld [vmem:[%s1 + $0x1b4] sm:$0xf]
    %v1571 = vld [vmem:[%s1 + $0x1b8] sm:$0xf]
    %v1572 = vld [vmem:[%s1 + $0x1bc] sm:$0xf]
    %v1573 = vld [vmem:[%s1 + $0x1c0] sm:$0xf]
    %v1574 = vld [vmem:[%s1 + $0x1c4] sm:$0xf]
    %v1575 = vld [vmem:[%s1 + $0x1c8] sm:$0xf]
    %v1576 = vld [vmem:[%s1 + $0x1cc] sm:$0xf]
    %v1577 = vld [vmem:[%s1 + $0x1d0] sm:$0xf]
    %v1578 = vld [vmem:[%s1 + $0x1d4] sm:$0xf]
    %v1579 = vld [vmem:[%s1 + $0x1d8] sm:$0xf]
    %v1580 = vld [vmem:[%s1 + $0x1dc] sm:$0xf]
    %v1581 = vld [vmem:[%s1 + $0x1e0] sm:$0xf]
    %v1582 = vld [vmem:[%s1 + $0x1e4] sm:$0xf]
    %v1583 = vld [vmem:[%s1 + $0x1e8] sm:$0xf]
    %v1584 = vld [vmem:[%s1 + $0x1ec] sm:$0xf]
    %v1585 = vld [vmem:[%s1 + $0x1f0] sm:$0xf]
    %v1586 = vld [vmem:[%s1 + $0x1f4] sm:$0xf]
    %v1587 = vld [vmem:[%s1 + $0x1f8] sm:$0xf]
    %v1588 = vld [vmem:[%s1 + $0x1fc] sm:$0xf]
    %v1589 = vld [vmem:[%s1 + $0x200] sm:$0xf]
    %v1590 = vld [vmem:[%s1 + $0x204] sm:$0xf]
    %v1591 = vld [vmem:[%s1 + $0x208] sm:$0xf]
    %v1592 = vld [vmem:[%s1 + $0x20c] sm:$0xf]
    %v1593 = vld [vmem:[%s1 + $0x210] sm:$0xf]
    %v1594 = vld [vmem:[%s1 + $0x214] sm:$0xf]
    %v1595 = vld [vmem:[%s1 + $0x218] sm:$0xf]
    %v1596 = vld [vmem:[%s1 + $0x21c] sm:$0xf]
    %v1597 = vld [vmem:[%s1 + $0x220] sm:$0xf]
    %v1598 = vld [vmem:[%s1 + $0x224] sm:$0xf]
    %v1599 = vld [vmem:[%s1 + $0x228] sm:$0xf]
    %v1600 = vld [vmem:[%s1 + $0x22c] sm:$0xf]
    %v1601 = vld [vmem:[%s1 + $0x230] sm:$0xf]
    %v1602 = vld [vmem:[%s1 + $0x234] sm:$0xf]
    %v1603 = vld [vmem:[%s1 + $0x238] sm:$0xf]
    %v1604 = vld [vmem:[%s1 + $0x23c] sm:$0xf]
    %v1749 = vunpack.c.l.b16 %v1461
    %v1750 = vunpack.c.l.b16 %v1462
    %v1751 = vunpack.c.l.b16 %v1463
    %v1752 = vunpack.c.l.b16 %v1464
    %v1753 = vunpack.c.l.b16 %v1465
    %v1754 = vunpack.c.l.b16 %v1466
    %v1755 = vunpack.c.l.b16 %v1467
    %v1756 = vunpack.c.l.b16 %v1468
    %v1757 = vunpack.c.l.b16 %v1469
    %v1758 = vunpack.c.l.b16 %v1470
    %v1759 = vunpack.c.l.b16 %v1471
    %v1760 = vunpack.c.l.b16 %v1472
    %v1761 = vunpack.c.l.b16 %v1473
    %v1762 = vunpack.c.l.b16 %v1474
    %v1763 = vunpack.c.l.b16 %v1475
    %v1764 = vunpack.c.l.b16 %v1476
    %v1765 = vunpack.c.l.b16 %v1477
    %v1766 = vunpack.c.l.b16 %v1478
    %v1767 = vunpack.c.l.b16 %v1479
    %v1768 = vunpack.c.l.b16 %v1480
    %v1769 = vunpack.c.l.b16 %v1481
    %v1770 = vunpack.c.l.b16 %v1482
    %v1771 = vunpack.c.l.b16 %v1483
    %v1772 = vunpack.c.l.b16 %v1484
    %v1773 = vunpack.c.l.b16 %v1485
    %v1774 = vunpack.c.l.b16 %v1486
    %v1775 = vunpack.c.l.b16 %v1487
    %v1776 = vunpack.c.l.b16 %v1488
    %v1777 = vunpack.c.l.b16 %v1489
    %v1778 = vunpack.c.l.b16 %v1490
    %v1779 = vunpack.c.l.b16 %v1491
    %v1780 = vunpack.c.l.b16 %v1492
    %v1781 = vunpack.c.l.b16 %v1493
    %v1782 = vunpack.c.l.b16 %v1494
    %v1783 = vunpack.c.l.b16 %v1495
    %v1784 = vunpack.c.l.b16 %v1496
    %v1785 = vunpack.c.l.b16 %v1497
    %v1786 = vunpack.c.l.b16 %v1498
    %v1787 = vunpack.c.l.b16 %v1499
    %v1788 = vunpack.c.l.b16 %v1500
    %v1789 = vunpack.c.l.b16 %v1501
    %v1790 = vunpack.c.l.b16 %v1502
    %v1791 = vunpack.c.l.b16 %v1503
    %v1792 = vunpack.c.l.b16 %v1504
    %v1793 = vunpack.c.l.b16 %v1505
    %v1794 = vunpack.c.l.b16 %v1506
    %v1795 = vunpack.c.l.b16 %v1507
    %v1796 = vunpack.c.l.b16 %v1508
    %v1797 = vunpack.c.l.b16 %v1509
    %v1798 = vunpack.c.l.b16 %v1510
    %v1799 = vunpack.c.l.b16 %v1511
    %v1800 = vunpack.c.l.b16 %v1512
    %v1801 = vunpack.c.l.b16 %v1513
    %v1802 = vunpack.c.l.b16 %v1514
    %v1803 = vunpack.c.l.b16 %v1515
    %v1804 = vunpack.c.l.b16 %v1516
    %v1805 = vunpack.c.l.b16 %v1517
    %v1806 = vunpack.c.l.b16 %v1518
    %v1807 = vunpack.c.l.b16 %v1519
    %v1808 = vunpack.c.l.b16 %v1520
    %v1809 = vunpack.c.l.b16 %v1521
    %v1810 = vunpack.c.l.b16 %v1522
    %v1811 = vunpack.c.l.b16 %v1523
    %v1812 = vunpack.c.l.b16 %v1524
    %v1813 = vunpack.c.l.b16 %v1525
    %v1814 = vunpack.c.l.b16 %v1526
    %v1815 = vunpack.c.l.b16 %v1527
    %v1816 = vunpack.c.l.b16 %v1528
    %v1817 = vunpack.c.l.b16 %v1529
    %v1818 = vunpack.c.l.b16 %v1530
    %v1819 = vunpack.c.l.b16 %v1531
    %v1820 = vunpack.c.l.b16 %v1532
    %v1821 = vunpack.c.l.b16 %v1533
    %v1822 = vunpack.c.l.b16 %v1534
    %v1823 = vunpack.c.l.b16 %v1535
    %v1824 = vunpack.c.l.b16 %v1536
    %v1825 = vunpack.c.l.b16 %v1537
    %v1826 = vunpack.c.l.b16 %v1538
    %v1827 = vunpack.c.l.b16 %v1539
    %v1828 = vunpack.c.l.b16 %v1540
    %v1829 = vunpack.c.l.b16 %v1541
    %v1830 = vunpack.c.l.b16 %v1542
    %v1831 = vunpack.c.l.b16 %v1543
    %v1832 = vunpack.c.l.b16 %v1544
    %v1833 = vunpack.c.l.b16 %v1545
    %v1834 = vunpack.c.l.b16 %v1546
    %v1835 = vunpack.c.l.b16 %v1547
    %v1836 = vunpack.c.l.b16 %v1548
    %v1837 = vunpack.c.l.b16 %v1549
    %v1838 = vunpack.c.l.b16 %v1550
    %v1839 = vunpack.c.l.b16 %v1551
    %v1840 = vunpack.c.l.b16 %v1552
    %v1841 = vunpack.c.l.b16 %v1553
    %v1842 = vunpack.c.l.b16 %v1554
    %v1843 = vunpack.c.l.b16 %v1555
    %v1844 = vunpack.c.l.b16 %v1556
    %v1845 = vunpack.c.l.b16 %v1557
    %v1846 = vunpack.c.l.b16 %v1558
    %v1847 = vunpack.c.l.b16 %v1559
    %v1848 = vunpack.c.l.b16 %v1560
    %v1849 = vunpack.c.l.b16 %v1561
    %v1850 = vunpack.c.l.b16 %v1562
    %v1851 = vunpack.c.l.b16 %v1563
    %v1852 = vunpack.c.l.b16 %v1564
    %v1853 = vunpack.c.l.b16 %v1565
    %v1854 = vunpack.c.l.b16 %v1566
    %v1855 = vunpack.c.l.b16 %v1567
    %v1856 = vunpack.c.l.b16 %v1568
    %v1857 = vunpack.c.l.b16 %v1569
    %v1858 = vunpack.c.l.b16 %v1570
    %v1859 = vunpack.c.l.b16 %v1571
    %v1860 = vunpack.c.l.b16 %v1572
    %v1861 = vunpack.c.l.b16 %v1573
    %v1862 = vunpack.c.l.b16 %v1574
    %v1863 = vunpack.c.l.b16 %v1575
    %v1864 = vunpack.c.l.b16 %v1576
    %v1865 = vunpack.c.l.b16 %v1577
    %v1866 = vunpack.c.l.b16 %v1578
    %v1867 = vunpack.c.l.b16 %v1579
    %v1868 = vunpack.c.l.b16 %v1580
    %v1869 = vunpack.c.l.b16 %v1581
    %v1870 = vunpack.c.l.b16 %v1582
    %v1871 = vunpack.c.l.b16 %v1583
    %v1872 = vunpack.c.l.b16 %v1584
    %v1873 = vunpack.c.l.b16 %v1585
    %v1874 = vunpack.c.l.b16 %v1586
    %v1875 = vunpack.c.l.b16 %v1587
    %v1876 = vunpack.c.l.b16 %v1588
    %v1877 = vunpack.c.l.b16 %v1589
    %v1878 = vunpack.c.l.b16 %v1590
    %v1879 = vunpack.c.l.b16 %v1591
    %v1880 = vunpack.c.l.b16 %v1592
    %v1881 = vunpack.c.l.b16 %v1593
    %v1882 = vunpack.c.l.b16 %v1594
    %v1883 = vunpack.c.l.b16 %v1595
    %v1884 = vunpack.c.l.b16 %v1596
    %v1885 = vunpack.c.l.b16 %v1597
    %v1886 = vunpack.c.l.b16 %v1598
    %v1887 = vunpack.c.l.b16 %v1599
    %v1888 = vunpack.c.l.b16 %v1600
    %v1889 = vunpack.c.l.b16 %v1601
    %v1890 = vunpack.c.l.b16 %v1602
    %v1891 = vunpack.c.l.b16 %v1603
    %v1892 = vunpack.c.l.b16 %v1604
    %v1893 = vpack.c.b16 %v1750, %v1749
    %v1894 = vpack.c.b16 %v1752, %v1751
    %v1895 = vpack.c.b16 %v1754, %v1753
    %v1896 = vpack.c.b16 %v1756, %v1755
    %v1897 = vpack.c.b16 %v1758, %v1757
    %v1898 = vpack.c.b16 %v1760, %v1759
    %v1899 = vpack.c.b16 %v1762, %v1761
    %v1900 = vpack.c.b16 %v1764, %v1763
    %v1901 = vpack.c.b16 %v1766, %v1765
    %v1902 = vpack.c.b16 %v1768, %v1767
    %v1903 = vpack.c.b16 %v1770, %v1769
    %v1904 = vpack.c.b16 %v1772, %v1771
    %v1905 = vpack.c.b16 %v1774, %v1773
    %v1906 = vpack.c.b16 %v1776, %v1775
    %v1907 = vpack.c.b16 %v1778, %v1777
    %v1908 = vpack.c.b16 %v1780, %v1779
    %v1909 = vpack.c.b16 %v1782, %v1781
    %v1910 = vpack.c.b16 %v1784, %v1783
    %v1911 = vpack.c.b16 %v1786, %v1785
    %v1912 = vpack.c.b16 %v1788, %v1787
    %v1913 = vpack.c.b16 %v1790, %v1789
    %v1914 = vpack.c.b16 %v1792, %v1791
    %v1915 = vpack.c.b16 %v1794, %v1793
    %v1916 = vpack.c.b16 %v1796, %v1795
    %v1917 = vpack.c.b16 %v1798, %v1797
    %v1918 = vpack.c.b16 %v1800, %v1799
    %v1919 = vpack.c.b16 %v1802, %v1801
    %v1920 = vpack.c.b16 %v1804, %v1803
    %v1921 = vpack.c.b16 %v1806, %v1805
    %v1922 = vpack.c.b16 %v1808, %v1807
    %v1923 = vpack.c.b16 %v1810, %v1809
    %v1924 = vpack.c.b16 %v1812, %v1811
    %v1925 = vpack.c.b16 %v1814, %v1813
    %v1926 = vpack.c.b16 %v1816, %v1815
    %v1927 = vpack.c.b16 %v1818, %v1817
    %v1928 = vpack.c.b16 %v1820, %v1819
    %v1929 = vpack.c.b16 %v1822, %v1821
    %v1930 = vpack.c.b16 %v1824, %v1823
    %v1931 = vpack.c.b16 %v1826, %v1825
    %v1932 = vpack.c.b16 %v1828, %v1827
    %v1933 = vpack.c.b16 %v1830, %v1829
    %v1934 = vpack.c.b16 %v1832, %v1831
    %v1935 = vpack.c.b16 %v1834, %v1833
    %v1936 = vpack.c.b16 %v1836, %v1835
    %v1937 = vpack.c.b16 %v1838, %v1837
    %v1938 = vpack.c.b16 %v1840, %v1839
    %v1939 = vpack.c.b16 %v1842, %v1841
    %v1940 = vpack.c.b16 %v1844, %v1843
    %v1941 = vpack.c.b16 %v1846, %v1845
    %v1942 = vpack.c.b16 %v1848, %v1847
    %v1943 = vpack.c.b16 %v1850, %v1849
    %v1944 = vpack.c.b16 %v1852, %v1851
    %v1945 = vpack.c.b16 %v1854, %v1853
    %v1946 = vpack.c.b16 %v1856, %v1855
    %v1947 = vpack.c.b16 %v1858, %v1857
    %v1948 = vpack.c.b16 %v1860, %v1859
    %v1949 = vpack.c.b16 %v1862, %v1861
    %v1950 = vpack.c.b16 %v1864, %v1863
    %v1951 = vpack.c.b16 %v1866, %v1865
    %v1952 = vpack.c.b16 %v1868, %v1867
    %v1953 = vpack.c.b16 %v1870, %v1869
    %v1954 = vpack.c.b16 %v1872, %v1871
    %v1955 = vpack.c.b16 %v1874, %v1873
    %v1956 = vpack.c.b16 %v1876, %v1875
    %v1957 = vpack.c.b16 %v1878, %v1877
    %v1958 = vpack.c.b16 %v1880, %v1879
    %v1959 = vpack.c.b16 %v1882, %v1881
    %v1960 = vpack.c.b16 %v1884, %v1883
    %v1961 = vpack.c.b16 %v1886, %v1885
    %v1962 = vpack.c.b16 %v1888, %v1887
    %v1963 = vpack.c.b16 %v1890, %v1889
    %v1964 = vpack.c.b16 %v1892, %v1891
    %2037 = vmatprep.subr.bf16.mxu0 0
    %2038 = vmatpush1.bf16.msra.mxu0 %v1893
    %2039 = vmatprep.subr.bf16.mxu0 0
    %2040 = vmatpush1.bf16.msra.mxu0 %v1894
    %2041 = vmatprep.subr.bf16.mxu0 0
    %2042 = vmatpush1.bf16.msra.mxu0 %v1895
    %2043 = vmatprep.subr.bf16.mxu0 0
    %2044 = vmatpush1.bf16.msra.mxu0 %v1896
    %2045 = vmatprep.subr.bf16.mxu0 0
    %2046 = vmatpush1.bf16.msra.mxu0 %v1897
    %2047 = vmatprep.subr.bf16.mxu0 0
    %2048 = vmatpush1.bf16.msra.mxu0 %v1898
    %2049 = vmatprep.subr.bf16.mxu0 0
    %2050 = vmatpush1.bf16.msra.mxu0 %v1899
    %2051 = vmatprep.subr.bf16.mxu0 0
    %2052 = vmatpush1.bf16.msra.mxu0 %v1900
    %2053 = vmatprep.subr.bf16.mxu0 0
    %2054 = vmatpush1.bf16.msra.mxu0 %v1901
    %2055 = vmatprep.subr.bf16.mxu0 0
    %2056 = vmatpush1.bf16.msra.mxu0 %v1902
    %2057 = vmatprep.subr.bf16.mxu0 0
    %2058 = vmatpush1.bf16.msra.mxu0 %v1903
    %2059 = vmatprep.subr.bf16.mxu0 0
    %2060 = vmatpush1.bf16.msra.mxu0 %v1904
    %2061 = vmatprep.subr.bf16.mxu0 0
    %2062 = vmatpush1.bf16.msra.mxu0 %v1905
    %2063 = vmatprep.subr.bf16.mxu0 0
    %2064 = vmatpush1.bf16.msra.mxu0 %v1906
    %2065 = vmatprep.subr.bf16.mxu0 0
    %2066 = vmatpush1.bf16.msra.mxu0 %v1907
    %2067 = vmatprep.subr.bf16.mxu0 0
    %2068 = vmatpush1.bf16.msra.mxu0 %v1908
    %2069 = vmatprep.mubr.bf16.mxu0 %v1174
    %2070 = vmatmul.mubr.bf16.gmra.mrb[0].mxu0 %v1173
    %v2071 = vpop.f32.mrb[0].mxu0
    %v2072 = vadd.f32 0.0, %v2071
    %v2073 = vpop.f32.mrb[0].mxu0
    %v2074 = vpop.f32.mrb[0].mxu0
    %v2075 = vadd.f32 0.0, %v2074
    %v2076 = vpop.f32.mrb[0].mxu0
    %2077 = vmatprep.mubr.bf16.mxu0 %v1183
    %2078 = vmatmul.mubr.bf16.gmra.mrb[0].mxu0 %v1182
    %v2079 = vpop.f32.mrb[0].mxu0
    %v2080 = vadd.f32 0.0, %v2079
    %v2081 = vpop.f32.mrb[0].mxu0
    %v2082 = vpop.f32.mrb[0].mxu0
    %v2083 = vadd.f32 0.0, %v2082
    %v2084 = vpop.f32.mrb[0].mxu0
    %2085 = vmatprep.mubr.bf16.mxu0 %v1192
    %2086 = vmatmul.mubr.bf16.gmra.mrb[0].mxu0 %v1191
    %v2087 = vpop.f32.mrb[0].mxu0
    %v2088 = vadd.f32 0.0, %v2087
    %v2089 = vpop.f32.mrb[0].mxu0
    %v2090 = vpop.f32.mrb[0].mxu0
    %v2091 = vadd.f32 0.0, %v2090
    %v2092 = vpop.f32.mrb[0].mxu0
    %2093 = vmatprep.mubr.bf16.mxu0 %v1201
    %2094 = vmatmul.mubr.bf16.gmra.mrb[0].mxu0 %v1200
    %v2095 = vpop.f32.mrb[0].mxu0
    %v2096 = vadd.f32 0.0, %v2095
    %v2097 = vpop.f32.mrb[0].mxu0
    %v2098 = vpop.f32.mrb[0].mxu0
    %v2099 = vadd.f32 0.0, %v2098
    %v2100 = vpop.f32.mrb[0].mxu0
    %2101 = vmatprep.mubr.bf16.mxu0 %v1210
    %2102 = vmatmul.mubr.bf16.gmra.mrb[0].mxu0 %v1209
    %v2103 = vpop.f32.mrb[0].mxu0
    %v2104 = vadd.f32 0.0, %v2103
    %v2105 = vpop.f32.mrb[0].mxu0
    %v2106 = vpop.f32.mrb[0].mxu0
    %v2107 = vadd.f32 0.0, %v2106
    %v2108 = vpop.f32.mrb[0].mxu0
    %2109 = vmatprep.mubr.bf16.mxu0 %v1219
    %2110 = vmatmul.mubr.bf16.gmra.mrb[0].mxu0 %v1218
    %v2111 = vpop.f32.mrb[0].mxu0
    %v2112 = vadd.f32 0.0, %v2111
    %v2113 = vpop.f32.mrb[0].mxu0
    %v2114 = vpop.f32.mrb[0].mxu0
    %v2115 = vadd.f32 0.0, %v2114
    %v2116 = vpop.f32.mrb[0].mxu0
    %2117 = vmatprep.mubr.bf16.mxu0 %v1228
    %2118 = vmatmul.mubr.bf16.gmra.mrb[0].mxu0 %v1227
    %v2119 = vpop.f32.mrb[0].mxu0
    %v2120 = vadd.f32 0.0, %v2119
    %v2121 = vpop.f32.mrb[0].mxu0
    %v2122 = vpop.f32.mrb[0].mxu0
    %v2123 = vadd.f32 0.0, %v2122
    %v2124 = vpop.f32.mrb[0].mxu0
    %2125 = vmatprep.mubr.bf16.mxu0 %v1237
    %2126 = vmatmul.mubr.bf16.gmra.mrb[0].mxu0 %v1236
    %v2127 = vpop.f32.mrb[0].mxu0
    %v2128 = vadd.f32 0.0, %v2127
    %v2129 = vpop.f32.mrb[0].mxu0
    %v2130 = vpop.f32.mrb[0].mxu0
    %v2131 = vadd.f32 0.0, %v2130
    %v2132 = vpop.f32.mrb[0].mxu0
    %2133 = vmatprep.mubr.bf16.mxu0 %v1246
    %2134 = vmatmul.mubr.bf16.gmra.mrb[0].mxu0 %v1245
    %v2135 = vpop.f32.mrb[0].mxu0
    %v2136 = vadd.f32 0.0, %v2135
    %v2137 = vpop.f32.mrb[0].mxu0
    %v2138 = vpop.f32.mrb[0].mxu0
    %v2139 = vadd.f32 0.0, %v2138
    %v2140 = vpop.f32.mrb[0].mxu0
    %2141 = vmatprep.mubr.bf16.mxu0 %v1255
    %2142 = vmatmul.mubr.bf16.gmra.mrb[0].mxu0 %v1254
    %v2143 = vpop.f32.mrb[0].mxu0
    %v2144 = vadd.f32 0.0, %v2143
    %v2145 = vpop.f32.mrb[0].mxu0
    %v2146 = vpop.f32.mrb[0].mxu0
    %v2147 = vadd.f32 0.0, %v2146
    %v2148 = vpop.f32.mrb[0].mxu0
    %2149 = vmatprep.mubr.bf16.mxu0 %v1264
    %2150 = vmatmul.mubr.bf16.gmra.mrb[0].mxu0 %v1263
    %v2151 = vpop.f32.mrb[0].mxu0
    %v2152 = vadd.f32 0.0, %v2151
    %v2153 = vpop.f32.mrb[0].mxu0
    %v2154 = vpop.f32.mrb[0].mxu0
    %v2155 = vadd.f32 0.0, %v2154
    %v2156 = vpop.f32.mrb[0].mxu0
    %2157 = vmatprep.mubr.bf16.mxu0 %v1273
    %2158 = vmatmul.mubr.bf16.gmra.mrb[0].mxu0 %v1272
    %v2159 = vpop.f32.mrb[0].mxu0
    %v2160 = vadd.f32 0.0, %v2159
    %v2161 = vpop.f32.mrb[0].mxu0
    %v2162 = vpop.f32.mrb[0].mxu0
    %v2163 = vadd.f32 0.0, %v2162
    %v2164 = vpop.f32.mrb[0].mxu0
    %2165 = vmatprep.mubr.bf16.mxu0 %v1282
    %2166 = vmatmul.mubr.bf16.gmra.mrb[0].mxu0 %v1281
    %v2167 = vpop.f32.mrb[0].mxu0
    %v2168 = vadd.f32 0.0, %v2167
    %v2169 = vpop.f32.mrb[0].mxu0
    %v2170 = vpop.f32.mrb[0].mxu0
    %v2171 = vadd.f32 0.0, %v2170
    %v2172 = vpop.f32.mrb[0].mxu0
    %2173 = vmatprep.mubr.bf16.mxu0 %v1291
    %2174 = vmatmul.mubr.bf16.gmra.mrb[0].mxu0 %v1290
    %v2175 = vpop.f32.mrb[0].mxu0
    %v2176 = vadd.f32 0.0, %v2175
    %v2177 = vpop.f32.mrb[0].mxu0
    %v2178 = vpop.f32.mrb[0].mxu0
    %v2179 = vadd.f32 0.0, %v2178
    %v2180 = vpop.f32.mrb[0].mxu0
    %2181 = vmatprep.mubr.bf16.mxu0 %v1300
    %2182 = vmatmul.mubr.bf16.gmra.mrb[0].mxu0 %v1299
    %v2183 = vpop.f32.mrb[0].mxu0
    %v2184 = vadd.f32 0.0, %v2183
    %v2185 = vpop.f32.mrb[0].mxu0
    %v2186 = vpop.f32.mrb[0].mxu0
    %v2187 = vadd.f32 0.0, %v2186
    %v2188 = vpop.f32.mrb[0].mxu0
    %2189 = vmatprep.mubr.bf16.mxu0 %v1309
    %2190 = vmatmul.mubr.bf16.gmra.mrb[0].mxu0 %v1308
    %v2191 = vpop.f32.mrb[0].mxu0
    %v2192 = vadd.f32 0.0, %v2191
    %v2193 = vpop.f32.mrb[0].mxu0
    %v2194 = vpop.f32.mrb[0].mxu0
    %v2195 = vadd.f32 0.0, %v2194
    %v2196 = vpop.f32.mrb[0].mxu0
    %2197 = vmatprep.mubr.bf16.mxu0 %v1318
    %2198 = vmatmul.mubr.bf16.gmra.mrb[0].mxu0 %v1317
    %v2199 = vpop.f32.mrb[0].mxu0
    %v2200 = vadd.f32 0.0, %v2199
    %v2201 = vpop.f32.mrb[0].mxu0
    %v2202 = vpop.f32.mrb[0].mxu0
    %v2203 = vadd.f32 0.0, %v2202
    %v2204 = vpop.f32.mrb[0].mxu0
    %2205 = vmatprep.mubr.bf16.mxu0 %v1327
    %2206 = vmatmul.mubr.bf16.gmra.mrb[0].mxu0 %v1326
    %v2207 = vpop.f32.mrb[0].mxu0
    %v2208 = vadd.f32 0.0, %v2207
    %v2209 = vpop.f32.mrb[0].mxu0
    %v2210 = vpop.f32.mrb[0].mxu0
    %v2211 = vadd.f32 0.0, %v2210
    %v2212 = vpop.f32.mrb[0].mxu0
    %2213 = vmatprep.mubr.bf16.mxu0 %v1336
    %2214 = vmatmul.mubr.bf16.gmra.mrb[0].mxu0 %v1335
    %v2215 = vpop.f32.mrb[0].mxu0
    %v2216 = vadd.f32 0.0, %v2215
    %v2217 = vpop.f32.mrb[0].mxu0
    %v2218 = vpop.f32.mrb[0].mxu0
    %v2219 = vadd.f32 0.0, %v2218
    %v2220 = vpop.f32.mrb[0].mxu0
    %2221 = vmatprep.mubr.bf16.mxu0 %v1345
    %2222 = vmatmul.mubr.bf16.gmra.mrb[0].mxu0 %v1344
    %v2223 = vpop.f32.mrb[0].mxu0
    %v2224 = vadd.f32 0.0, %v2223
    %v2225 = vpop.f32.mrb[0].mxu0
    %v2226 = vpop.f32.mrb[0].mxu0
    %v2227 = vadd.f32 0.0, %v2226
    %v2228 = vpop.f32.mrb[0].mxu0
    %2229 = vmatprep.mubr.bf16.mxu0 %v1354
    %2230 = vmatmul.mubr.bf16.gmra.mrb[0].mxu0 %v1353
    %v2231 = vpop.f32.mrb[0].mxu0
    %v2232 = vadd.f32 0.0, %v2231
    %v2233 = vpop.f32.mrb[0].mxu0
    %v2234 = vpop.f32.mrb[0].mxu0
    %v2235 = vadd.f32 0.0, %v2234
    %v2236 = vpop.f32.mrb[0].mxu0
    %2237 = vmatprep.mubr.bf16.mxu0 %v1363
    %2238 = vmatmul.mubr.bf16.gmra.mrb[0].mxu0 %v1362
    %v2239 = vpop.f32.mrb[0].mxu0
    %v2240 = vadd.f32 0.0, %v2239
    %v2241 = vpop.f32.mrb[0].mxu0
    %v2242 = vpop.f32.mrb[0].mxu0
    %v2243 = vadd.f32 0.0, %v2242
    %v2244 = vpop.f32.mrb[0].mxu0
    %2245 = vmatprep.mubr.bf16.mxu0 %v1372
    %2246 = vmatmul.mubr.bf16.gmra.mrb[0].mxu0 %v1371
    %v2247 = vpop.f32.mrb[0].mxu0
    %v2248 = vadd.f32 0.0, %v2247
    %v2249 = vpop.f32.mrb[0].mxu0
    %v2250 = vpop.f32.mrb[0].mxu0
    %v2251 = vadd.f32 0.0, %v2250
    %v2252 = vpop.f32.mrb[0].mxu0
    %2253 = vmatprep.mubr.bf16.mxu0 %v1381
    %2254 = vmatmul.mubr.bf16.gmra.mrb[0].mxu0 %v1380
    %v2255 = vpop.f32.mrb[0].mxu0
    %v2256 = vadd.f32 0.0, %v2255
    %v2257 = vpop.f32.mrb[0].mxu0
    %v2258 = vpop.f32.mrb[0].mxu0
    %v2259 = vadd.f32 0.0, %v2258
    %v2260 = vpop.f32.mrb[0].mxu0
    %2261 = vmatprep.mubr.bf16.mxu0 %v1390
    %2262 = vmatmul.mubr.bf16.gmra.mrb[0].mxu0 %v1389
    %v2263 = vpop.f32.mrb[0].mxu0
    %v2264 = vadd.f32 0.0, %v2263
    %v2265 = vpop.f32.mrb[0].mxu0
    %v2266 = vpop.f32.mrb[0].mxu0
    %v2267 = vadd.f32 0.0, %v2266
    %v2268 = vpop.f32.mrb[0].mxu0
    %2269 = vmatprep.mubr.bf16.mxu0 %v1399
    %2270 = vmatmul.mubr.bf16.gmra.mrb[0].mxu0 %v1398
    %v2271 = vpop.f32.mrb[0].mxu0
    %v2272 = vadd.f32 0.0, %v2271
    %v2273 = vpop.f32.mrb[0].mxu0
    %v2274 = vpop.f32.mrb[0].mxu0
    %v2275 = vadd.f32 0.0, %v2274
    %v2276 = vpop.f32.mrb[0].mxu0
    %2277 = vmatprep.mubr.bf16.mxu0 %v1408
    %2278 = vmatmul.mubr.bf16.gmra.mrb[0].mxu0 %v1407
    %v2279 = vpop.f32.mrb[0].mxu0
    %v2280 = vadd.f32 0.0, %v2279
    %v2281 = vpop.f32.mrb[0].mxu0
    %v2282 = vpop.f32.mrb[0].mxu0
    %v2283 = vadd.f32 0.0, %v2282
    %v2284 = vpop.f32.mrb[0].mxu0
    %2285 = vmatprep.mubr.bf16.mxu0 %v1417
    %2286 = vmatmul.mubr.bf16.gmra.mrb[0].mxu0 %v1416
    %v2287 = vpop.f32.mrb[0].mxu0
    %v2288 = vadd.f32 0.0, %v2287
    %v2289 = vpop.f32.mrb[0].mxu0
    %v2290 = vpop.f32.mrb[0].mxu0
    %v2291 = vadd.f32 0.0, %v2290
    %v2292 = vpop.f32.mrb[0].mxu0
    %2293 = vmatprep.mubr.bf16.mxu0 %v1426
    %2294 = vmatmul.mubr.bf16.gmra.mrb[0].mxu0 %v1425
    %v2295 = vpop.f32.mrb[0].mxu0
    %v2296 = vadd.f32 0.0, %v2295
    %v2297 = vpop.f32.mrb[0].mxu0
    %v2298 = vpop.f32.mrb[0].mxu0
    %v2299 = vadd.f32 0.0, %v2298
    %v2300 = vpop.f32.mrb[0].mxu0
    %2301 = vmatprep.mubr.bf16.mxu0 %v1435
    %2302 = vmatmul.mubr.bf16.gmra.mrb[0].mxu0 %v1434
    %v2303 = vpop.f32.mrb[0].mxu0
    %v2304 = vadd.f32 0.0, %v2303
    %v2305 = vpop.f32.mrb[0].mxu0
    %v2306 = vpop.f32.mrb[0].mxu0
    %v2307 = vadd.f32 0.0, %v2306
    %v2308 = vpop.f32.mrb[0].mxu0
    %2309 = vmatprep.mubr.bf16.mxu0 %v1444
    %2310 = vmatmul.mubr.bf16.gmra.mrb[0].mxu0 %v1443
    %v2311 = vpop.f32.mrb[0].mxu0
    %v2312 = vadd.f32 0.0, %v2311
    %v2313 = vpop.f32.mrb[0].mxu0
    %v2314 = vpop.f32.mrb[0].mxu0
    %v2315 = vadd.f32 0.0, %v2314
    %v2316 = vpop.f32.mrb[0].mxu0
    %2317 = vmatprep.mubr.bf16.mxu0 %v1453
    %2318 = vmatmul.mubr.bf16.gmra.mrb[0].mxu0 %v1452
    %v2319 = vpop.f32.mrb[0].mxu0
    %v2320 = vadd.f32 0.0, %v2319
    %v2321 = vpop.f32.mrb[0].mxu0
    %v2322 = vpop.f32.mrb[0].mxu0
    %v2323 = vadd.f32 0.0, %v2322
    %v2324 = vpop.f32.mrb[0].mxu0
    %2325 = vdwg.mxu0
    %2326 = vmatprep.subr.bf16.mxu0 0
    %2327 = vmatpush1.bf16.msra.mxu0 %v1909
    %2328 = vmatprep.subr.bf16.mxu0 0
    %2329 = vmatpush1.bf16.msra.mxu0 %v1910
    %2330 = vmatprep.subr.bf16.mxu0 0
    %2331 = vmatpush1.bf16.msra.mxu0 %v1911
    %2332 = vmatprep.subr.bf16.mxu0 0
    %2333 = vmatpush1.bf16.msra.mxu0 %v1912
    %2334 = vmatprep.subr.bf16.mxu0 0
    %2335 = vmatpush1.bf16.msra.mxu0 %v1913
    %2336 = vmatprep.subr.bf16.mxu0 0
    %2337 = vmatpush1.bf16.msra.mxu0 %v1914
    %2338 = vmatprep.subr.bf16.mxu0 0
    %2339 = vmatpush1.bf16.msra.mxu0 %v1915
    %2340 = vmatprep.subr.bf16.mxu0 0
    %2341 = vmatpush1.bf16.msra.mxu0 %v1916
    %2342 = vmatprep.subr.bf16.mxu0 0
    %2343 = vmatpush1.bf16.msra.mxu0 %v1917
    %2344 = vmatprep.subr.bf16.mxu0 0
    %2345 = vmatpush1.bf16.msra.mxu0 %v1918
    %2346 = vmatprep.subr.bf16.mxu0 0
    %2347 = vmatpush1.bf16.msra.mxu0 %v1919
    %2348 = vmatprep.subr.bf16.mxu0 0
    %2349 = vmatpush1.bf16.msra.mxu0 %v1920
    %2350 = vmatprep.subr.bf16.mxu0 0
    %2351 = vmatpush1.bf16.msra.mxu0 %v1921
    %2352 = vmatprep.subr.bf16.mxu0 0
    %2353 = vmatpush1.bf16.msra.mxu0 %v1922
    %2354 = vmatprep.subr.bf16.mxu0 0
    %2355 = vmatpush1.bf16.msra.mxu0 %v1923
    %2356 = vmatprep.subr.bf16.mxu0 0
    %2357 = vmatpush1.bf16.msra.mxu0 %v1924
    %2358 = vmatprep.mubr.bf16.mxu0 %v1176
    %2359 = vmatmul.mubr.bf16.gmra.mrb[0].mxu0 %v1175
    %v2360 = vpop.f32.mrb[0].mxu0
    %v2361 = vadd.f32 %v2072, %v2360
    %v2362 = vpop.f32.mrb[0].mxu0
    %v2363 = vpop.f32.mrb[0].mxu0
    %v2364 = vadd.f32 %v2075, %v2363
    %v2365 = vpop.f32.mrb[0].mxu0
    %2366 = vmatprep.mubr.bf16.mxu0 %v1185
    %2367 = vmatmul.mubr.bf16.gmra.mrb[0].mxu0 %v1184
    %v2368 = vpop.f32.mrb[0].mxu0
    %v2369 = vadd.f32 %v2080, %v2368
    %v2370 = vpop.f32.mrb[0].mxu0
    %v2371 = vpop.f32.mrb[0].mxu0
    %v2372 = vadd.f32 %v2083, %v2371
    %v2373 = vpop.f32.mrb[0].mxu0
    %2374 = vmatprep.mubr.bf16.mxu0 %v1194
    %2375 = vmatmul.mubr.bf16.gmra.mrb[0].mxu0 %v1193
    %v2376 = vpop.f32.mrb[0].mxu0
    %v2377 = vadd.f32 %v2088, %v2376
    %v2378 = vpop.f32.mrb[0].mxu0
    %v2379 = vpop.f32.mrb[0].mxu0
    %v2380 = vadd.f32 %v2091, %v2379
    %v2381 = vpop.f32.mrb[0].mxu0
    %2382 = vmatprep.mubr.bf16.mxu0 %v1203
    %2383 = vmatmul.mubr.bf16.gmra.mrb[0].mxu0 %v1202
    %v2384 = vpop.f32.mrb[0].mxu0
    %v2385 = vadd.f32 %v2096, %v2384
    %v2386 = vpop.f32.mrb[0].mxu0
    %v2387 = vpop.f32.mrb[0].mxu0
    %v2388 = vadd.f32 %v2099, %v2387
    %v2389 = vpop.f32.mrb[0].mxu0
    %2390 = vmatprep.mubr.bf16.mxu0 %v1212
    %2391 = vmatmul.mubr.bf16.gmra.mrb[0].mxu0 %v1211
    %v2392 = vpop.f32.mrb[0].mxu0
    %v2393 = vadd.f32 %v2104, %v2392
    %v2394 = vpop.f32.mrb[0].mxu0
    %v2395 = vpop.f32.mrb[0].mxu0
    %v2396 = vadd.f32 %v2107, %v2395
    %v2397 = vpop.f32.mrb[0].mxu0
    %2398 = vmatprep.mubr.bf16.mxu0 %v1221
    %2399 = vmatmul.mubr.bf16.gmra.mrb[0].mxu0 %v1220
    %v2400 = vpop.f32.mrb[0].mxu0
    %v2401 = vadd.f32 %v2112, %v2400
    %v2402 = vpop.f32.mrb[0].mxu0
    %v2403 = vpop.f32.mrb[0].mxu0
    %v2404 = vadd.f32 %v2115, %v2403
    %v2405 = vpop.f32.mrb[0].mxu0
    %2406 = vmatprep.mubr.bf16.mxu0 %v1230
    %2407 = vmatmul.mubr.bf16.gmra.mrb[0].mxu0 %v1229
    %v2408 = vpop.f32.mrb[0].mxu0
    %v2409 = vadd.f32 %v2120, %v2408
    %v2410 = vpop.f32.mrb[0].mxu0
    %v2411 = vpop.f32.mrb[0].mxu0
    %v2412 = vadd.f32 %v2123, %v2411
    %v2413 = vpop.f32.mrb[0].mxu0
    %2414 = vmatprep.mubr.bf16.mxu0 %v1239
    %2415 = vmatmul.mubr.bf16.gmra.mrb[0].mxu0 %v1238
    %v2416 = vpop.f32.mrb[0].mxu0
    %v2417 = vadd.f32 %v2128, %v2416
    %v2418 = vpop.f32.mrb[0].mxu0
    %v2419 = vpop.f32.mrb[0].mxu0
    %v2420 = vadd.f32 %v2131, %v2419
    %v2421 = vpop.f32.mrb[0].mxu0
    %2422 = vmatprep.mubr.bf16.mxu0 %v1248
    %2423 = vmatmul.mubr.bf16.gmra.mrb[0].mxu0 %v1247
    %v2424 = vpop.f32.mrb[0].mxu0
    %v2425 = vadd.f32 %v2136, %v2424
    %v2426 = vpop.f32.mrb[0].mxu0
    %v2427 = vpop.f32.mrb[0].mxu0
    %v2428 = vadd.f32 %v2139, %v2427
    %v2429 = vpop.f32.mrb[0].mxu0
    %2430 = vmatprep.mubr.bf16.mxu0 %v1257
    %2431 = vmatmul.mubr.bf16.gmra.mrb[0].mxu0 %v1256
    %v2432 = vpop.f32.mrb[0].mxu0
    %v2433 = vadd.f32 %v2144, %v2432
    %v2434 = vpop.f32.mrb[0].mxu0
    %v2435 = vpop.f32.mrb[0].mxu0
    %v2436 = vadd.f32 %v2147, %v2435
    %v2437 = vpop.f32.mrb[0].mxu0
    %2438 = vmatprep.mubr.bf16.mxu0 %v1266
    %2439 = vmatmul.mubr.bf16.gmra.mrb[0].mxu0 %v1265
    %v2440 = vpop.f32.mrb[0].mxu0
    %v2441 = vadd.f32 %v2152, %v2440
    %v2442 = vpop.f32.mrb[0].mxu0
    %v2443 = vpop.f32.mrb[0].mxu0
    %v2444 = vadd.f32 %v2155, %v2443
    %v2445 = vpop.f32.mrb[0].mxu0
    %2446 = vmatprep.mubr.bf16.mxu0 %v1275
    %2447 = vmatmul.mubr.bf16.gmra.mrb[0].mxu0 %v1274
    %v2448 = vpop.f32.mrb[0].mxu0
    %v2449 = vadd.f32 %v2160, %v2448
    %v2450 = vpop.f32.mrb[0].mxu0
    %v2451 = vpop.f32.mrb[0].mxu0
    %v2452 = vadd.f32 %v2163, %v2451
    %v2453 = vpop.f32.mrb[0].mxu0
    %2454 = vmatprep.mubr.bf16.mxu0 %v1284
    %2455 = vmatmul.mubr.bf16.gmra.mrb[0].mxu0 %v1283
    %v2456 = vpop.f32.mrb[0].mxu0
    %v2457 = vadd.f32 %v2168, %v2456
    %v2458 = vpop.f32.mrb[0].mxu0
    %v2459 = vpop.f32.mrb[0].mxu0
    %v2460 = vadd.f32 %v2171, %v2459
    %v2461 = vpop.f32.mrb[0].mxu0
    %2462 = vmatprep.mubr.bf16.mxu0 %v1293
    %2463 = vmatmul.mubr.bf16.gmra.mrb[0].mxu0 %v1292
    %v2464 = vpop.f32.mrb[0].mxu0
    %v2465 = vadd.f32 %v2176, %v2464
    %v2466 = vpop.f32.mrb[0].mxu0
    %v2467 = vpop.f32.mrb[0].mxu0
    %v2468 = vadd.f32 %v2179, %v2467
    %v2469 = vpop.f32.mrb[0].mxu0
    %2470 = vmatprep.mubr.bf16.mxu0 %v1302
    %2471 = vmatmul.mubr.bf16.gmra.mrb[0].mxu0 %v1301
    %v2472 = vpop.f32.mrb[0].mxu0
    %v2473 = vadd.f32 %v2184, %v2472
    %v2474 = vpop.f32.mrb[0].mxu0
    %v2475 = vpop.f32.mrb[0].mxu0
    %v2476 = vadd.f32 %v2187, %v2475
    %v2477 = vpop.f32.mrb[0].mxu0
    %2478 = vmatprep.mubr.bf16.mxu0 %v1311
    %2479 = vmatmul.mubr.bf16.gmra.mrb[0].mxu0 %v1310
    %v2480 = vpop.f32.mrb[0].mxu0
    %v2481 = vadd.f32 %v2192, %v2480
    %v2482 = vpop.f32.mrb[0].mxu0
    %v2483 = vpop.f32.mrb[0].mxu0
    %v2484 = vadd.f32 %v2195, %v2483
    %v2485 = vpop.f32.mrb[0].mxu0
    %2486 = vmatprep.mubr.bf16.mxu0 %v1320
    %2487 = vmatmul.mubr.bf16.gmra.mrb[0].mxu0 %v1319
    %v2488 = vpop.f32.mrb[0].mxu0
    %v2489 = vadd.f32 %v2200, %v2488
    %v2490 = vpop.f32.mrb[0].mxu0
    %v2491 = vpop.f32.mrb[0].mxu0
    %v2492 = vadd.f32 %v2203, %v2491
    %v2493 = vpop.f32.mrb[0].mxu0
    %2494 = vmatprep.mubr.bf16.mxu0 %v1329
    %2495 = vmatmul.mubr.bf16.gmra.mrb[0].mxu0 %v1328
    %v2496 = vpop.f32.mrb[0].mxu0
    %v2497 = vadd.f32 %v2208, %v2496
    %v2498 = vpop.f32.mrb[0].mxu0
    %v2499 = vpop.f32.mrb[0].mxu0
    %v2500 = vadd.f32 %v2211, %v2499
    %v2501 = vpop.f32.mrb[0].mxu0
    %2502 = vmatprep.mubr.bf16.mxu0 %v1338
    %2503 = vmatmul.mubr.bf16.gmra.mrb[0].mxu0 %v1337
    %v2504 = vpop.f32.mrb[0].mxu0
    %v2505 = vadd.f32 %v2216, %v2504
    %v2506 = vpop.f32.mrb[0].mxu0
    %v2507 = vpop.f32.mrb[0].mxu0
    %v2508 = vadd.f32 %v2219, %v2507
    %v2509 = vpop.f32.mrb[0].mxu0
    %2510 = vmatprep.mubr.bf16.mxu0 %v1347
    %2511 = vmatmul.mubr.bf16.gmra.mrb[0].mxu0 %v1346
    %v2512 = vpop.f32.mrb[0].mxu0
    %v2513 = vadd.f32 %v2224, %v2512
    %v2514 = vpop.f32.mrb[0].mxu0
    %v2515 = vpop.f32.mrb[0].mxu0
    %v2516 = vadd.f32 %v2227, %v2515
    %v2517 = vpop.f32.mrb[0].mxu0
    %2518 = vmatprep.mubr.bf16.mxu0 %v1356
    %2519 = vmatmul.mubr.bf16.gmra.mrb[0].mxu0 %v1355
    %v2520 = vpop.f32.mrb[0].mxu0
    %v2521 = vadd.f32 %v2232, %v2520
    %v2522 = vpop.f32.mrb[0].mxu0
    %v2523 = vpop.f32.mrb[0].mxu0
    %v2524 = vadd.f32 %v2235, %v2523
    %v2525 = vpop.f32.mrb[0].mxu0
    %2526 = vmatprep.mubr.bf16.mxu0 %v1365
    %2527 = vmatmul.mubr.bf16.gmra.mrb[0].mxu0 %v1364
    %v2528 = vpop.f32.mrb[0].mxu0
    %v2529 = vadd.f32 %v2240, %v2528
    %v2530 = vpop.f32.mrb[0].mxu0
    %v2531 = vpop.f32.mrb[0].mxu0
    %v2532 = vadd.f32 %v2243, %v2531
    %v2533 = vpop.f32.mrb[0].mxu0
    %2534 = vmatprep.mubr.bf16.mxu0 %v1374
    %2535 = vmatmul.mubr.bf16.gmra.mrb[0].mxu0 %v1373
    %v2536 = vpop.f32.mrb[0].mxu0
    %v2537 = vadd.f32 %v2248, %v2536
    %v2538 = vpop.f32.mrb[0].mxu0
    %v2539 = vpop.f32.mrb[0].mxu0
    %v2540 = vadd.f32 %v2251, %v2539
    %v2541 = vpop.f32.mrb[0].mxu0
    %2542 = vmatprep.mubr.bf16.mxu0 %v1383
    %2543 = vmatmul.mubr.bf16.gmra.mrb[0].mxu0 %v1382
    %v2544 = vpop.f32.mrb[0].mxu0
    %v2545 = vadd.f32 %v2256, %v2544
    %v2546 = vpop.f32.mrb[0].mxu0
    %v2547 = vpop.f32.mrb[0].mxu0
    %v2548 = vadd.f32 %v2259, %v2547
    %v2549 = vpop.f32.mrb[0].mxu0
    %2550 = vmatprep.mubr.bf16.mxu0 %v1392
    %2551 = vmatmul.mubr.bf16.gmra.mrb[0].mxu0 %v1391
    %v2552 = vpop.f32.mrb[0].mxu0
    %v2553 = vadd.f32 %v2264, %v2552
    %v2554 = vpop.f32.mrb[0].mxu0
    %v2555 = vpop.f32.mrb[0].mxu0
    %v2556 = vadd.f32 %v2267, %v2555
    %v2557 = vpop.f32.mrb[0].mxu0
    %2558 = vmatprep.mubr.bf16.mxu0 %v1401
    %2559 = vmatmul.mubr.bf16.gmra.mrb[0].mxu0 %v1400
    %v2560 = vpop.f32.mrb[0].mxu0
    %v2561 = vadd.f32 %v2272, %v2560
    %v2562 = vpop.f32.mrb[0].mxu0
    %v2563 = vpop.f32.mrb[0].mxu0
    %v2564 = vadd.f32 %v2275, %v2563
    %v2565 = vpop.f32.mrb[0].mxu0
    %2566 = vmatprep.mubr.bf16.mxu0 %v1410
    %2567 = vmatmul.mubr.bf16.gmra.mrb[0].mxu0 %v1409
    %v2568 = vpop.f32.mrb[0].mxu0
    %v2569 = vadd.f32 %v2280, %v2568
    %v2570 = vpop.f32.mrb[0].mxu0
    %v2571 = vpop.f32.mrb[0].mxu0
    %v2572 = vadd.f32 %v2283, %v2571
    %v2573 = vpop.f32.mrb[0].mxu0
    %2574 = vmatprep.mubr.bf16.mxu0 %v1419
    %2575 = vmatmul.mubr.bf16.gmra.mrb[0].mxu0 %v1418
    %v2576 = vpop.f32.mrb[0].mxu0
    %v2577 = vadd.f32 %v2288, %v2576
    %v2578 = vpop.f32.mrb[0].mxu0
    %v2579 = vpop.f32.mrb[0].mxu0
    %v2580 = vadd.f32 %v2291, %v2579
    %v2581 = vpop.f32.mrb[0].mxu0
    %2582 = vmatprep.mubr.bf16.mxu0 %v1428
    %2583 = vmatmul.mubr.bf16.gmra.mrb[0].mxu0 %v1427
    %v2584 = vpop.f32.mrb[0].mxu0
    %v2585 = vadd.f32 %v2296, %v2584
    %v2586 = vpop.f32.mrb[0].mxu0
    %v2587 = vpop.f32.mrb[0].mxu0
    %v2588 = vadd.f32 %v2299, %v2587
    %v2589 = vpop.f32.mrb[0].mxu0
    %2590 = vmatprep.mubr.bf16.mxu0 %v1437
    %2591 = vmatmul.mubr.bf16.gmra.mrb[0].mxu0 %v1436
    %v2592 = vpop.f32.mrb[0].mxu0
    %v2593 = vadd.f32 %v2304, %v2592
    %v2594 = vpop.f32.mrb[0].mxu0
    %v2595 = vpop.f32.mrb[0].mxu0
    %v2596 = vadd.f32 %v2307, %v2595
    %v2597 = vpop.f32.mrb[0].mxu0
    %2598 = vmatprep.mubr.bf16.mxu0 %v1446
    %2599 = vmatmul.mubr.bf16.gmra.mrb[0].mxu0 %v1445
    %v2600 = vpop.f32.mrb[0].mxu0
    %v2601 = vadd.f32 %v2312, %v2600
    %v2602 = vpop.f32.mrb[0].mxu0
    %v2603 = vpop.f32.mrb[0].mxu0
    %v2604 = vadd.f32 %v2315, %v2603
    %v2605 = vpop.f32.mrb[0].mxu0
    %2606 = vmatprep.mubr.bf16.mxu0 %v1455
    %2607 = vmatmul.mubr.bf16.gmra.mrb[0].mxu0 %v1454
    %v2608 = vpop.f32.mrb[0].mxu0
    %v2609 = vadd.f32 %v2320, %v2608
    %v2610 = vpop.f32.mrb[0].mxu0
    %v2611 = vpop.f32.mrb[0].mxu0
    %v2612 = vadd.f32 %v2323, %v2611
    %v2613 = vpop.f32.mrb[0].mxu0
    %2614 = vdwg.mxu0
    %2615 = vmatprep.subr.bf16.mxu0 0
    %2616 = vmatpush1.bf16.msra.mxu0 %v1925
    %2617 = vmatprep.subr.bf16.mxu0 0
    %2618 = vmatpush1.bf16.msra.mxu0 %v1926
    %2619 = vmatprep.subr.bf16.mxu0 0
    %2620 = vmatpush1.bf16.msra.mxu0 %v1927
    %2621 = vmatprep.subr.bf16.mxu0 0
    %2622 = vmatpush1.bf16.msra.mxu0 %v1928
    %2623 = vmatprep.subr.bf16.mxu0 0
    %2624 = vmatpush1.bf16.msra.mxu0 %v1929
    %2625 = vmatprep.subr.bf16.mxu0 0
    %2626 = vmatpush1.bf16.msra.mxu0 %v1930
    %2627 = vmatprep.subr.bf16.mxu0 0
    %2628 = vmatpush1.bf16.msra.mxu0 %v1931
    %2629 = vmatprep.subr.bf16.mxu0 0
    %2630 = vmatpush1.bf16.msra.mxu0 %v1932
    %2631 = vmatprep.subr.bf16.mxu0 0
    %2632 = vmatpush1.bf16.msra.mxu0 %v1933
    %2633 = vmatprep.subr.bf16.mxu0 0
    %2634 = vmatpush1.bf16.msra.mxu0 %v1934
    %2635 = vmatprep.subr.bf16.mxu0 0
    %2636 = vmatpush1.bf16.msra.mxu0 %v1935
    %2637 = vmatprep.subr.bf16.mxu0 0
    %2638 = vmatpush1.bf16.msra.mxu0 %v1936
    %2639 = vmatprep.subr.bf16.mxu0 0
    %2640 = vmatpush1.bf16.msra.mxu0 %v1937
    %2641 = vmatprep.subr.bf16.mxu0 0
    %2642 = vmatpush1.bf16.msra.mxu0 %v1938
    %2643 = vmatprep.subr.bf16.mxu0 0
    %2644 = vmatpush1.bf16.msra.mxu0 %v1939
    %2645 = vmatprep.subr.bf16.mxu0 0
    %2646 = vmatpush1.bf16.msra.mxu0 %v1940
    %2647 = vmatprep.mubr.bf16.mxu0 %v1178
    %2648 = vmatmul.mubr.bf16.gmra.mrb[0].mxu0 %v1177
    %v2649 = vpop.f32.mrb[0].mxu0
    %v2650 = vadd.f32 %v2361, %v2649
    %v2651 = vpop.f32.mrb[0].mxu0
    %v2652 = vpop.f32.mrb[0].mxu0
    %v2653 = vadd.f32 %v2364, %v2652
    %v2654 = vpop.f32.mrb[0].mxu0
    %2655 = vmatprep.mubr.bf16.mxu0 %v1187
    %2656 = vmatmul.mubr.bf16.gmra.mrb[0].mxu0 %v1186
    %v2657 = vpop.f32.mrb[0].mxu0
    %v2658 = vadd.f32 %v2369, %v2657
    %v2659 = vpop.f32.mrb[0].mxu0
    %v2660 = vpop.f32.mrb[0].mxu0
    %v2661 = vadd.f32 %v2372, %v2660
    %v2662 = vpop.f32.mrb[0].mxu0
    %2663 = vmatprep.mubr.bf16.mxu0 %v1196
    %2664 = vmatmul.mubr.bf16.gmra.mrb[0].mxu0 %v1195
    %v2665 = vpop.f32.mrb[0].mxu0
    %v2666 = vadd.f32 %v2377, %v2665
    %v2667 = vpop.f32.mrb[0].mxu0
    %v2668 = vpop.f32.mrb[0].mxu0
    %v2669 = vadd.f32 %v2380, %v2668
    %v2670 = vpop.f32.mrb[0].mxu0
    %2671 = vmatprep.mubr.bf16.mxu0 %v1205
    %2672 = vmatmul.mubr.bf16.gmra.mrb[0].mxu0 %v1204
    %v2673 = vpop.f32.mrb[0].mxu0
    %v2674 = vadd.f32 %v2385, %v2673
    %v2675 = vpop.f32.mrb[0].mxu0
    %v2676 = vpop.f32.mrb[0].mxu0
    %v2677 = vadd.f32 %v2388, %v2676
    %v2678 = vpop.f32.mrb[0].mxu0
    %2679 = vmatprep.mubr.bf16.mxu0 %v1214
    %2680 = vmatmul.mubr.bf16.gmra.mrb[0].mxu0 %v1213
    %v2681 = vpop.f32.mrb[0].mxu0
    %v2682 = vadd.f32 %v2393, %v2681
    %v2683 = vpop.f32.mrb[0].mxu0
    %v2684 = vpop.f32.mrb[0].mxu0
    %v2685 = vadd.f32 %v2396, %v2684
    %v2686 = vpop.f32.mrb[0].mxu0
    %2687 = vmatprep.mubr.bf16.mxu0 %v1223
    %2688 = vmatmul.mubr.bf16.gmra.mrb[0].mxu0 %v1222
    %v2689 = vpop.f32.mrb[0].mxu0
    %v2690 = vadd.f32 %v2401, %v2689
    %v2691 = vpop.f32.mrb[0].mxu0
    %v2692 = vpop.f32.mrb[0].mxu0
    %v2693 = vadd.f32 %v2404, %v2692
    %v2694 = vpop.f32.mrb[0].mxu0
    %2695 = vmatprep.mubr.bf16.mxu0 %v1232
    %2696 = vmatmul.mubr.bf16.gmra.mrb[0].mxu0 %v1231
    %v2697 = vpop.f32.mrb[0].mxu0
    %v2698 = vadd.f32 %v2409, %v2697
    %v2699 = vpop.f32.mrb[0].mxu0
    %v2700 = vpop.f32.mrb[0].mxu0
    %v2701 = vadd.f32 %v2412, %v2700
    %v2702 = vpop.f32.mrb[0].mxu0
    %2703 = vmatprep.mubr.bf16.mxu0 %v1241
    %2704 = vmatmul.mubr.bf16.gmra.mrb[0].mxu0 %v1240
    %v2705 = vpop.f32.mrb[0].mxu0
    %v2706 = vadd.f32 %v2417, %v2705
    %v2707 = vpop.f32.mrb[0].mxu0
    %v2708 = vpop.f32.mrb[0].mxu0
    %v2709 = vadd.f32 %v2420, %v2708
    %v2710 = vpop.f32.mrb[0].mxu0
    %2711 = vmatprep.mubr.bf16.mxu0 %v1250
    %2712 = vmatmul.mubr.bf16.gmra.mrb[0].mxu0 %v1249
    %v2713 = vpop.f32.mrb[0].mxu0
    %v2714 = vadd.f32 %v2425, %v2713
    %v2715 = vpop.f32.mrb[0].mxu0
    %v2716 = vpop.f32.mrb[0].mxu0
    %v2717 = vadd.f32 %v2428, %v2716
    %v2718 = vpop.f32.mrb[0].mxu0
    %2719 = vmatprep.mubr.bf16.mxu0 %v1259
    %2720 = vmatmul.mubr.bf16.gmra.mrb[0].mxu0 %v1258
    %v2721 = vpop.f32.mrb[0].mxu0
    %v2722 = vadd.f32 %v2433, %v2721
    %v2723 = vpop.f32.mrb[0].mxu0
    %v2724 = vpop.f32.mrb[0].mxu0
    %v2725 = vadd.f32 %v2436, %v2724
    %v2726 = vpop.f32.mrb[0].mxu0
    %2727 = vmatprep.mubr.bf16.mxu0 %v1268
    %2728 = vmatmul.mubr.bf16.gmra.mrb[0].mxu0 %v1267
    %v2729 = vpop.f32.mrb[0].mxu0
    %v2730 = vadd.f32 %v2441, %v2729
    %v2731 = vpop.f32.mrb[0].mxu0
    %v2732 = vpop.f32.mrb[0].mxu0
    %v2733 = vadd.f32 %v2444, %v2732
    %v2734 = vpop.f32.mrb[0].mxu0
    %2735 = vmatprep.mubr.bf16.mxu0 %v1277
    %2736 = vmatmul.mubr.bf16.gmra.mrb[0].mxu0 %v1276
    %v2737 = vpop.f32.mrb[0].mxu0
    %v2738 = vadd.f32 %v2449, %v2737
    %v2739 = vpop.f32.mrb[0].mxu0
    %v2740 = vpop.f32.mrb[0].mxu0
    %v2741 = vadd.f32 %v2452, %v2740
    %v2742 = vpop.f32.mrb[0].mxu0
    %2743 = vmatprep.mubr.bf16.mxu0 %v1286
    %2744 = vmatmul.mubr.bf16.gmra.mrb[0].mxu0 %v1285
    %v2745 = vpop.f32.mrb[0].mxu0
    %v2746 = vadd.f32 %v2457, %v2745
    %v2747 = vpop.f32.mrb[0].mxu0
    %v2748 = vpop.f32.mrb[0].mxu0
    %v2749 = vadd.f32 %v2460, %v2748
    %v2750 = vpop.f32.mrb[0].mxu0
    %2751 = vmatprep.mubr.bf16.mxu0 %v1295
    %2752 = vmatmul.mubr.bf16.gmra.mrb[0].mxu0 %v1294
    %v2753 = vpop.f32.mrb[0].mxu0
    %v2754 = vadd.f32 %v2465, %v2753
    %v2755 = vpop.f32.mrb[0].mxu0
    %v2756 = vpop.f32.mrb[0].mxu0
    %v2757 = vadd.f32 %v2468, %v2756
    %v2758 = vpop.f32.mrb[0].mxu0
    %2759 = vmatprep.mubr.bf16.mxu0 %v1304
    %2760 = vmatmul.mubr.bf16.gmra.mrb[0].mxu0 %v1303
    %v2761 = vpop.f32.mrb[0].mxu0
    %v2762 = vadd.f32 %v2473, %v2761
    %v2763 = vpop.f32.mrb[0].mxu0
    %v2764 = vpop.f32.mrb[0].mxu0
    %v2765 = vadd.f32 %v2476, %v2764
    %v2766 = vpop.f32.mrb[0].mxu0
    %2767 = vmatprep.mubr.bf16.mxu0 %v1313
    %2768 = vmatmul.mubr.bf16.gmra.mrb[0].mxu0 %v1312
    %v2769 = vpop.f32.mrb[0].mxu0
    %v2770 = vadd.f32 %v2481, %v2769
    %v2771 = vpop.f32.mrb[0].mxu0
    %v2772 = vpop.f32.mrb[0].mxu0
    %v2773 = vadd.f32 %v2484, %v2772
    %v2774 = vpop.f32.mrb[0].mxu0
    %2775 = vmatprep.mubr.bf16.mxu0 %v1322
    %2776 = vmatmul.mubr.bf16.gmra.mrb[0].mxu0 %v1321
    %v2777 = vpop.f32.mrb[0].mxu0
    %v2778 = vadd.f32 %v2489, %v2777
    %v2779 = vpop.f32.mrb[0].mxu0
    %v2780 = vpop.f32.mrb[0].mxu0
    %v2781 = vadd.f32 %v2492, %v2780
    %v2782 = vpop.f32.mrb[0].mxu0
    %2783 = vmatprep.mubr.bf16.mxu0 %v1331
    %2784 = vmatmul.mubr.bf16.gmra.mrb[0].mxu0 %v1330
    %v2785 = vpop.f32.mrb[0].mxu0
    %v2786 = vadd.f32 %v2497, %v2785
    %v2787 = vpop.f32.mrb[0].mxu0
    %v2788 = vpop.f32.mrb[0].mxu0
    %v2789 = vadd.f32 %v2500, %v2788
    %v2790 = vpop.f32.mrb[0].mxu0
    %2791 = vmatprep.mubr.bf16.mxu0 %v1340
    %2792 = vmatmul.mubr.bf16.gmra.mrb[0].mxu0 %v1339
    %v2793 = vpop.f32.mrb[0].mxu0
    %v2794 = vadd.f32 %v2505, %v2793
    %v2795 = vpop.f32.mrb[0].mxu0
    %v2796 = vpop.f32.mrb[0].mxu0
    %v2797 = vadd.f32 %v2508, %v2796
    %v2798 = vpop.f32.mrb[0].mxu0
    %2799 = vmatprep.mubr.bf16.mxu0 %v1349
    %2800 = vmatmul.mubr.bf16.gmra.mrb[0].mxu0 %v1348
    %v2801 = vpop.f32.mrb[0].mxu0
    %v2802 = vadd.f32 %v2513, %v2801
    %v2803 = vpop.f32.mrb[0].mxu0
    %v2804 = vpop.f32.mrb[0].mxu0
    %v2805 = vadd.f32 %v2516, %v2804
    %v2806 = vpop.f32.mrb[0].mxu0
    %2807 = vmatprep.mubr.bf16.mxu0 %v1358
    %2808 = vmatmul.mubr.bf16.gmra.mrb[0].mxu0 %v1357
    %v2809 = vpop.f32.mrb[0].mxu0
    %v2810 = vadd.f32 %v2521, %v2809
    %v2811 = vpop.f32.mrb[0].mxu0
    %v2812 = vpop.f32.mrb[0].mxu0
    %v2813 = vadd.f32 %v2524, %v2812
    %v2814 = vpop.f32.mrb[0].mxu0
    %2815 = vmatprep.mubr.bf16.mxu0 %v1367
    %2816 = vmatmul.mubr.bf16.gmra.mrb[0].mxu0 %v1366
    %v2817 = vpop.f32.mrb[0].mxu0
    %v2818 = vadd.f32 %v2529, %v2817
    %v2819 = vpop.f32.mrb[0].mxu0
    %v2820 = vpop.f32.mrb[0].mxu0
    %v2821 = vadd.f32 %v2532, %v2820
    %v2822 = vpop.f32.mrb[0].mxu0
    %2823 = vmatprep.mubr.bf16.mxu0 %v1376
    %2824 = vmatmul.mubr.bf16.gmra.mrb[0].mxu0 %v1375
    %v2825 = vpop.f32.mrb[0].mxu0
    %v2826 = vadd.f32 %v2537, %v2825
    %v2827 = vpop.f32.mrb[0].mxu0
    %v2828 = vpop.f32.mrb[0].mxu0
    %v2829 = vadd.f32 %v2540, %v2828
    %v2830 = vpop.f32.mrb[0].mxu0
    %2831 = vmatprep.mubr.bf16.mxu0 %v1385
    %2832 = vmatmul.mubr.bf16.gmra.mrb[0].mxu0 %v1384
    %v2833 = vpop.f32.mrb[0].mxu0
    %v2834 = vadd.f32 %v2545, %v2833
    %v2835 = vpop.f32.mrb[0].mxu0
    %v2836 = vpop.f32.mrb[0].mxu0
    %v2837 = vadd.f32 %v2548, %v2836
    %v2838 = vpop.f32.mrb[0].mxu0
    %2839 = vmatprep.mubr.bf16.mxu0 %v1394
    %2840 = vmatmul.mubr.bf16.gmra.mrb[0].mxu0 %v1393
    %v2841 = vpop.f32.mrb[0].mxu0
    %v2842 = vadd.f32 %v2553, %v2841
    %v2843 = vpop.f32.mrb[0].mxu0
    %v2844 = vpop.f32.mrb[0].mxu0
    %v2845 = vadd.f32 %v2556, %v2844
    %v2846 = vpop.f32.mrb[0].mxu0
    %2847 = vmatprep.mubr.bf16.mxu0 %v1403
    %2848 = vmatmul.mubr.bf16.gmra.mrb[0].mxu0 %v1402
    %v2849 = vpop.f32.mrb[0].mxu0
    %v2850 = vadd.f32 %v2561, %v2849
    %v2851 = vpop.f32.mrb[0].mxu0
    %v2852 = vpop.f32.mrb[0].mxu0
    %v2853 = vadd.f32 %v2564, %v2852
    %v2854 = vpop.f32.mrb[0].mxu0
    %2855 = vmatprep.mubr.bf16.mxu0 %v1412
    %2856 = vmatmul.mubr.bf16.gmra.mrb[0].mxu0 %v1411
    %v2857 = vpop.f32.mrb[0].mxu0
    %v2858 = vadd.f32 %v2569, %v2857
    %v2859 = vpop.f32.mrb[0].mxu0
    %v2860 = vpop.f32.mrb[0].mxu0
    %v2861 = vadd.f32 %v2572, %v2860
    %v2862 = vpop.f32.mrb[0].mxu0
    %2863 = vmatprep.mubr.bf16.mxu0 %v1421
    %2864 = vmatmul.mubr.bf16.gmra.mrb[0].mxu0 %v1420
    %v2865 = vpop.f32.mrb[0].mxu0
    %v2866 = vadd.f32 %v2577, %v2865
    %v2867 = vpop.f32.mrb[0].mxu0
    %v2868 = vpop.f32.mrb[0].mxu0
    %v2869 = vadd.f32 %v2580, %v2868
    %v2870 = vpop.f32.mrb[0].mxu0
    %2871 = vmatprep.mubr.bf16.mxu0 %v1430
    %2872 = vmatmul.mubr.bf16.gmra.mrb[0].mxu0 %v1429
    %v2873 = vpop.f32.mrb[0].mxu0
    %v2874 = vadd.f32 %v2585, %v2873
    %v2875 = vpop.f32.mrb[0].mxu0
    %v2876 = vpop.f32.mrb[0].mxu0
    %v2877 = vadd.f32 %v2588, %v2876
    %v2878 = vpop.f32.mrb[0].mxu0
    %2879 = vmatprep.mubr.bf16.mxu0 %v1439
    %2880 = vmatmul.mubr.bf16.gmra.mrb[0].mxu0 %v1438
    %v2881 = vpop.f32.mrb[0].mxu0
    %v2882 = vadd.f32 %v2593, %v2881
    %v2883 = vpop.f32.mrb[0].mxu0
    %v2884 = vpop.f32.mrb[0].mxu0
    %v2885 = vadd.f32 %v2596, %v2884
    %v2886 = vpop.f32.mrb[0].mxu0
    %2887 = vmatprep.mubr.bf16.mxu0 %v1448
    %2888 = vmatmul.mubr.bf16.gmra.mrb[0].mxu0 %v1447
    %v2889 = vpop.f32.mrb[0].mxu0
    %v2890 = vadd.f32 %v2601, %v2889
    %v2891 = vpop.f32.mrb[0].mxu0
    %v2892 = vpop.f32.mrb[0].mxu0
    %v2893 = vadd.f32 %v2604, %v2892
    %v2894 = vpop.f32.mrb[0].mxu0
    %2895 = vmatprep.mubr.bf16.mxu0 %v1457
    %2896 = vmatmul.mubr.bf16.gmra.mrb[0].mxu0 %v1456
    %v2897 = vpop.f32.mrb[0].mxu0
    %v2898 = vadd.f32 %v2609, %v2897
    %v2899 = vpop.f32.mrb[0].mxu0
    %v2900 = vpop.f32.mrb[0].mxu0
    %v2901 = vadd.f32 %v2612, %v2900
    %v2902 = vpop.f32.mrb[0].mxu0
    %2903 = vdwg.mxu0
    %2904 = vmatprep.subr.bf16.mxu0 0
    %2905 = vmatpush1.bf16.msra.mxu0 %v1941
    %2906 = vmatprep.subr.bf16.mxu0 0
    %2907 = vmatpush1.bf16.msra.mxu0 %v1942
    %2908 = vmatprep.subr.bf16.mxu0 0
    %2909 = vmatpush1.bf16.msra.mxu0 %v1943
    %2910 = vmatprep.subr.bf16.mxu0 0
    %2911 = vmatpush1.bf16.msra.mxu0 %v1944
    %2912 = vmatprep.subr.bf16.mxu0 0
    %2913 = vmatpush1.bf16.msra.mxu0 %v1945
    %2914 = vmatprep.subr.bf16.mxu0 0
    %2915 = vmatpush1.bf16.msra.mxu0 %v1946
    %2916 = vmatprep.subr.bf16.mxu0 0
    %2917 = vmatpush1.bf16.msra.mxu0 %v1947
    %2918 = vmatprep.subr.bf16.mxu0 0
    %2919 = vmatpush1.bf16.msra.mxu0 %v1948
    %2920 = vmatprep.subr.bf16.mxu0 0
    %2921 = vmatpush1.bf16.msra.mxu0 %v1949
    %2922 = vmatprep.subr.bf16.mxu0 0
    %2923 = vmatpush1.bf16.msra.mxu0 %v1950
    %2924 = vmatprep.subr.bf16.mxu0 0
    %2925 = vmatpush1.bf16.msra.mxu0 %v1951
    %2926 = vmatprep.subr.bf16.mxu0 0
    %2927 = vmatpush1.bf16.msra.mxu0 %v1952
    %2928 = vmatprep.subr.bf16.mxu0 0
    %2929 = vmatpush1.bf16.msra.mxu0 %v1953
    %2930 = vmatprep.subr.bf16.mxu0 0
    %2931 = vmatpush1.bf16.msra.mxu0 %v1954
    %2932 = vmatprep.subr.bf16.mxu0 0
    %2933 = vmatpush1.bf16.msra.mxu0 %v1955
    %2934 = vmatprep.subr.bf16.mxu0 0
    %2935 = vmatpush1.bf16.msra.mxu0 %v1956
    %2936 = vmatprep.mubr.bf16.mxu0 %v1180
    %2937 = vmatmul.mubr.bf16.gmra.mrb[0].mxu0 %v1179
    %v2938 = vpop.f32.mrb[0].mxu0
    %v2939 = vadd.f32 %v2650, %v2938
    %v2940 = vpop.f32.mrb[0].mxu0
    %v2941 = vpop.f32.mrb[0].mxu0
    %v2942 = vadd.f32 %v2653, %v2941
    %v2943 = vpop.f32.mrb[0].mxu0
    %2944 = vmatprep.mubr.bf16.mxu0 %v1189
    %2945 = vmatmul.mubr.bf16.gmra.mrb[0].mxu0 %v1188
    %v2946 = vpop.f32.mrb[0].mxu0
    %v2947 = vadd.f32 %v2658, %v2946
    %v2948 = vpop.f32.mrb[0].mxu0
    %v2949 = vpop.f32.mrb[0].mxu0
    %v2950 = vadd.f32 %v2661, %v2949
    %v2951 = vpop.f32.mrb[0].mxu0
    %2952 = vmatprep.mubr.bf16.mxu0 %v1198
    %2953 = vmatmul.mubr.bf16.gmra.mrb[0].mxu0 %v1197
    %v2954 = vpop.f32.mrb[0].mxu0
    %v2955 = vadd.f32 %v2666, %v2954
    %v2956 = vpop.f32.mrb[0].mxu0
    %v2957 = vpop.f32.mrb[0].mxu0
    %v2958 = vadd.f32 %v2669, %v2957
    %v2959 = vpop.f32.mrb[0].mxu0
    %2960 = vmatprep.mubr.bf16.mxu0 %v1207
    %2961 = vmatmul.mubr.bf16.gmra.mrb[0].mxu0 %v1206
    %v2962 = vpop.f32.mrb[0].mxu0
    %v2963 = vadd.f32 %v2674, %v2962
    %v2964 = vpop.f32.mrb[0].mxu0
    %v2965 = vpop.f32.mrb[0].mxu0
    %v2966 = vadd.f32 %v2677, %v2965
    %v2967 = vpop.f32.mrb[0].mxu0
    %2968 = vmatprep.mubr.bf16.mxu0 %v1216
    %2969 = vmatmul.mubr.bf16.gmra.mrb[0].mxu0 %v1215
    %v2970 = vpop.f32.mrb[0].mxu0
    %v2971 = vadd.f32 %v2682, %v2970
    %v2972 = vpop.f32.mrb[0].mxu0
    %v2973 = vpop.f32.mrb[0].mxu0
    %v2974 = vadd.f32 %v2685, %v2973
    %v2975 = vpop.f32.mrb[0].mxu0
    %2976 = vmatprep.mubr.bf16.mxu0 %v1225
    %2977 = vmatmul.mubr.bf16.gmra.mrb[0].mxu0 %v1224
    %v2978 = vpop.f32.mrb[0].mxu0
    %v2979 = vadd.f32 %v2690, %v2978
    %v2980 = vpop.f32.mrb[0].mxu0
    %v2981 = vpop.f32.mrb[0].mxu0
    %v2982 = vadd.f32 %v2693, %v2981
    %v2983 = vpop.f32.mrb[0].mxu0
    %2984 = vmatprep.mubr.bf16.mxu0 %v1234
    %2985 = vmatmul.mubr.bf16.gmra.mrb[0].mxu0 %v1233
    %v2986 = vpop.f32.mrb[0].mxu0
    %v2987 = vadd.f32 %v2698, %v2986
    %v2988 = vpop.f32.mrb[0].mxu0
    %v2989 = vpop.f32.mrb[0].mxu0
    %v2990 = vadd.f32 %v2701, %v2989
    %v2991 = vpop.f32.mrb[0].mxu0
    %2992 = vmatprep.mubr.bf16.mxu0 %v1243
    %2993 = vmatmul.mubr.bf16.gmra.mrb[0].mxu0 %v1242
    %v2994 = vpop.f32.mrb[0].mxu0
    %v2995 = vadd.f32 %v2706, %v2994
    %v2996 = vpop.f32.mrb[0].mxu0
    %v2997 = vpop.f32.mrb[0].mxu0
    %v2998 = vadd.f32 %v2709, %v2997
    %v2999 = vpop.f32.mrb[0].mxu0
    %3000 = vmatprep.mubr.bf16.mxu0 %v1252
    %3001 = vmatmul.mubr.bf16.gmra.mrb[0].mxu0 %v1251
    %v3002 = vpop.f32.mrb[0].mxu0
    %v3003 = vadd.f32 %v2714, %v3002
    %v3004 = vpop.f32.mrb[0].mxu0
    %v3005 = vpop.f32.mrb[0].mxu0
    %v3006 = vadd.f32 %v2717, %v3005
    %v3007 = vpop.f32.mrb[0].mxu0
    %3008 = vmatprep.mubr.bf16.mxu0 %v1261
    %3009 = vmatmul.mubr.bf16.gmra.mrb[0].mxu0 %v1260
    %v3010 = vpop.f32.mrb[0].mxu0
    %v3011 = vadd.f32 %v2722, %v3010
    %v3012 = vpop.f32.mrb[0].mxu0
    %v3013 = vpop.f32.mrb[0].mxu0
    %v3014 = vadd.f32 %v2725, %v3013
    %v3015 = vpop.f32.mrb[0].mxu0
    %3016 = vmatprep.mubr.bf16.mxu0 %v1270
    %3017 = vmatmul.mubr.bf16.gmra.mrb[0].mxu0 %v1269
    %v3018 = vpop.f32.mrb[0].mxu0
    %v3019 = vadd.f32 %v2730, %v3018
    %v3020 = vpop.f32.mrb[0].mxu0
    %v3021 = vpop.f32.mrb[0].mxu0
    %v3022 = vadd.f32 %v2733, %v3021
    %v3023 = vpop.f32.mrb[0].mxu0
    %3024 = vmatprep.mubr.bf16.mxu0 %v1279
    %3025 = vmatmul.mubr.bf16.gmra.mrb[0].mxu0 %v1278
    %v3026 = vpop.f32.mrb[0].mxu0
    %v3027 = vadd.f32 %v2738, %v3026
    %v3028 = vpop.f32.mrb[0].mxu0
    %v3029 = vpop.f32.mrb[0].mxu0
    %v3030 = vadd.f32 %v2741, %v3029
    %v3031 = vpop.f32.mrb[0].mxu0
    %3032 = vmatprep.mubr.bf16.mxu0 %v1288
    %3033 = vmatmul.mubr.bf16.gmra.mrb[0].mxu0 %v1287
    %v3034 = vpop.f32.mrb[0].mxu0
    %v3035 = vadd.f32 %v2746, %v3034
    %v3036 = vpop.f32.mrb[0].mxu0
    %v3037 = vpop.f32.mrb[0].mxu0
    %v3038 = vadd.f32 %v2749, %v3037
    %v3039 = vpop.f32.mrb[0].mxu0
    %3040 = vmatprep.mubr.bf16.mxu0 %v1297
    %3041 = vmatmul.mubr.bf16.gmra.mrb[0].mxu0 %v1296
    %v3042 = vpop.f32.mrb[0].mxu0
    %v3043 = vadd.f32 %v2754, %v3042
    %v3044 = vpop.f32.mrb[0].mxu0
    %v3045 = vpop.f32.mrb[0].mxu0
    %v3046 = vadd.f32 %v2757, %v3045
    %v3047 = vpop.f32.mrb[0].mxu0
    %3048 = vmatprep.mubr.bf16.mxu0 %v1306
    %3049 = vmatmul.mubr.bf16.gmra.mrb[0].mxu0 %v1305
    %v3050 = vpop.f32.mrb[0].mxu0
    %v3051 = vadd.f32 %v2762, %v3050
    %v3052 = vpop.f32.mrb[0].mxu0
    %v3053 = vpop.f32.mrb[0].mxu0
    %v3054 = vadd.f32 %v2765, %v3053
    %v3055 = vpop.f32.mrb[0].mxu0
    %3056 = vmatprep.mubr.bf16.mxu0 %v1315
    %3057 = vmatmul.mubr.bf16.gmra.mrb[0].mxu0 %v1314
    %v3058 = vpop.f32.mrb[0].mxu0
    %v3059 = vadd.f32 %v2770, %v3058
    %v3060 = vpop.f32.mrb[0].mxu0
    %v3061 = vpop.f32.mrb[0].mxu0
    %v3062 = vadd.f32 %v2773, %v3061
    %v3063 = vpop.f32.mrb[0].mxu0
    %3064 = vmatprep.mubr.bf16.mxu0 %v1324
    %3065 = vmatmul.mubr.bf16.gmra.mrb[0].mxu0 %v1323
    %v3066 = vpop.f32.mrb[0].mxu0
    %v3067 = vadd.f32 %v2778, %v3066
    %v3068 = vpop.f32.mrb[0].mxu0
    %v3069 = vpop.f32.mrb[0].mxu0
    %v3070 = vadd.f32 %v2781, %v3069
    %v3071 = vpop.f32.mrb[0].mxu0
    %3072 = vmatprep.mubr.bf16.mxu0 %v1333
    %3073 = vmatmul.mubr.bf16.gmra.mrb[0].mxu0 %v1332
    %v3074 = vpop.f32.mrb[0].mxu0
    %v3075 = vadd.f32 %v2786, %v3074
    %v3076 = vpop.f32.mrb[0].mxu0
    %v3077 = vpop.f32.mrb[0].mxu0
    %v3078 = vadd.f32 %v2789, %v3077
    %v3079 = vpop.f32.mrb[0].mxu0
    %3080 = vmatprep.mubr.bf16.mxu0 %v1342
    %3081 = vmatmul.mubr.bf16.gmra.mrb[0].mxu0 %v1341
    %v3082 = vpop.f32.mrb[0].mxu0
    %v3083 = vadd.f32 %v2794, %v3082
    %v3084 = vpop.f32.mrb[0].mxu0
    %v3085 = vpop.f32.mrb[0].mxu0
    %v3086 = vadd.f32 %v2797, %v3085
    %v3087 = vpop.f32.mrb[0].mxu0
    %3088 = vmatprep.mubr.bf16.mxu0 %v1351
    %3089 = vmatmul.mubr.bf16.gmra.mrb[0].mxu0 %v1350
    %v3090 = vpop.f32.mrb[0].mxu0
    %v3091 = vadd.f32 %v2802, %v3090
    %v3092 = vpop.f32.mrb[0].mxu0
    %v3093 = vpop.f32.mrb[0].mxu0
    %v3094 = vadd.f32 %v2805, %v3093
    %v3095 = vpop.f32.mrb[0].mxu0
    %3096 = vmatprep.mubr.bf16.mxu0 %v1360
    %3097 = vmatmul.mubr.bf16.gmra.mrb[0].mxu0 %v1359
    %v3098 = vpop.f32.mrb[0].mxu0
    %v3099 = vadd.f32 %v2810, %v3098
    %v3100 = vpop.f32.mrb[0].mxu0
    %v3101 = vpop.f32.mrb[0].mxu0
    %v3102 = vadd.f32 %v2813, %v3101
    %v3103 = vpop.f32.mrb[0].mxu0
    %3104 = vmatprep.mubr.bf16.mxu0 %v1369
    %3105 = vmatmul.mubr.bf16.gmra.mrb[0].mxu0 %v1368
    %v3106 = vpop.f32.mrb[0].mxu0
    %v3107 = vadd.f32 %v2818, %v3106
    %v3108 = vpop.f32.mrb[0].mxu0
    %v3109 = vpop.f32.mrb[0].mxu0
    %v3110 = vadd.f32 %v2821, %v3109
    %v3111 = vpop.f32.mrb[0].mxu0
    %3112 = vmatprep.mubr.bf16.mxu0 %v1378
    %3113 = vmatmul.mubr.bf16.gmra.mrb[0].mxu0 %v1377
    %v3114 = vpop.f32.mrb[0].mxu0
    %v3115 = vadd.f32 %v2826, %v3114
    %v3116 = vpop.f32.mrb[0].mxu0
    %v3117 = vpop.f32.mrb[0].mxu0
    %v3118 = vadd.f32 %v2829, %v3117
    %v3119 = vpop.f32.mrb[0].mxu0
    %3120 = vmatprep.mubr.bf16.mxu0 %v1387
    %3121 = vmatmul.mubr.bf16.gmra.mrb[0].mxu0 %v1386
    %v3122 = vpop.f32.mrb[0].mxu0
    %v3123 = vadd.f32 %v2834, %v3122
    %v3124 = vpop.f32.mrb[0].mxu0
    %v3125 = vpop.f32.mrb[0].mxu0
    %v3126 = vadd.f32 %v2837, %v3125
    %v3127 = vpop.f32.mrb[0].mxu0
    %3128 = vmatprep.mubr.bf16.mxu0 %v1396
    %3129 = vmatmul.mubr.bf16.gmra.mrb[0].mxu0 %v1395
    %v3130 = vpop.f32.mrb[0].mxu0
    %v3131 = vadd.f32 %v2842, %v3130
    %v3132 = vpop.f32.mrb[0].mxu0
    %v3133 = vpop.f32.mrb[0].mxu0
    %v3134 = vadd.f32 %v2845, %v3133
    %v3135 = vpop.f32.mrb[0].mxu0
    %3136 = vmatprep.mubr.bf16.mxu0 %v1405
    %3137 = vmatmul.mubr.bf16.gmra.mrb[0].mxu0 %v1404
    %v3138 = vpop.f32.mrb[0].mxu0
    %v3139 = vadd.f32 %v2850, %v3138
    %v3140 = vpop.f32.mrb[0].mxu0
    %v3141 = vpop.f32.mrb[0].mxu0
    %v3142 = vadd.f32 %v2853, %v3141
    %v3143 = vpop.f32.mrb[0].mxu0
    %3144 = vmatprep.mubr.bf16.mxu0 %v1414
    %3145 = vmatmul.mubr.bf16.gmra.mrb[0].mxu0 %v1413
    %v3146 = vpop.f32.mrb[0].mxu0
    %v3147 = vadd.f32 %v2858, %v3146
    %v3148 = vpop.f32.mrb[0].mxu0
    %v3149 = vpop.f32.mrb[0].mxu0
    %v3150 = vadd.f32 %v2861, %v3149
    %v3151 = vpop.f32.mrb[0].mxu0
    %3152 = vmatprep.mubr.bf16.mxu0 %v1423
    %3153 = vmatmul.mubr.bf16.gmra.mrb[0].mxu0 %v1422
    %v3154 = vpop.f32.mrb[0].mxu0
    %v3155 = vadd.f32 %v2866, %v3154
    %v3156 = vpop.f32.mrb[0].mxu0
    %v3157 = vpop.f32.mrb[0].mxu0
    %v3158 = vadd.f32 %v2869, %v3157
    %v3159 = vpop.f32.mrb[0].mxu0
    %3160 = vmatprep.mubr.bf16.mxu0 %v1432
    %3161 = vmatmul.mubr.bf16.gmra.mrb[0].mxu0 %v1431
    %v3162 = vpop.f32.mrb[0].mxu0
    %v3163 = vadd.f32 %v2874, %v3162
    %v3164 = vpop.f32.mrb[0].mxu0
    %v3165 = vpop.f32.mrb[0].mxu0
    %v3166 = vadd.f32 %v2877, %v3165
    %v3167 = vpop.f32.mrb[0].mxu0
    %3168 = vmatprep.mubr.bf16.mxu0 %v1441
    %3169 = vmatmul.mubr.bf16.gmra.mrb[0].mxu0 %v1440
    %v3170 = vpop.f32.mrb[0].mxu0
    %v3171 = vadd.f32 %v2882, %v3170
    %v3172 = vpop.f32.mrb[0].mxu0
    %v3173 = vpop.f32.mrb[0].mxu0
    %v3174 = vadd.f32 %v2885, %v3173
    %v3175 = vpop.f32.mrb[0].mxu0
    %3176 = vmatprep.mubr.bf16.mxu0 %v1450
    %3177 = vmatmul.mubr.bf16.gmra.mrb[0].mxu0 %v1449
    %v3178 = vpop.f32.mrb[0].mxu0
    %v3179 = vadd.f32 %v2890, %v3178
    %v3180 = vpop.f32.mrb[0].mxu0
    %v3181 = vpop.f32.mrb[0].mxu0
    %v3182 = vadd.f32 %v2893, %v3181
    %v3183 = vpop.f32.mrb[0].mxu0
    %3184 = vmatprep.mubr.bf16.mxu0 %v1459
    %3185 = vmatmul.mubr.bf16.gmra.mrb[0].mxu0 %v1458
    %v3186 = vpop.f32.mrb[0].mxu0
    %v3187 = vadd.f32 %v2898, %v3186
    %v3188 = vpop.f32.mrb[0].mxu0
    %v3189 = vpop.f32.mrb[0].mxu0
    %v3190 = vadd.f32 %v2901, %v3189
    %v3191 = vpop.f32.mrb[0].mxu0
    %3192 = vdwg.mxu0
    %3193 = vmatprep.subr.bf16.mxu0 0
    %3194 = vmatpush1.bf16.msra.mxu0 %v1957
    %3195 = vmatprep.subr.bf16.mxu0 0
    %3196 = vmatpush1.bf16.msra.mxu0 %v1958
    %3197 = vmatprep.subr.bf16.mxu0 0
    %3198 = vmatpush1.bf16.msra.mxu0 %v1959
    %3199 = vmatprep.subr.bf16.mxu0 0
    %3200 = vmatpush1.bf16.msra.mxu0 %v1960
    %3201 = vmatprep.subr.bf16.mxu0 0
    %3202 = vmatpush1.bf16.msra.mxu0 %v1961
    %3203 = vmatprep.subr.bf16.mxu0 0
    %3204 = vmatpush1.bf16.msra.mxu0 %v1962
    %3205 = vmatprep.subr.bf16.mxu0 0
    %3206 = vmatpush1.bf16.msra.mxu0 %v1963
    %3207 = vmatprep.subr.bf16.mxu0 0
    %3208 = vmatpush1.bf16.msra.mxu0 %v1964
    %3209 = vmatprep.subr.bf16.mxu0 0
    %3210 = vmatpush1.bf16.msra.mxu0 0
    %3211 = vmatprep.subr.bf16.mxu0 0
    %3212 = vmatpush1.bf16.msra.mxu0 0
    %3213 = vmatprep.subr.bf16.mxu0 0
    %3214 = vmatpush1.bf16.msra.mxu0 0
    %3215 = vmatprep.subr.bf16.mxu0 0
    %3216 = vmatpush1.bf16.msra.mxu0 0
    %3217 = vmatprep.subr.bf16.mxu0 0
    %3218 = vmatpush1.bf16.msra.mxu0 0
    %3219 = vmatprep.subr.bf16.mxu0 0
    %3220 = vmatpush1.bf16.msra.mxu0 0
    %3221 = vmatprep.subr.bf16.mxu0 0
    %3222 = vmatpush1.bf16.msra.mxu0 0
    %3223 = vmatprep.subr.bf16.mxu0 0
    %3224 = vmatpush1.bf16.msra.mxu0 0
    %3225 = vmatprep.mubr.bf16.mxu0 0
    %3226 = vmatmul.mubr.bf16.gmra.mrb[0].mxu0 %v1181
    %v3227 = vpop.f32.mrb[0].mxu0
    %v3228 = vadd.f32 %v2939, %v3227
    %v3229 = vpop.f32.mrb[0].mxu0
    %v3230 = vpop.f32.mrb[0].mxu0
    %v3231 = vadd.f32 %v2942, %v3230
    %v3232 = vpop.f32.mrb[0].mxu0
    %3233 = vmatprep.mubr.bf16.mxu0 0
    %3234 = vmatmul.mubr.bf16.gmra.mrb[0].mxu0 %v1190
    %v3235 = vpop.f32.mrb[0].mxu0
    %v3236 = vadd.f32 %v2947, %v3235
    %v3237 = vpop.f32.mrb[0].mxu0
    %v3238 = vpop.f32.mrb[0].mxu0
    %v3239 = vadd.f32 %v2950, %v3238
    %v3240 = vpop.f32.mrb[0].mxu0
    %3241 = vmatprep.mubr.bf16.mxu0 0
    %3242 = vmatmul.mubr.bf16.gmra.mrb[0].mxu0 %v1199
    %v3243 = vpop.f32.mrb[0].mxu0
    %v3244 = vadd.f32 %v2955, %v3243
    %v3245 = vpop.f32.mrb[0].mxu0
    %v3246 = vpop.f32.mrb[0].mxu0
    %v3247 = vadd.f32 %v2958, %v3246
    %v3248 = vpop.f32.mrb[0].mxu0
    %3249 = vmatprep.mubr.bf16.mxu0 0
    %3250 = vmatmul.mubr.bf16.gmra.mrb[0].mxu0 %v1208
    %v3251 = vpop.f32.mrb[0].mxu0
    %v3252 = vadd.f32 %v2963, %v3251
    %v3253 = vpop.f32.mrb[0].mxu0
    %v3254 = vpop.f32.mrb[0].mxu0
    %v3255 = vadd.f32 %v2966, %v3254
    %v3256 = vpop.f32.mrb[0].mxu0
    %3257 = vmatprep.mubr.bf16.mxu0 0
    %3258 = vmatmul.mubr.bf16.gmra.mrb[0].mxu0 %v1217
    %v3259 = vpop.f32.mrb[0].mxu0
    %v3260 = vadd.f32 %v2971, %v3259
    %v3261 = vpop.f32.mrb[0].mxu0
    %v3262 = vpop.f32.mrb[0].mxu0
    %v3263 = vadd.f32 %v2974, %v3262
    %v3264 = vpop.f32.mrb[0].mxu0
    %3265 = vmatprep.mubr.bf16.mxu0 0
    %3266 = vmatmul.mubr.bf16.gmra.mrb[0].mxu0 %v1226
    %v3267 = vpop.f32.mrb[0].mxu0
    %v3268 = vadd.f32 %v2979, %v3267
    %v3269 = vpop.f32.mrb[0].mxu0
    %v3270 = vpop.f32.mrb[0].mxu0
    %v3271 = vadd.f32 %v2982, %v3270
    %v3272 = vpop.f32.mrb[0].mxu0
    %3273 = vmatprep.mubr.bf16.mxu0 0
    %3274 = vmatmul.mubr.bf16.gmra.mrb[0].mxu0 %v1235
    %v3275 = vpop.f32.mrb[0].mxu0
    %v3276 = vadd.f32 %v2987, %v3275
    %v3277 = vpop.f32.mrb[0].mxu0
    %v3278 = vpop.f32.mrb[0].mxu0
    %v3279 = vadd.f32 %v2990, %v3278
    %v3280 = vpop.f32.mrb[0].mxu0
    %3281 = vmatprep.mubr.bf16.mxu0 0
    %3282 = vmatmul.mubr.bf16.gmra.mrb[0].mxu0 %v1244
    %v3283 = vpop.f32.mrb[0].mxu0
    %v3284 = vadd.f32 %v2995, %v3283
    %v3285 = vpop.f32.mrb[0].mxu0
    %v3286 = vpop.f32.mrb[0].mxu0
    %v3287 = vadd.f32 %v2998, %v3286
    %v3288 = vpop.f32.mrb[0].mxu0
    %3289 = vmatprep.mubr.bf16.mxu0 0
    %3290 = vmatmul.mubr.bf16.gmra.mrb[0].mxu0 %v1253
    %v3291 = vpop.f32.mrb[0].mxu0
    %v3292 = vadd.f32 %v3003, %v3291
    %v3293 = vpop.f32.mrb[0].mxu0
    %v3294 = vpop.f32.mrb[0].mxu0
    %v3295 = vadd.f32 %v3006, %v3294
    %v3296 = vpop.f32.mrb[0].mxu0
    %3297 = vmatprep.mubr.bf16.mxu0 0
    %3298 = vmatmul.mubr.bf16.gmra.mrb[0].mxu0 %v1262
    %v3299 = vpop.f32.mrb[0].mxu0
    %v3300 = vadd.f32 %v3011, %v3299
    %v3301 = vpop.f32.mrb[0].mxu0
    %v3302 = vpop.f32.mrb[0].mxu0
    %v3303 = vadd.f32 %v3014, %v3302
    %v3304 = vpop.f32.mrb[0].mxu0
    %3305 = vmatprep.mubr.bf16.mxu0 0
    %3306 = vmatmul.mubr.bf16.gmra.mrb[0].mxu0 %v1271
    %v3307 = vpop.f32.mrb[0].mxu0
    %v3308 = vadd.f32 %v3019, %v3307
    %v3309 = vpop.f32.mrb[0].mxu0
    %v3310 = vpop.f32.mrb[0].mxu0
    %v3311 = vadd.f32 %v3022, %v3310
    %v3312 = vpop.f32.mrb[0].mxu0
    %3313 = vmatprep.mubr.bf16.mxu0 0
    %3314 = vmatmul.mubr.bf16.gmra.mrb[0].mxu0 %v1280
    %v3315 = vpop.f32.mrb[0].mxu0
    %v3316 = vadd.f32 %v3027, %v3315
    %v3317 = vpop.f32.mrb[0].mxu0
    %v3318 = vpop.f32.mrb[0].mxu0
    %v3319 = vadd.f32 %v3030, %v3318
    %v3320 = vpop.f32.mrb[0].mxu0
    %3321 = vmatprep.mubr.bf16.mxu0 0
    %3322 = vmatmul.mubr.bf16.gmra.mrb[0].mxu0 %v1289
    %v3323 = vpop.f32.mrb[0].mxu0
    %v3324 = vadd.f32 %v3035, %v3323
    %v3325 = vpop.f32.mrb[0].mxu0
    %v3326 = vpop.f32.mrb[0].mxu0
    %v3327 = vadd.f32 %v3038, %v3326
    %v3328 = vpop.f32.mrb[0].mxu0
    %3329 = vmatprep.mubr.bf16.mxu0 0
    %3330 = vmatmul.mubr.bf16.gmra.mrb[0].mxu0 %v1298
    %v3331 = vpop.f32.mrb[0].mxu0
    %v3332 = vadd.f32 %v3043, %v3331
    %v3333 = vpop.f32.mrb[0].mxu0
    %v3334 = vpop.f32.mrb[0].mxu0
    %v3335 = vadd.f32 %v3046, %v3334
    %v3336 = vpop.f32.mrb[0].mxu0
    %3337 = vmatprep.mubr.bf16.mxu0 0
    %3338 = vmatmul.mubr.bf16.gmra.mrb[0].mxu0 %v1307
    %v3339 = vpop.f32.mrb[0].mxu0
    %v3340 = vadd.f32 %v3051, %v3339
    %v3341 = vpop.f32.mrb[0].mxu0
    %v3342 = vpop.f32.mrb[0].mxu0
    %v3343 = vadd.f32 %v3054, %v3342
    %v3344 = vpop.f32.mrb[0].mxu0
    %3345 = vmatprep.mubr.bf16.mxu0 0
    %3346 = vmatmul.mubr.bf16.gmra.mrb[0].mxu0 %v1316
    %v3347 = vpop.f32.mrb[0].mxu0
    %v3348 = vadd.f32 %v3059, %v3347
    %v3349 = vpop.f32.mrb[0].mxu0
    %v3350 = vpop.f32.mrb[0].mxu0
    %v3351 = vadd.f32 %v3062, %v3350
    %v3352 = vpop.f32.mrb[0].mxu0
    %3353 = vmatprep.mubr.bf16.mxu0 0
    %3354 = vmatmul.mubr.bf16.gmra.mrb[0].mxu0 %v1325
    %v3355 = vpop.f32.mrb[0].mxu0
    %v3356 = vadd.f32 %v3067, %v3355
    %v3357 = vpop.f32.mrb[0].mxu0
    %v3358 = vpop.f32.mrb[0].mxu0
    %v3359 = vadd.f32 %v3070, %v3358
    %v3360 = vpop.f32.mrb[0].mxu0
    %3361 = vmatprep.mubr.bf16.mxu0 0
    %3362 = vmatmul.mubr.bf16.gmra.mrb[0].mxu0 %v1334
    %v3363 = vpop.f32.mrb[0].mxu0
    %v3364 = vadd.f32 %v3075, %v3363
    %v3365 = vpop.f32.mrb[0].mxu0
    %v3366 = vpop.f32.mrb[0].mxu0
    %v3367 = vadd.f32 %v3078, %v3366
    %v3368 = vpop.f32.mrb[0].mxu0
    %3369 = vmatprep.mubr.bf16.mxu0 0
    %3370 = vmatmul.mubr.bf16.gmra.mrb[0].mxu0 %v1343
    %v3371 = vpop.f32.mrb[0].mxu0
    %v3372 = vadd.f32 %v3083, %v3371
    %v3373 = vpop.f32.mrb[0].mxu0
    %v3374 = vpop.f32.mrb[0].mxu0
    %v3375 = vadd.f32 %v3086, %v3374
    %v3376 = vpop.f32.mrb[0].mxu0
    %3377 = vmatprep.mubr.bf16.mxu0 0
    %3378 = vmatmul.mubr.bf16.gmra.mrb[0].mxu0 %v1352
    %v3379 = vpop.f32.mrb[0].mxu0
    %v3380 = vadd.f32 %v3091, %v3379
    %v3381 = vpop.f32.mrb[0].mxu0
    %v3382 = vpop.f32.mrb[0].mxu0
    %v3383 = vadd.f32 %v3094, %v3382
    %v3384 = vpop.f32.mrb[0].mxu0
    %3385 = vmatprep.mubr.bf16.mxu0 0
    %3386 = vmatmul.mubr.bf16.gmra.mrb[0].mxu0 %v1361
    %v3387 = vpop.f32.mrb[0].mxu0
    %v3388 = vadd.f32 %v3099, %v3387
    %v3389 = vpop.f32.mrb[0].mxu0
    %v3390 = vpop.f32.mrb[0].mxu0
    %v3391 = vadd.f32 %v3102, %v3390
    %v3392 = vpop.f32.mrb[0].mxu0
    %3393 = vmatprep.mubr.bf16.mxu0 0
    %3394 = vmatmul.mubr.bf16.gmra.mrb[0].mxu0 %v1370
    %v3395 = vpop.f32.mrb[0].mxu0
    %v3396 = vadd.f32 %v3107, %v3395
    %v3397 = vpop.f32.mrb[0].mxu0
    %v3398 = vpop.f32.mrb[0].mxu0
    %v3399 = vadd.f32 %v3110, %v3398
    %v3400 = vpop.f32.mrb[0].mxu0
    %3401 = vmatprep.mubr.bf16.mxu0 0
    %3402 = vmatmul.mubr.bf16.gmra.mrb[0].mxu0 %v1379
    %v3403 = vpop.f32.mrb[0].mxu0
    %v3404 = vadd.f32 %v3115, %v3403
    %v3405 = vpop.f32.mrb[0].mxu0
    %v3406 = vpop.f32.mrb[0].mxu0
    %v3407 = vadd.f32 %v3118, %v3406
    %v3408 = vpop.f32.mrb[0].mxu0
    %3409 = vmatprep.mubr.bf16.mxu0 0
    %3410 = vmatmul.mubr.bf16.gmra.mrb[0].mxu0 %v1388
    %v3411 = vpop.f32.mrb[0].mxu0
    %v3412 = vadd.f32 %v3123, %v3411
    %v3413 = vpop.f32.mrb[0].mxu0
    %v3414 = vpop.f32.mrb[0].mxu0
    %v3415 = vadd.f32 %v3126, %v3414
    %v3416 = vpop.f32.mrb[0].mxu0
    %3417 = vmatprep.mubr.bf16.mxu0 0
    %3418 = vmatmul.mubr.bf16.gmra.mrb[0].mxu0 %v1397
    %v3419 = vpop.f32.mrb[0].mxu0
    %v3420 = vadd.f32 %v3131, %v3419
    %v3421 = vpop.f32.mrb[0].mxu0
    %v3422 = vpop.f32.mrb[0].mxu0
    %v3423 = vadd.f32 %v3134, %v3422
    %v3424 = vpop.f32.mrb[0].mxu0
    %3425 = vmatprep.mubr.bf16.mxu0 0
    %3426 = vmatmul.mubr.bf16.gmra.mrb[0].mxu0 %v1406
    %v3427 = vpop.f32.mrb[0].mxu0
    %v3428 = vadd.f32 %v3139, %v3427
    %v3429 = vpop.f32.mrb[0].mxu0
    %v3430 = vpop.f32.mrb[0].mxu0
    %v3431 = vadd.f32 %v3142, %v3430
    %v3432 = vpop.f32.mrb[0].mxu0
    %3433 = vmatprep.mubr.bf16.mxu0 0
    %3434 = vmatmul.mubr.bf16.gmra.mrb[0].mxu0 %v1415
    %v3435 = vpop.f32.mrb[0].mxu0
    %v3436 = vadd.f32 %v3147, %v3435
    %v3437 = vpop.f32.mrb[0].mxu0
    %v3438 = vpop.f32.mrb[0].mxu0
    %v3439 = vadd.f32 %v3150, %v3438
    %v3440 = vpop.f32.mrb[0].mxu0
    %3441 = vmatprep.mubr.bf16.mxu0 0
    %3442 = vmatmul.mubr.bf16.gmra.mrb[0].mxu0 %v1424
    %v3443 = vpop.f32.mrb[0].mxu0
    %v3444 = vadd.f32 %v3155, %v3443
    %v3445 = vpop.f32.mrb[0].mxu0
    %v3446 = vpop.f32.mrb[0].mxu0
    %v3447 = vadd.f32 %v3158, %v3446
    %v3448 = vpop.f32.mrb[0].mxu0
    %3449 = vmatprep.mubr.bf16.mxu0 0
    %3450 = vmatmul.mubr.bf16.gmra.mrb[0].mxu0 %v1433
    %v3451 = vpop.f32.mrb[0].mxu0
    %v3452 = vadd.f32 %v3163, %v3451
    %v3453 = vpop.f32.mrb[0].mxu0
    %v3454 = vpop.f32.mrb[0].mxu0
    %v3455 = vadd.f32 %v3166, %v3454
    %v3456 = vpop.f32.mrb[0].mxu0
    %3457 = vmatprep.mubr.bf16.mxu0 0
    %3458 = vmatmul.mubr.bf16.gmra.mrb[0].mxu0 %v1442
    %v3459 = vpop.f32.mrb[0].mxu0
    %v3460 = vadd.f32 %v3171, %v3459
    %v3461 = vpop.f32.mrb[0].mxu0
    %v3462 = vpop.f32.mrb[0].mxu0
    %v3463 = vadd.f32 %v3174, %v3462
    %v3464 = vpop.f32.mrb[0].mxu0
    %3465 = vmatprep.mubr.bf16.mxu0 0
    %3466 = vmatmul.mubr.bf16.gmra.mrb[0].mxu0 %v1451
    %v3467 = vpop.f32.mrb[0].mxu0
    %v3468 = vadd.f32 %v3179, %v3467
    %v3469 = vpop.f32.mrb[0].mxu0
    %v3470 = vpop.f32.mrb[0].mxu0
    %v3471 = vadd.f32 %v3182, %v3470
    %v3472 = vpop.f32.mrb[0].mxu0
    %3473 = vmatprep.mubr.bf16.mxu0 0
    %3474 = vmatmul.mubr.bf16.gmra.mrb[0].mxu0 %v1460
    %v3475 = vpop.f32.mrb[0].mxu0
    %v3476 = vadd.f32 %v3187, %v3475
    %v3477 = vpop.f32.mrb[0].mxu0
    %v3478 = vpop.f32.mrb[0].mxu0
    %v3479 = vadd.f32 %v3190, %v3478
    %v3480 = vpop.f32.mrb[0].mxu0
    %3481 = vdwg.mxu0
    %v3482 = vld [vmem:[%s2] sm:$0x1]
    %v3483 = vld [vmem:[%s3] sm:$0x1]
    %v3484 = vadd.f32 %v3228, %v3231
    %v3485 = vadd.f32 %v3484, %v3236
    %v3486 = vadd.f32 %v3485, %v3239
    %v3487 = vadd.f32 %v3486, %v3244
    %v3488 = vadd.f32 %v3487, %v3247
    %v3489 = vadd.f32 %v3488, %v3252
    %v3490 = vadd.f32 %v3489, %v3255
    %v3491 = vadd.f32 %v3490, %v3260
    %v3492 = vadd.f32 %v3491, %v3263
    %v3493 = vadd.f32 %v3492, %v3268
    %v3494 = vadd.f32 %v3493, %v3271
    %v3495 = vadd.f32 %v3494, %v3276
    %v3496 = vadd.f32 %v3495, %v3279
    %v3497 = vadd.f32 %v3496, %v3284
    %v3498 = vadd.f32 %v3497, %v3287
    %v3499 = vadd.f32 %v3498, %v3292
    %v3500 = vadd.f32 %v3499, %v3295
    %v3501 = vadd.f32 %v3500, %v3300
    %v3502 = vadd.f32 %v3501, %v3303
    %v3503 = vadd.f32 %v3502, %v3308
    %v3504 = vadd.f32 %v3503, %v3311
    %v3505 = vadd.f32 %v3504, %v3316
    %v3506 = vadd.f32 %v3505, %v3319
    %v3507 = vadd.f32 %v3506, %v3324
    %v3508 = vadd.f32 %v3507, %v3327
    %v3509 = vadd.f32 %v3508, %v3332
    %v3510 = vadd.f32 %v3509, %v3335
    %v3511 = vadd.f32 %v3510, %v3340
    %v3512 = vadd.f32 %v3511, %v3343
    %v3513 = vadd.f32 %v3512, %v3348
    %v3514 = vadd.f32 %v3513, %v3351
    %v3515 = vadd.f32 %v3514, %v3356
    %v3516 = vadd.f32 %v3515, %v3359
    %v3517 = vadd.f32 %v3516, %v3364
    %v3518 = vadd.f32 %v3517, %v3367
    %v3519 = vadd.f32 %v3518, %v3372
    %v3520 = vadd.f32 %v3519, %v3375
    %v3521 = vadd.f32 %v3520, %v3380
    %v3522 = vadd.f32 %v3521, %v3383
    %v3523 = vadd.f32 %v3522, %v3388
    %v3524 = vadd.f32 %v3523, %v3391
    %v3525 = vadd.f32 %v3524, %v3396
    %v3526 = vadd.f32 %v3525, %v3399
    %v3527 = vadd.f32 %v3526, %v3404
    %v3528 = vadd.f32 %v3527, %v3407
    %v3529 = vadd.f32 %v3528, %v3412
    %v3530 = vadd.f32 %v3529, %v3415
    %v3531 = vadd.f32 %v3530, %v3420
    %v3532 = vadd.f32 %v3531, %v3423
    %v3533 = vadd.f32 %v3532, %v3428
    %v3534 = vadd.f32 %v3533, %v3431
    %v3535 = vadd.f32 %v3534, %v3436
    %v3536 = vadd.f32 %v3535, %v3439
    %v3537 = vadd.f32 %v3536, %v3444
    %v3538 = vadd.f32 %v3537, %v3447
    %v3539 = vadd.f32 %v3538, %v3452
    %v3540 = vadd.f32 %v3539, %v3455
    %v3541 = vadd.f32 %v3540, %v3460
    %v3542 = vadd.f32 %v3541, %v3463
    %v3543 = vadd.f32 %v3542, %v3468
    %v3544 = vadd.f32 %v3543, %v3471
    %v3545 = vadd.f32 %v3544, %v3476
    %v3546 = vadd.f32 %v3545, %v3479
    %v3547 = vrot.slane %v3546, 4
    %v3548 = vadd.f32 %v3546, %v3547
    %v3549 = vrot.slane %v3548, 2
    %v3550 = vadd.f32 %v3548, %v3549
    %v3551 = vrot.slane %v3550, 1
    %v3552 = vadd.f32 %v3550, %v3551
    %v3553 = vrcp.pop 512.0
    %v3554 = vmul.f32 %v3552, %v3553
    %v3555 = vsub.f32 %v3228, %v3554
    %v3556 = vsub.f32 %v3231, %v3554
    %v3557 = vsub.f32 %v3236, %v3554
    %v3558 = vsub.f32 %v3239, %v3554
    %v3559 = vsub.f32 %v3244, %v3554
    %v3560 = vsub.f32 %v3247, %v3554
    %v3561 = vsub.f32 %v3252, %v3554
    %v3562 = vsub.f32 %v3255, %v3554
    %v3563 = vsub.f32 %v3260, %v3554
    %v3564 = vsub.f32 %v3263, %v3554
    %v3565 = vsub.f32 %v3268, %v3554
    %v3566 = vsub.f32 %v3271, %v3554
    %v3567 = vsub.f32 %v3276, %v3554
    %v3568 = vsub.f32 %v3279, %v3554
    %v3569 = vsub.f32 %v3284, %v3554
    %v3570 = vsub.f32 %v3287, %v3554
    %v3571 = vsub.f32 %v3292, %v3554
    %v3572 = vsub.f32 %v3295, %v3554
    %v3573 = vsub.f32 %v3300, %v3554
    %v3574 = vsub.f32 %v3303, %v3554
    %v3575 = vsub.f32 %v3308, %v3554
    %v3576 = vsub.f32 %v3311, %v3554
    %v3577 = vsub.f32 %v3316, %v3554
    %v3578 = vsub.f32 %v3319, %v3554
    %v3579 = vsub.f32 %v3324, %v3554
    %v3580 = vsub.f32 %v3327, %v3554
    %v3581 = vsub.f32 %v3332, %v3554
    %v3582 = vsub.f32 %v3335, %v3554
    %v3583 = vsub.f32 %v3340, %v3554
    %v3584 = vsub.f32 %v3343, %v3554
    %v3585 = vsub.f32 %v3348, %v3554
    %v3586 = vsub.f32 %v3351, %v3554
    %v3587 = vsub.f32 %v3356, %v3554
    %v3588 = vsub.f32 %v3359, %v3554
    %v3589 = vsub.f32 %v3364, %v3554
    %v3590 = vsub.f32 %v3367, %v3554
    %v3591 = vsub.f32 %v3372, %v3554
    %v3592 = vsub.f32 %v3375, %v3554
    %v3593 = vsub.f32 %v3380, %v3554
    %v3594 = vsub.f32 %v3383, %v3554
    %v3595 = vsub.f32 %v3388, %v3554
    %v3596 = vsub.f32 %v3391, %v3554
    %v3597 = vsub.f32 %v3396, %v3554
    %v3598 = vsub.f32 %v3399, %v3554
    %v3599 = vsub.f32 %v3404, %v3554
    %v3600 = vsub.f32 %v3407, %v3554
    %v3601 = vsub.f32 %v3412, %v3554
    %v3602 = vsub.f32 %v3415, %v3554
    %v3603 = vsub.f32 %v3420, %v3554
    %v3604 = vsub.f32 %v3423, %v3554
    %v3605 = vsub.f32 %v3428, %v3554
    %v3606 = vsub.f32 %v3431, %v3554
    %v3607 = vsub.f32 %v3436, %v3554
    %v3608 = vsub.f32 %v3439, %v3554
    %v3609 = vsub.f32 %v3444, %v3554
    %v3610 = vsub.f32 %v3447, %v3554
    %v3611 = vsub.f32 %v3452, %v3554
    %v3612 = vsub.f32 %v3455, %v3554
    %v3613 = vsub.f32 %v3460, %v3554
    %v3614 = vsub.f32 %v3463, %v3554
    %v3615 = vsub.f32 %v3468, %v3554
    %v3616 = vsub.f32 %v3471, %v3554
    %v3617 = vsub.f32 %v3476, %v3554
    %v3618 = vsub.f32 %v3479, %v3554
    %v3619 = vmul.f32 %v3555, %v3555
    %v3620 = vmul.f32 %v3556, %v3556
    %v3621 = vmul.f32 %v3557, %v3557
    %v3622 = vmul.f32 %v3558, %v3558
    %v3623 = vmul.f32 %v3559, %v3559
    %v3624 = vmul.f32 %v3560, %v3560
    %v3625 = vmul.f32 %v3561, %v3561
    %v3626 = vmul.f32 %v3562, %v3562
    %v3627 = vmul.f32 %v3563, %v3563
    %v3628 = vmul.f32 %v3564, %v3564
    %v3629 = vmul.f32 %v3565, %v3565
    %v3630 = vmul.f32 %v3566, %v3566
    %v3631 = vmul.f32 %v3567, %v3567
    %v3632 = vmul.f32 %v3568, %v3568
    %v3633 = vmul.f32 %v3569, %v3569
    %v3634 = vmul.f32 %v3570, %v3570
    %v3635 = vmul.f32 %v3571, %v3571
    %v3636 = vmul.f32 %v3572, %v3572
    %v3637 = vmul.f32 %v3573, %v3573
    %v3638 = vmul.f32 %v3574, %v3574
    %v3639 = vmul.f32 %v3575, %v3575
    %v3640 = vmul.f32 %v3576, %v3576
    %v3641 = vmul.f32 %v3577, %v3577
    %v3642 = vmul.f32 %v3578, %v3578
    %v3643 = vmul.f32 %v3579, %v3579
    %v3644 = vmul.f32 %v3580, %v3580
    %v3645 = vmul.f32 %v3581, %v3581
    %v3646 = vmul.f32 %v3582, %v3582
    %v3647 = vmul.f32 %v3583, %v3583
    %v3648 = vmul.f32 %v3584, %v3584
    %v3649 = vmul.f32 %v3585, %v3585
    %v3650 = vmul.f32 %v3586, %v3586
    %v3651 = vmul.f32 %v3587, %v3587
    %v3652 = vmul.f32 %v3588, %v3588
    %v3653 = vmul.f32 %v3589, %v3589
    %v3654 = vmul.f32 %v3590, %v3590
    %v3655 = vmul.f32 %v3591, %v3591
    %v3656 = vmul.f32 %v3592, %v3592
    %v3657 = vmul.f32 %v3593, %v3593
    %v3658 = vmul.f32 %v3594, %v3594
    %v3659 = vmul.f32 %v3595, %v3595
    %v3660 = vmul.f32 %v3596, %v3596
    %v3661 = vmul.f32 %v3597, %v3597
    %v3662 = vmul.f32 %v3598, %v3598
    %v3663 = vmul.f32 %v3599, %v3599
    %v3664 = vmul.f32 %v3600, %v3600
    %v3665 = vmul.f32 %v3601, %v3601
    %v3666 = vmul.f32 %v3602, %v3602
    %v3667 = vmul.f32 %v3603, %v3603
    %v3668 = vmul.f32 %v3604, %v3604
    %v3669 = vmul.f32 %v3605, %v3605
    %v3670 = vmul.f32 %v3606, %v3606
    %v3671 = vmul.f32 %v3607, %v3607
    %v3672 = vmul.f32 %v3608, %v3608
    %v3673 = vmul.f32 %v3609, %v3609
    %v3674 = vmul.f32 %v3610, %v3610
    %v3675 = vmul.f32 %v3611, %v3611
    %v3676 = vmul.f32 %v3612, %v3612
    %v3677 = vmul.f32 %v3613, %v3613
    %v3678 = vmul.f32 %v3614, %v3614
    %v3679 = vmul.f32 %v3615, %v3615
    %v3680 = vmul.f32 %v3616, %v3616
    %v3681 = vmul.f32 %v3617, %v3617
    %v3682 = vmul.f32 %v3618, %v3618
    %v3683 = vadd.f32 %v3619, %v3620
    %v3684 = vadd.f32 %v3683, %v3621
    %v3685 = vadd.f32 %v3684, %v3622
    %v3686 = vadd.f32 %v3685, %v3623
    %v3687 = vadd.f32 %v3686, %v3624
    %v3688 = vadd.f32 %v3687, %v3625
    %v3689 = vadd.f32 %v3688, %v3626
    %v3690 = vadd.f32 %v3689, %v3627
    %v3691 = vadd.f32 %v3690, %v3628
    %v3692 = vadd.f32 %v3691, %v3629
    %v3693 = vadd.f32 %v3692, %v3630
    %v3694 = vadd.f32 %v3693, %v3631
    %v3695 = vadd.f32 %v3694, %v3632
    %v3696 = vadd.f32 %v3695, %v3633
    %v3697 = vadd.f32 %v3696, %v3634
    %v3698 = vadd.f32 %v3697, %v3635
    %v3699 = vadd.f32 %v3698, %v3636
    %v3700 = vadd.f32 %v3699, %v3637
    %v3701 = vadd.f32 %v3700, %v3638
    %v3702 = vadd.f32 %v3701, %v3639
    %v3703 = vadd.f32 %v3702, %v3640
    %v3704 = vadd.f32 %v3703, %v3641
    %v3705 = vadd.f32 %v3704, %v3642
    %v3706 = vadd.f32 %v3705, %v3643
    %v3707 = vadd.f32 %v3706, %v3644
    %v3708 = vadd.f32 %v3707, %v3645
    %v3709 = vadd.f32 %v3708, %v3646
    %v3710 = vadd.f32 %v3709, %v3647
    %v3711 = vadd.f32 %v3710, %v3648
    %v3712 = vadd.f32 %v3711, %v3649
    %v3713 = vadd.f32 %v3712, %v3650
    %v3714 = vadd.f32 %v3713, %v3651
    %v3715 = vadd.f32 %v3714, %v3652
    %v3716 = vadd.f32 %v3715, %v3653
    %v3717 = vadd.f32 %v3716, %v3654
    %v3718 = vadd.f32 %v3717, %v3655
    %v3719 = vadd.f32 %v3718, %v3656
    %v3720 = vadd.f32 %v3719, %v3657
    %v3721 = vadd.f32 %v3720, %v3658
    %v3722 = vadd.f32 %v3721, %v3659
    %v3723 = vadd.f32 %v3722, %v3660
    %v3724 = vadd.f32 %v3723, %v3661
    %v3725 = vadd.f32 %v3724, %v3662
    %v3726 = vadd.f32 %v3725, %v3663
    %v3727 = vadd.f32 %v3726, %v3664
    %v3728 = vadd.f32 %v3727, %v3665
    %v3729 = vadd.f32 %v3728, %v3666
    %v3730 = vadd.f32 %v3729, %v3667
    %v3731 = vadd.f32 %v3730, %v3668
    %v3732 = vadd.f32 %v3731, %v3669
    %v3733 = vadd.f32 %v3732, %v3670
    %v3734 = vadd.f32 %v3733, %v3671
    %v3735 = vadd.f32 %v3734, %v3672
    %v3736 = vadd.f32 %v3735, %v3673
    %v3737 = vadd.f32 %v3736, %v3674
    %v3738 = vadd.f32 %v3737, %v3675
    %v3739 = vadd.f32 %v3738, %v3676
    %v3740 = vadd.f32 %v3739, %v3677
    %v3741 = vadd.f32 %v3740, %v3678
    %v3742 = vadd.f32 %v3741, %v3679
    %v3743 = vadd.f32 %v3742, %v3680
    %v3744 = vadd.f32 %v3743, %v3681
    %v3745 = vadd.f32 %v3744, %v3682
    %v3746 = vrot.slane %v3745, 4
    %v3747 = vadd.f32 %v3745, %v3746
    %v3748 = vrot.slane %v3747, 2
    %v3749 = vadd.f32 %v3747, %v3748
    %v3750 = vrot.slane %v3749, 1
    %v3751 = vadd.f32 %v3749, %v3750
    %v3752 = vmul.f32 %v3751, %v3553
    %v3753 = vadd.f32 %v3752, 1e-05
    %v3754 = vrsqrt.pop %v3753
    %v3755 = vmul.f32 %v3555, %v3754
    %v3756 = vmul.f32 %v3556, %v3754
    %v3757 = vmul.f32 %v3557, %v3754
    %v3758 = vmul.f32 %v3558, %v3754
    %v3759 = vmul.f32 %v3559, %v3754
    %v3760 = vmul.f32 %v3560, %v3754
    %v3761 = vmul.f32 %v3561, %v3754
    %v3762 = vmul.f32 %v3562, %v3754
    %v3763 = vmul.f32 %v3563, %v3754
    %v3764 = vmul.f32 %v3564, %v3754
    %v3765 = vmul.f32 %v3565, %v3754
    %v3766 = vmul.f32 %v3566, %v3754
    %v3767 = vmul.f32 %v3567, %v3754
    %v3768 = vmul.f32 %v3568, %v3754
    %v3769 = vmul.f32 %v3569, %v3754
    %v3770 = vmul.f32 %v3570, %v3754
    %v3771 = vmul.f32 %v3571, %v3754
    %v3772 = vmul.f32 %v3572, %v3754
    %v3773 = vmul.f32 %v3573, %v3754
    %v3774 = vmul.f32 %v3574, %v3754
    %v3775 = vmul.f32 %v3575, %v3754
    %v3776 = vmul.f32 %v3576, %v3754
    %v3777 = vmul.f32 %v3577, %v3754
    %v3778 = vmul.f32 %v3578, %v3754
    %v3779 = vmul.f32 %v3579, %v3754
    %v3780 = vmul.f32 %v3580, %v3754
    %v3781 = vmul.f32 %v3581, %v3754
    %v3782 = vmul.f32 %v3582, %v3754
    %v3783 = vmul.f32 %v3583, %v3754
    %v3784 = vmul.f32 %v3584, %v3754
    %v3785 = vmul.f32 %v3585, %v3754
    %v3786 = vmul.f32 %v3586, %v3754
    %v3787 = vmul.f32 %v3587, %v3754
    %v3788 = vmul.f32 %v3588, %v3754
    %v3789 = vmul.f32 %v3589, %v3754
    %v3790 = vmul.f32 %v3590, %v3754
    %v3791 = vmul.f32 %v3591, %v3754
    %v3792 = vmul.f32 %v3592, %v3754
    %v3793 = vmul.f32 %v3593, %v3754
    %v3794 = vmul.f32 %v3594, %v3754
    %v3795 = vmul.f32 %v3595, %v3754
    %v3796 = vmul.f32 %v3596, %v3754
    %v3797 = vmul.f32 %v3597, %v3754
    %v3798 = vmul.f32 %v3598, %v3754
    %v3799 = vmul.f32 %v3599, %v3754
    %v3800 = vmul.f32 %v3600, %v3754
    %v3801 = vmul.f32 %v3601, %v3754
    %v3802 = vmul.f32 %v3602, %v3754
    %v3803 = vmul.f32 %v3603, %v3754
    %v3804 = vmul.f32 %v3604, %v3754
    %v3805 = vmul.f32 %v3605, %v3754
    %v3806 = vmul.f32 %v3606, %v3754
    %v3807 = vmul.f32 %v3607, %v3754
    %v3808 = vmul.f32 %v3608, %v3754
    %v3809 = vmul.f32 %v3609, %v3754
    %v3810 = vmul.f32 %v3610, %v3754
    %v3811 = vmul.f32 %v3611, %v3754
    %v3812 = vmul.f32 %v3612, %v3754
    %v3813 = vmul.f32 %v3613, %v3754
    %v3814 = vmul.f32 %v3614, %v3754
    %v3815 = vmul.f32 %v3615, %v3754
    %v3816 = vmul.f32 %v3616, %v3754
    %v3817 = vmul.f32 %v3617, %v3754
    %v3818 = vmul.f32 %v3618, %v3754
    %v3820 = vlaneseq
    %v3821 = vshrl.u32 %v3820, 7
    %v3822 = vsub.s32 0, %v3821
    %v3823 = vrot.slane %v3482, %v3822
    %v3825 = vmul.f32 %v3755, %v3823
    %v3826 = vmul.f32 %v3756, %v3823
    %v3827 = vmul.f32 %v3757, %v3823
    %v3828 = vmul.f32 %v3758, %v3823
    %v3829 = vmul.f32 %v3759, %v3823
    %v3830 = vmul.f32 %v3760, %v3823
    %v3831 = vmul.f32 %v3761, %v3823
    %v3832 = vmul.f32 %v3762, %v3823
    %v3833 = vmul.f32 %v3763, %v3823
    %v3834 = vmul.f32 %v3764, %v3823
    %v3835 = vmul.f32 %v3765, %v3823
    %v3836 = vmul.f32 %v3766, %v3823
    %v3837 = vmul.f32 %v3767, %v3823
    %v3838 = vmul.f32 %v3768, %v3823
    %v3839 = vmul.f32 %v3769, %v3823
    %v3840 = vmul.f32 %v3770, %v3823
    %v3841 = vmul.f32 %v3771, %v3823
    %v3842 = vmul.f32 %v3772, %v3823
    %v3843 = vmul.f32 %v3773, %v3823
    %v3844 = vmul.f32 %v3774, %v3823
    %v3845 = vmul.f32 %v3775, %v3823
    %v3846 = vmul.f32 %v3776, %v3823
    %v3847 = vmul.f32 %v3777, %v3823
    %v3848 = vmul.f32 %v3778, %v3823
    %v3849 = vmul.f32 %v3779, %v3823
    %v3850 = vmul.f32 %v3780, %v3823
    %v3851 = vmul.f32 %v3781, %v3823
    %v3852 = vmul.f32 %v3782, %v3823
    %v3853 = vmul.f32 %v3783, %v3823
    %v3854 = vmul.f32 %v3784, %v3823
    %v3855 = vmul.f32 %v3785, %v3823
    %v3856 = vmul.f32 %v3786, %v3823
    %v3857 = vmul.f32 %v3787, %v3823
    %v3858 = vmul.f32 %v3788, %v3823
    %v3859 = vmul.f32 %v3789, %v3823
    %v3860 = vmul.f32 %v3790, %v3823
    %v3861 = vmul.f32 %v3791, %v3823
    %v3862 = vmul.f32 %v3792, %v3823
    %v3863 = vmul.f32 %v3793, %v3823
    %v3864 = vmul.f32 %v3794, %v3823
    %v3865 = vmul.f32 %v3795, %v3823
    %v3866 = vmul.f32 %v3796, %v3823
    %v3867 = vmul.f32 %v3797, %v3823
    %v3868 = vmul.f32 %v3798, %v3823
    %v3869 = vmul.f32 %v3799, %v3823
    %v3870 = vmul.f32 %v3800, %v3823
    %v3871 = vmul.f32 %v3801, %v3823
    %v3872 = vmul.f32 %v3802, %v3823
    %v3873 = vmul.f32 %v3803, %v3823
    %v3874 = vmul.f32 %v3804, %v3823
    %v3875 = vmul.f32 %v3805, %v3823
    %v3876 = vmul.f32 %v3806, %v3823
    %v3877 = vmul.f32 %v3807, %v3823
    %v3878 = vmul.f32 %v3808, %v3823
    %v3879 = vmul.f32 %v3809, %v3823
    %v3880 = vmul.f32 %v3810, %v3823
    %v3881 = vmul.f32 %v3811, %v3823
    %v3882 = vmul.f32 %v3812, %v3823
    %v3883 = vmul.f32 %v3813, %v3823
    %v3884 = vmul.f32 %v3814, %v3823
    %v3885 = vmul.f32 %v3815, %v3823
    %v3886 = vmul.f32 %v3816, %v3823
    %v3887 = vmul.f32 %v3817, %v3823
    %v3888 = vmul.f32 %v3818, %v3823
    %v3890 = vlaneseq
    %v3891 = vshrl.u32 %v3890, 7
    %v3892 = vsub.s32 0, %v3891
    %v3893 = vrot.slane %v3483, %v3892
    %v3895 = vadd.f32 %v3825, %v3893
    %v3896 = vadd.f32 %v3826, %v3893
    %v3897 = vadd.f32 %v3827, %v3893
    %v3898 = vadd.f32 %v3828, %v3893
    %v3899 = vadd.f32 %v3829, %v3893
    %v3900 = vadd.f32 %v3830, %v3893
    %v3901 = vadd.f32 %v3831, %v3893
    %v3902 = vadd.f32 %v3832, %v3893
    %v3903 = vadd.f32 %v3833, %v3893
    %v3904 = vadd.f32 %v3834, %v3893
    %v3905 = vadd.f32 %v3835, %v3893
    %v3906 = vadd.f32 %v3836, %v3893
    %v3907 = vadd.f32 %v3837, %v3893
    %v3908 = vadd.f32 %v3838, %v3893
    %v3909 = vadd.f32 %v3839, %v3893
    %v3910 = vadd.f32 %v3840, %v3893
    %v3911 = vadd.f32 %v3841, %v3893
    %v3912 = vadd.f32 %v3842, %v3893
    %v3913 = vadd.f32 %v3843, %v3893
    %v3914 = vadd.f32 %v3844, %v3893
    %v3915 = vadd.f32 %v3845, %v3893
    %v3916 = vadd.f32 %v3846, %v3893
    %v3917 = vadd.f32 %v3847, %v3893
    %v3918 = vadd.f32 %v3848, %v3893
    %v3919 = vadd.f32 %v3849, %v3893
    %v3920 = vadd.f32 %v3850, %v3893
    %v3921 = vadd.f32 %v3851, %v3893
    %v3922 = vadd.f32 %v3852, %v3893
    %v3923 = vadd.f32 %v3853, %v3893
    %v3924 = vadd.f32 %v3854, %v3893
    %v3925 = vadd.f32 %v3855, %v3893
    %v3926 = vadd.f32 %v3856, %v3893
    %v3927 = vadd.f32 %v3857, %v3893
    %v3928 = vadd.f32 %v3858, %v3893
    %v3929 = vadd.f32 %v3859, %v3893
    %v3930 = vadd.f32 %v3860, %v3893
    %v3931 = vadd.f32 %v3861, %v3893
    %v3932 = vadd.f32 %v3862, %v3893
    %v3933 = vadd.f32 %v3863, %v3893
    %v3934 = vadd.f32 %v3864, %v3893
    %v3935 = vadd.f32 %v3865, %v3893
    %v3936 = vadd.f32 %v3866, %v3893
    %v3937 = vadd.f32 %v3867, %v3893
    %v3938 = vadd.f32 %v3868, %v3893
    %v3939 = vadd.f32 %v3869, %v3893
    %v3940 = vadd.f32 %v3870, %v3893
    %v3941 = vadd.f32 %v3871, %v3893
    %v3942 = vadd.f32 %v3872, %v3893
    %v3943 = vadd.f32 %v3873, %v3893
    %v3944 = vadd.f32 %v3874, %v3893
    %v3945 = vadd.f32 %v3875, %v3893
    %v3946 = vadd.f32 %v3876, %v3893
    %v3947 = vadd.f32 %v3877, %v3893
    %v3948 = vadd.f32 %v3878, %v3893
    %v3949 = vadd.f32 %v3879, %v3893
    %v3950 = vadd.f32 %v3880, %v3893
    %v3951 = vadd.f32 %v3881, %v3893
    %v3952 = vadd.f32 %v3882, %v3893
    %v3953 = vadd.f32 %v3883, %v3893
    %v3954 = vadd.f32 %v3884, %v3893
    %v3955 = vadd.f32 %v3885, %v3893
    %v3956 = vadd.f32 %v3886, %v3893
    %v3957 = vadd.f32 %v3887, %v3893
    %v3958 = vadd.f32 %v3888, %v3893
    %3959 = vst [vmem:[#allocation3] sm:$0xff] %v3895
    %3960 = vst [vmem:[#allocation3 + $0x8] sm:$0xff] %v3896
    %3961 = vst [vmem:[#allocation3 + $0x10] sm:$0xff] %v3897
    %3962 = vst [vmem:[#allocation3 + $0x18] sm:$0xff] %v3898
    %3963 = vst [vmem:[#allocation3 + $0x20] sm:$0xff] %v3899
    %3964 = vst [vmem:[#allocation3 + $0x28] sm:$0xff] %v3900
    %3965 = vst [vmem:[#allocation3 + $0x30] sm:$0xff] %v3901
    %3966 = vst [vmem:[#allocation3 + $0x38] sm:$0xff] %v3902
    %3967 = vst [vmem:[#allocation3 + $0x40] sm:$0xff] %v3903
    %3968 = vst [vmem:[#allocation3 + $0x48] sm:$0xff] %v3904
    %3969 = vst [vmem:[#allocation3 + $0x50] sm:$0xff] %v3905
    %3970 = vst [vmem:[#allocation3 + $0x58] sm:$0xff] %v3906
    %3971 = vst [vmem:[#allocation3 + $0x60] sm:$0xff] %v3907
    %3972 = vst [vmem:[#allocation3 + $0x68] sm:$0xff] %v3908
    %3973 = vst [vmem:[#allocation3 + $0x70] sm:$0xff] %v3909
    %3974 = vst [vmem:[#allocation3 + $0x78] sm:$0xff] %v3910
    %3975 = vst [vmem:[#allocation3 + $0x80] sm:$0xff] %v3911
    %3976 = vst [vmem:[#allocation3 + $0x88] sm:$0xff] %v3912
    %3977 = vst [vmem:[#allocation3 + $0x90] sm:$0xff] %v3913
    %3978 = vst [vmem:[#allocation3 + $0x98] sm:$0xff] %v3914
    %3979 = vst [vmem:[#allocation3 + $0xa0] sm:$0xff] %v3915
    %3980 = vst [vmem:[#allocation3 + $0xa8] sm:$0xff] %v3916
    %3981 = vst [vmem:[#allocation3 + $0xb0] sm:$0xff] %v3917
    %3982 = vst [vmem:[#allocation3 + $0xb8] sm:$0xff] %v3918
    %3983 = vst [vmem:[#allocation3 + $0xc0] sm:$0xff] %v3919
    %3984 = vst [vmem:[#allocation3 + $0xc8] sm:$0xff] %v3920
    %3985 = vst [vmem:[#allocation3 + $0xd0] sm:$0xff] %v3921
    %3986 = vst [vmem:[#allocation3 + $0xd8] sm:$0xff] %v3922
    %3987 = vst [vmem:[#allocation3 + $0xe0] sm:$0xff] %v3923
    %3988 = vst [vmem:[#allocation3 + $0xe8] sm:$0xff] %v3924
    %3989 = vst [vmem:[#allocation3 + $0xf0] sm:$0xff] %v3925
    %3990 = vst [vmem:[#allocation3 + $0xf8] sm:$0xff] %v3926
    %3991 = vst [vmem:[#allocation3 + $0x100] sm:$0xff] %v3927
    %3992 = vst [vmem:[#allocation3 + $0x108] sm:$0xff] %v3928
    %3993 = vst [vmem:[#allocation3 + $0x110] sm:$0xff] %v3929
    %3994 = vst [vmem:[#allocation3 + $0x118] sm:$0xff] %v3930
    %3995 = vst [vmem:[#allocation3 + $0x120] sm:$0xff] %v3931
    %3996 = vst [vmem:[#allocation3 + $0x128] sm:$0xff] %v3932
    %3997 = vst [vmem:[#allocation3 + $0x130] sm:$0xff] %v3933
    %3998 = vst [vmem:[#allocation3 + $0x138] sm:$0xff] %v3934
    %3999 = vst [vmem:[#allocation3 + $0x140] sm:$0xff] %v3935
    %4000 = vst [vmem:[#allocation3 + $0x148] sm:$0xff] %v3936
    %4001 = vst [vmem:[#allocation3 + $0x150] sm:$0xff] %v3937
    %4002 = vst [vmem:[#allocation3 + $0x158] sm:$0xff] %v3938
    %4003 = vst [vmem:[#allocation3 + $0x160] sm:$0xff] %v3939
    %4004 = vst [vmem:[#allocation3 + $0x168] sm:$0xff] %v3940
    %4005 = vst [vmem:[#allocation3 + $0x170] sm:$0xff] %v3941
    %4006 = vst [vmem:[#allocation3 + $0x178] sm:$0xff] %v3942
    %4007 = vst [vmem:[#allocation3 + $0x180] sm:$0xff] %v3943
    %4008 = vst [vmem:[#allocation3 + $0x188] sm:$0xff] %v3944
    %4009 = vst [vmem:[#allocation3 + $0x190] sm:$0xff] %v3945
    %4010 = vst [vmem:[#allocation3 + $0x198] sm:$0xff] %v3946
    %4011 = vst [vmem:[#allocation3 + $0x1a0] sm:$0xff] %v3947
    %4012 = vst [vmem:[#allocation3 + $0x1a8] sm:$0xff] %v3948
    %4013 = vst [vmem:[#allocation3 + $0x1b0] sm:$0xff] %v3949
    %4014 = vst [vmem:[#allocation3 + $0x1b8] sm:$0xff] %v3950
    %4015 = vst [vmem:[#allocation3 + $0x1c0] sm:$0xff] %v3951
    %4016 = vst [vmem:[#allocation3 + $0x1c8] sm:$0xff] %v3952
    %4017 = vst [vmem:[#allocation3 + $0x1d0] sm:$0xff] %v3953
    %4018 = vst [vmem:[#allocation3 + $0x1d8] sm:$0xff] %v3954
    %4019 = vst [vmem:[#allocation3 + $0x1e0] sm:$0xff] %v3955
    %4020 = vst [vmem:[#allocation3 + $0x1e8] sm:$0xff] %v3956
    %4021 = vst [vmem:[#allocation3 + $0x1f0] sm:$0xff] %v3957
    %4022 = vst [vmem:[#allocation3 + $0x1f8] sm:$0xff] %v3958
    // Predicated region
    $region18: #{tpu_custom_call.1} parent=1 // pred_check
      _
    $region19: #{tpu_custom_call.1} parent=1 // pred_check_branch
      %4024 = sbr.rel (0) target = $region21
    $region20: #{tpu_custom_call.1} parent=1 // pred_region
      %s4026 = ssub.s32 8192, 8192
      %4027 = vsyncadd [#allocation4], %s4026
      %s4028 = sshll.u32 [#allocation3], 4
      %s4029 = int_to_ptr.vmem [resolvable:$true] %s4028
      %4034 = dma.vmem_to_hbm [thread:$0]  %s4029, 8192, %s4, [#allocation4], 128, 128, 8
    $region21: #{tpu_custom_call.1} parent=1 // pred_fallthru
      _
    // Predicated region
    $region22: #{tpu_custom_call.1} parent=1 // pred_check
      _
    $region23: #{tpu_custom_call.1} parent=1 // pred_check_branch
      %4036 = sbr.rel (0) target = $region25
    $region24: #{tpu_custom_call.1} parent=1 // pred_region
      %4037 = dma.done [#allocation4], 8192
    $region25: #{tpu_custom_call.1} parent=1 // pred_fallthru
      _
    %4038 = vsyncpa [#allocation4], 1

</llo_original>
